<compile_context>
chip_gen: v7x
topology: tpu7x:2x2x1
jax: 0.10.0
libtpu: 0.0.40
codegen_flags: <defaults>
</compile_context>

<pallas_src>
import functools

import numpy as np
import jax
import jax.numpy as jnp
from jax.experimental import pallas as pl
from jax.experimental.pallas import tpu as pltpu


LANE = 128


def _round_up(n, m):
    return n if n % m == 0 else (n + m - 1) // m * m


def _vmem_capacity_bytes():
    try:
        return int(pltpu.get_tpu_info().vmem_capacity_bytes)
    except Exception:
        return 64 * 1024 * 1024   # conservative (v7x per-TensorCore VMEM)


# ----------------------------------------------------------------------------
# Kernel: one full encoder layer for one (batch, q-tile) grid step
# ----------------------------------------------------------------------------

def encoder_layer_kernel(*refs, n_head, d_q, d_k, d_v, eps, add_pe, tq,
                         s_valid, s_pad):
    if add_pe:
        (x_ref, pe_ref, wq_ref, wk_ref, wv_ref, wo_ref,
         ln1_g_ref, ln1_b_ref, w1_ref, b1_ref, w2_ref, b2_ref,
         ln2_g_ref, ln2_b_ref, out_ref, attn_ref,
         k_scr, v_scr, q_scr, o_scr) = refs
    else:
        (x_ref, wq_ref, wk_ref, wv_ref, wo_ref,
         ln1_g_ref, ln1_b_ref, w1_ref, b1_ref, w2_ref, b2_ref,
         ln2_g_ref, ln2_b_ref, out_ref, attn_ref,
         k_scr, v_scr, q_scr, o_scr) = refs
        pe_ref = None

    # --- K / V projections: computed once per batch element (q-tile 0) and
    #     kept resident in bf16 VMEM scratch.  Full-width (D x H*d) matmuls.
    @pl.when(pl.program_id(1) == 0)
    def _():
        x_kv = x_ref[0]                                   # (S_pad, D) f32
        if add_pe:
            x_kv = x_kv + pe_ref[...]                     # fused positional encoding
        x_kv_b = x_kv.astype(jnp.bfloat16)
        k_flat = jnp.dot(x_kv_b, wk_ref[...],
                         preferred_element_type=jnp.float32).astype(jnp.bfloat16)
        v_flat = jnp.dot(x_kv_b, wv_ref[...],
                         preferred_element_type=jnp.float32).astype(jnp.bfloat16)
        for h in range(n_head):                           # static split into heads
            k_scr[h] = k_flat[:, h * d_k:(h + 1) * d_k]
            v_scr[h] = v_flat[:, h * d_v:(h + 1) * d_v]

    q_start = pl.multiple_of(pl.program_id(1) * tq, tq)
    x_q = x_ref[0, pl.ds(q_start, tq), :]                 # (TQ, D) f32, residual path
    if add_pe:
        x_q = x_q + pe_ref[pl.ds(q_start, tq), :]

    # --- Q projection: one full-width matmul (1/sqrt(d_model) folded into Wq).
    q_flat = jnp.dot(x_q.astype(jnp.bfloat16), wq_ref[...],
                     preferred_element_type=jnp.float32).astype(jnp.bfloat16)
    for h in range(n_head):
        q_scr[h] = q_flat[:, h * d_q:(h + 1) * d_q]       # (H, TQ, dq) staging

    # --- attention scores + softmax (f32); heads batched on the MXU.
    scores = jax.lax.dot_general(q_scr[...], k_scr[...],
                                 (((2,), (2,)), ((0,), (0,))),
                                 preferred_element_type=jnp.float32)  # (H, TQ, S_pad)
    if s_valid != s_pad:                                  # mask padded key positions
        col = jax.lax.broadcasted_iota(jnp.int32, (1, tq, s_pad), 2)
        scores = jnp.where(col < s_valid, scores, -1e30)
    s_max = jnp.max(scores, axis=-1, keepdims=True)
    e = jnp.exp(scores - s_max)
    denom = jnp.sum(e, axis=-1, keepdims=True)
    attn = e * (1.0 / denom)                              # exact division for the stored map

    attn_ref[0] = attn.astype(attn_ref.dtype)             # single (H, TQ, S_pad) store

    head_out = jax.lax.dot_general(attn.astype(jnp.bfloat16), v_scr[...],
                                   (((2,), (1,)), ((0,), (0,))),
                                   preferred_element_type=jnp.float32)  # (H, TQ, dv)

    # --- output projection: concat heads -> one full-K matmul against Wo[H*dv, D].
    for h in range(n_head):
        o_scr[:, h * d_v:(h + 1) * d_v] = head_out[h].astype(jnp.bfloat16)
    score = jnp.dot(o_scr[...], wo_ref[...],
                    preferred_element_type=jnp.float32)   # (TQ, D)

    # --- residual + LayerNorm 1 (f32) ---
    y = score + x_q
    mu = jnp.mean(y, axis=-1, keepdims=True)
    var = jnp.mean((y - mu) ** 2, axis=-1, keepdims=True)
    y1 = (y - mu) * jax.lax.rsqrt(var + eps) * ln1_g_ref[...] + ln1_b_ref[...]

    # --- feed-forward: fc1 -> ReLU -> fc2 (bf16 matmuls, f32 accumulate) ---
    h1 = jnp.dot(y1.astype(jnp.bfloat16), w1_ref[...],
                 preferred_element_type=jnp.float32) + b1_ref[...]
    h1 = jnp.maximum(h1, 0.0)
    h2 = jnp.dot(h1.astype(jnp.bfloat16), w2_ref[...],
                 preferred_element_type=jnp.float32) + b2_ref[...]

    # --- residual + LayerNorm 2 (f32) ---
    z = h2 + y1
    mu2 = jnp.mean(z, axis=-1, keepdims=True)
    var2 = jnp.mean((z - mu2) ** 2, axis=-1, keepdims=True)
    out_ref[0] = (z - mu2) * jax.lax.rsqrt(var2 + eps) * ln2_g_ref[...] + ln2_b_ref[...]


# ----------------------------------------------------------------------------
# Wrappers
# ----------------------------------------------------------------------------

def encoder_layer(x_bsd, params, *, n_head, d_q, d_k, d_v, d_model, s_valid,
                  pe=None, eps=1e-5, attn_dtype=jnp.bfloat16):
    """x_bsd: [B, S_pad, D] f32 (sequence already padded to a multiple of 128
    when necessary).  pe: [S_pad, D] f32 or None (fused PE add, layer 0 only)."""
    B, S_pad, D = x_bsd.shape
    F = params["w1"].shape[1]
    add_pe = pe is not None

    vmem_cap = _vmem_capacity_bytes()
    # q-tile size: 128 default; 256 when VMEM is 128 MiB-class (v5e/v6e) and
    # S permits.  Whole sequence when S is small / odd.
    if S_pad % 256 == 0 and vmem_cap >= 100 * 1024 * 1024:
        TQ = 256
    elif S_pad % LANE == 0:
        TQ = LANE
    else:
        TQ = S_pad
    n_qt = S_pad // TQ

    kernel = functools.partial(
        encoder_layer_kernel,
        n_head=n_head, d_q=d_q, d_k=d_k, d_v=d_v, eps=eps,
        add_pe=add_pe, tq=TQ, s_valid=s_valid, s_pad=S_pad)

    bf16 = lambda a: a.astype(jnp.bfloat16)
    scale = 1.0 / np.sqrt(d_model)            # DotScore: sqrt(d_model), NOT sqrt(d_k)
    wq = bf16(params["wq"] * scale)           # fold the score scale into Wq
    wk = bf16(params["wk"])
    wv = bf16(params["wv"])
    wo = bf16(params["wo"])
    w1 = bf16(params["w1"])
    w2 = bf16(params["w2"])

    rep2 = lambda shape: pl.BlockSpec(shape, lambda b, q: (0, 0))

    in_specs = [pl.BlockSpec((1, S_pad, D), lambda b, q: (b, 0, 0))]   # x, full sequence
    inputs = [x_bsd]
    if add_pe:
        in_specs.append(rep2((S_pad, D)))
        inputs.append(pe)
    in_specs += [
        rep2((D, n_head * d_q)), rep2((D, n_head * d_k)), rep2((D, n_head * d_v)),
        rep2((n_head * d_v, D)),
        rep2((1, D)), rep2((1, D)),                                    # ln1 gamma/beta
        rep2((D, F)), rep2((1, F)), rep2((F, D)), rep2((1, D)),        # fc1/fc2
        rep2((1, D)), rep2((1, D)),                                    # ln2 gamma/beta
    ]
    inputs += [
        wq, wk, wv, wo,
        params["ln1_g"], params["ln1_b"],
        w1, params["b1"], w2, params["b2"],
        params["ln2_g"], params["ln2_b"],
    ]

    out, attn = pl.pallas_call(
        kernel,
        out_shape=(
            jax.ShapeDtypeStruct((B, S_pad, D), jnp.float32),
            jax.ShapeDtypeStruct((B, n_head, S_pad, S_pad), attn_dtype),
        ),
        grid=(B, n_qt),
        in_specs=in_specs,
        out_specs=(
            pl.BlockSpec((1, TQ, D), lambda b, q: (b, q, 0)),
            pl.BlockSpec((1, n_head, TQ, S_pad), lambda b, q: (b, 0, q, 0)),
        ),
        scratch_shapes=[
            pltpu.VMEM((n_head, S_pad, d_k), jnp.bfloat16),   # K, resident per batch
            pltpu.VMEM((n_head, S_pad, d_v), jnp.bfloat16),   # V, resident per batch
            pltpu.VMEM((n_head, TQ, d_q), jnp.bfloat16),      # per-tile Q, split by head
            pltpu.VMEM((TQ, n_head * d_v), jnp.bfloat16),     # concat(heads) staging
        ],
        compiler_params=pltpu.CompilerParams(
            # K/V scratch is filled at q-tile 0 and reused by later q-tiles, so
            # the q axis must iterate sequentially on a core when n_qt > 1.
            dimension_semantics=("parallel", "parallel" if n_qt == 1 else "arbitrary"),
            # ~48 MiB on v7x (64 MiB/TC), ~96 MiB on v5e/v6e (128 MiB).
            vmem_limit_bytes=int(min(vmem_cap * 3 // 4, 112 * 1024 * 1024)),
        ),
    )(*inputs)
    return out, attn


def make_position_encoding(d_model, max_len):
    """Exact reproduction of PositionEncoding.__init__ (including its quirks)."""
    pe = np.array(
        [[pos / 10000 ** (2 * i / d_model) for i in range(d_model)]
         for pos in range(max_len)],
        dtype=np.float64,
    )
    pe[1:, ::2] = np.sin(pe[1:, ::2])
    pe[1:, ::2] = np.cos(pe[1:, ::2])
    return jnp.asarray(pe, dtype=jnp.float32)


def init_encoder_params(key, d_model, n_head, d_q, d_k, d_v, dim_ff, n_layer):
    params = []
    for _ in range(n_layer):
        keys = jax.random.split(key, 7)
        key = keys[0]
        s = 0.05
        layer = {
            # stored as W^T so y = x @ W^T matches nn.Linear
            "wq": jax.random.normal(keys[1], (d_model, n_head * d_q), jnp.float32) * s,
            "wk": jax.random.normal(keys[2], (d_model, n_head * d_k), jnp.float32) * s,
            "wv": jax.random.normal(keys[3], (d_model, n_head * d_v), jnp.float32) * s,
            "wo": jax.random.normal(keys[4], (n_head * d_v, d_model), jnp.float32) * s,
            "ln1_g": jnp.ones((1, d_model), jnp.float32),
            "ln1_b": jnp.zeros((1, d_model), jnp.float32),
            "w1": jax.random.normal(keys[5], (d_model, dim_ff), jnp.float32) * s,
            "b1": jnp.zeros((1, dim_ff), jnp.float32),
            "w2": jax.random.normal(keys[6], (dim_ff, d_model), jnp.float32) * s,
            "b2": jnp.zeros((1, d_model), jnp.float32),
            "ln2_g": jnp.ones((1, d_model), jnp.float32),
            "ln2_b": jnp.zeros((1, d_model), jnp.float32),
        }
        params.append(layer)
    return params


def encoder_forward(x_bds, params, pe, *, n_head, d_q, d_k, d_v, d_model,
                    attn_dtype=jnp.bfloat16):
    """x_bds: [B, d_model, seq_len] (PyTorch convention). Returns (x, attns)."""
    x = jnp.transpose(x_bds, (0, 2, 1))                   # -> [B, S, D]
    B, S, D = x.shape

    # Pad the sequence to a multiple of 128 for lane-dense stores / 128-wide
    # q tiles; padded key positions are masked inside the kernel and padded
    # rows are sliced off below.  attn_mask itself is a no-op (DotScore ignores it).
    S_pad = _round_up(S, LANE)
    pe_s = pe[:S, :]
    if S_pad != S:
        x = jnp.pad(x, ((0, 0), (0, S_pad - S), (0, 0)))
        pe_s = jnp.pad(pe_s, ((0, S_pad - S), (0, 0)))

    attns = []
    for li, lp in enumerate(params):
        # PE add (dropout p=0 == identity) is fused into layer 0's kernel.
        x, attn = encoder_layer(
            x, lp, n_head=n_head, d_q=d_q, d_k=d_k, d_v=d_v, d_model=d_model,
            s_valid=S, pe=pe_s if li == 0 else None, attn_dtype=attn_dtype,
        )
        attns.append(attn[:, :, :S, :S] if S_pad != S else attn)
    if S_pad != S:
        x = x[:, :S, :]
    return x, attns


# ----------------------------------------------------------------------------
# Pure-JAX f32 reference (mirrors the PyTorch math) for a correctness check
# ----------------------------------------------------------------------------

def _ref_layer(x, p, n_head, d_q, d_k, d_v, d_model, eps=1e-5):
    B, S, D = x.shape
    q = (x @ p["wq"]).reshape(B, S, n_head, d_q).transpose(0, 2, 1, 3)
    k = (x @ p["wk"]).reshape(B, S, n_head, d_k).transpose(0, 2, 1, 3)
    v = (x @ p["wv"]).reshape(B, S, n_head, d_v).transpose(0, 2, 1, 3)
    s = jnp.einsum("bhqd,bhkd->bhqk", q, k) / np.sqrt(d_model)
    attn = jax.nn.softmax(s, axis=-1)
    o = jnp.einsum("bhqk,bhkd->bhqd", attn, v)
    o = o.transpose(0, 2, 1, 3).reshape(B, S, n_head * d_v) @ p["wo"]
    y = o + x
    y = (y - y.mean(-1, keepdims=True)) / jnp.sqrt(y.var(-1, keepdims=True) + eps)
    y = y * p["ln1_g"] + p["ln1_b"]
    h = jnp.maximum(y @ p["w1"] + p["b1"], 0.0) @ p["w2"] + p["b2"]
    z = h + y
    z = (z - z.mean(-1, keepdims=True)) / jnp.sqrt(z.var(-1, keepdims=True) + eps)
    z = z * p["ln2_g"] + p["ln2_b"]
    return z, attn


def _ref_encoder(x_bds, params, pe, n_head, d_q, d_k, d_v, d_model):
    x = jnp.transpose(x_bds, (0, 2, 1))
    x = x + pe[: x.shape[1], :]
    attns = []
    for p in params:
        x, a = _ref_layer(x, p, n_head, d_q, d_k, d_v, d_model)
        attns.append(a)
    return x, attns


# ----------------------------------------------------------------------------
# Main
# ----------------------------------------------------------------------------

if __name__ == "__main__":
    # Small shapes consistent with the module (n_head * d_q == d_model, as in
    # the default config 512 = 8 * 64).
    B, S = 2, 8
    D_MODEL, N_HEAD = 32, 4
    D_Q = D_K = D_V = D_MODEL // N_HEAD          # 8
    DIM_FF = 64
    N_LAYER = 2

    key = jax.random.PRNGKey(0)
    k_x, k_p = jax.random.split(key)

    # PyTorch Encoder input convention: [batch, d_model, seq_len]
    x = jax.random.normal(k_x, (B, D_MODEL, S), dtype=jnp.float32)

    pe = make_position_encoding(D_MODEL, max_len=64)
    params = init_encoder_params(k_p, D_MODEL, N_HEAD, D_Q, D_K, D_V, DIM_FF, N_LAYER)

    out, attns = encoder_forward(
        x, params, pe, n_head=N_HEAD, d_q=D_Q, d_k=D_K, d_v=D_V, d_model=D_MODEL
    )
    out = jax.block_until_ready(out)
    attns = [jax.block_until_ready(a) for a in attns]

    # Sanity-check against a pure-JAX f32 reference of the same math
    # (kernel uses bf16 matmuls and stores attn in bf16 -> loose tolerances).
    ref_out, ref_attns = _ref_encoder(x, params, pe, N_HEAD, D_Q, D_K, D_V, D_MODEL)
    np.testing.assert_allclose(np.asarray(out), np.asarray(ref_out), rtol=5e-2, atol=5e-2)
    for a, ra in zip(attns, ref_attns):
        np.testing.assert_allclose(np.asarray(a.astype(jnp.float32)),
                                   np.asarray(ra), rtol=5e-2, atol=3e-2)

    assert out.shape == (B, S, D_MODEL)
    assert attns[0].shape == (B, N_HEAD, S, S)
    print("KERNEL_OK")
</pallas_src>

<mosaic_0001>
module attributes {stable_mosaic.version = 11 : i64} {
  func.func @encoder_layer_kernel(%arg0: i32, %arg1: i32, %arg2: memref<1x128x32xf32, #tpu.memory_space<vmem>>, %arg3: memref<128x32xf32, #tpu.memory_space<vmem>>, %arg4: memref<32x32xbf16, #tpu.memory_space<vmem>>, %arg5: memref<32x32xbf16, #tpu.memory_space<vmem>>, %arg6: memref<32x32xbf16, #tpu.memory_space<vmem>>, %arg7: memref<32x32xbf16, #tpu.memory_space<vmem>>, %arg8: memref<1x32xf32, #tpu.memory_space<vmem>>, %arg9: memref<1x32xf32, #tpu.memory_space<vmem>>, %arg10: memref<32x64xbf16, #tpu.memory_space<vmem>>, %arg11: memref<1x64xf32, #tpu.memory_space<vmem>>, %arg12: memref<64x32xbf16, #tpu.memory_space<vmem>>, %arg13: memref<1x32xf32, #tpu.memory_space<vmem>>, %arg14: memref<1x32xf32, #tpu.memory_space<vmem>>, %arg15: memref<1x32xf32, #tpu.memory_space<vmem>>, %arg16: memref<1x128x32xf32, #tpu.memory_space<vmem>>, %arg17: memref<1x4x128x128xbf16, #tpu.memory_space<vmem>>, %arg18: memref<4x128x8xbf16, #tpu.memory_space<vmem>>, %arg19: memref<4x128x8xbf16, #tpu.memory_space<vmem>>, %arg20: memref<4x128x8xbf16, #tpu.memory_space<vmem>>, %arg21: memref<128x32xbf16, #tpu.memory_space<vmem>>) attributes {dimension_semantics = [#tpu.dimension_semantics<parallel>, #tpu.dimension_semantics<parallel>], iteration_bounds = array<i64: 2, 1>, scalar_prefetch = 0 : i64, scratch_operands = 4 : i64, tpu.core_type = #tpu.core_type<tc>, window_params = [{transform_indices = @transform_0, window_bounds = array<i64: 1, 128, 32>}, {pipeline_mode = #tpu.pipeline_mode<synchronous>, transform_indices = @transform_1, window_bounds = array<i64: 128, 32>}, {pipeline_mode = #tpu.pipeline_mode<synchronous>, transform_indices = @transform_2, window_bounds = array<i64: 32, 32>}, {pipeline_mode = #tpu.pipeline_mode<synchronous>, transform_indices = @transform_3, window_bounds = array<i64: 32, 32>}, {pipeline_mode = #tpu.pipeline_mode<synchronous>, transform_indices = @transform_4, window_bounds = array<i64: 32, 32>}, {pipeline_mode = #tpu.pipeline_mode<synchronous>, transform_indices = @transform_5, window_bounds = array<i64: 32, 32>}, {pipeline_mode = #tpu.pipeline_mode<synchronous>, transform_indices = @transform_6, window_bounds = array<i64: 1, 32>}, {pipeline_mode = #tpu.pipeline_mode<synchronous>, transform_indices = @transform_7, window_bounds = array<i64: 1, 32>}, {pipeline_mode = #tpu.pipeline_mode<synchronous>, transform_indices = @transform_8, window_bounds = array<i64: 32, 64>}, {pipeline_mode = #tpu.pipeline_mode<synchronous>, transform_indices = @transform_9, window_bounds = array<i64: 1, 64>}, {pipeline_mode = #tpu.pipeline_mode<synchronous>, transform_indices = @transform_10, window_bounds = array<i64: 64, 32>}, {pipeline_mode = #tpu.pipeline_mode<synchronous>, transform_indices = @transform_11, window_bounds = array<i64: 1, 32>}, {pipeline_mode = #tpu.pipeline_mode<synchronous>, transform_indices = @transform_12, window_bounds = array<i64: 1, 32>}, {pipeline_mode = #tpu.pipeline_mode<synchronous>, transform_indices = @transform_13, window_bounds = array<i64: 1, 32>}, {transform_indices = @transform_14, window_bounds = array<i64: 1, 128, 32>}, {transform_indices = @transform_15, window_bounds = array<i64: 1, 4, 128, 128>}]} {
    %c0_i32 = arith.constant 0 : i32
    %0 = arith.cmpi eq, %arg1, %c0_i32 : i32
    %1 = arith.extui %0 : i1 to i32
    %c0_i32_0 = arith.constant 0 : i32
    %2 = arith.cmpi ne, %1, %c0_i32_0 : i32
    scf.if %2 {
      %c0_75 = arith.constant 0 : index
      %c0_76 = arith.constant 0 : index
      %c0_77 = arith.constant 0 : index
      %145 = vector.load %arg2[%c0_75, %c0_76, %c0_77] : memref<1x128x32xf32, #tpu.memory_space<vmem>>, vector<1x128x32xf32>
      %146 = vector.shape_cast %145 : vector<1x128x32xf32> to vector<128x32xf32>
      %c0_78 = arith.constant 0 : index
      %c0_79 = arith.constant 0 : index
      %147 = vector.load %arg3[%c0_78, %c0_79] : memref<128x32xf32, #tpu.memory_space<vmem>>, vector<128x32xf32>
      %148 = arith.addf %146, %147 : vector<128x32xf32>
      %149 = arith.truncf %148 : vector<128x32xf32> to vector<128x32xbf16>
      %c0_80 = arith.constant 0 : index
      %c0_81 = arith.constant 0 : index
      %150 = vector.load %arg5[%c0_80, %c0_81] : memref<32x32xbf16, #tpu.memory_space<vmem>>, vector<32x32xbf16>
      %cst_82 = arith.constant dense<0.000000e+00> : vector<128x32xf32>
      %151 = tpu.matmul %149, %150, %cst_82 {dimension_numbers = #tpu.dot_dimension_numbers<[1], [0], [0], [1], [0, 0, 1, 1], [], []>} : vector<128x32xbf16>, vector<32x32xbf16>, vector<128x32xf32> -> vector<128x32xf32>
      %152 = arith.truncf %151 : vector<128x32xf32> to vector<128x32xbf16>
      %c0_83 = arith.constant 0 : index
      %c0_84 = arith.constant 0 : index
      %153 = vector.load %arg6[%c0_83, %c0_84] : memref<32x32xbf16, #tpu.memory_space<vmem>>, vector<32x32xbf16>
      %cst_85 = arith.constant dense<0.000000e+00> : vector<128x32xf32>
      %154 = tpu.matmul %149, %153, %cst_85 {dimension_numbers = #tpu.dot_dimension_numbers<[1], [0], [0], [1], [0, 0, 1, 1], [], []>} : vector<128x32xbf16>, vector<32x32xbf16>, vector<128x32xf32> -> vector<128x32xf32>
      %155 = arith.truncf %154 : vector<128x32xf32> to vector<128x32xbf16>
      %156 = vector.extract_strided_slice %152 {offsets = [0, 0], sizes = [128, 8], strides = [1, 1]} : vector<128x32xbf16> to vector<128x8xbf16>
      %c0_86 = arith.constant 0 : index
      %c0_87 = arith.constant 0 : index
      %c0_88 = arith.constant 0 : index
      %157 = vector.load %arg18[%c0_86, %c0_87, %c0_88] : memref<4x128x8xbf16, #tpu.memory_space<vmem>>, vector<1x128x8xbf16>
      %158 = vector.shape_cast %157 : vector<1x128x8xbf16> to vector<128x8xbf16>
      %159 = vector.shape_cast %156 : vector<128x8xbf16> to vector<1x128x8xbf16>
      tpu.vector_store %arg18[%c0_86, %c0_87, %c0_88], %159 {strides = array<i32>} : memref<4x128x8xbf16, #tpu.memory_space<vmem>>, vector<1x128x8xbf16>,
      %160 = vector.extract_strided_slice %155 {offsets = [0, 0], sizes = [128, 8], strides = [1, 1]} : vector<128x32xbf16> to vector<128x8xbf16>
      %c0_89 = arith.constant 0 : index
      %c0_90 = arith.constant 0 : index
      %c0_91 = arith.constant 0 : index
      %161 = vector.load %arg19[%c0_89, %c0_90, %c0_91] : memref<4x128x8xbf16, #tpu.memory_space<vmem>>, vector<1x128x8xbf16>
      %162 = vector.shape_cast %161 : vector<1x128x8xbf16> to vector<128x8xbf16>
      %163 = vector.shape_cast %160 : vector<128x8xbf16> to vector<1x128x8xbf16>
      tpu.vector_store %arg19[%c0_89, %c0_90, %c0_91], %163 {strides = array<i32>} : memref<4x128x8xbf16, #tpu.memory_space<vmem>>, vector<1x128x8xbf16>,
      %164 = vector.extract_strided_slice %152 {offsets = [0, 8], sizes = [128, 8], strides = [1, 1]} : vector<128x32xbf16> to vector<128x8xbf16>
      %c1_92 = arith.constant 1 : index
      %c0_93 = arith.constant 0 : index
      %c0_94 = arith.constant 0 : index
      %165 = vector.load %arg18[%c1_92, %c0_93, %c0_94] : memref<4x128x8xbf16, #tpu.memory_space<vmem>>, vector<1x128x8xbf16>
      %166 = vector.shape_cast %165 : vector<1x128x8xbf16> to vector<128x8xbf16>
      %167 = vector.shape_cast %164 : vector<128x8xbf16> to vector<1x128x8xbf16>
      tpu.vector_store %arg18[%c1_92, %c0_93, %c0_94], %167 {strides = array<i32>} : memref<4x128x8xbf16, #tpu.memory_space<vmem>>, vector<1x128x8xbf16>,
      %168 = vector.extract_strided_slice %155 {offsets = [0, 8], sizes = [128, 8], strides = [1, 1]} : vector<128x32xbf16> to vector<128x8xbf16>
      %c1_95 = arith.constant 1 : index
      %c0_96 = arith.constant 0 : index
      %c0_97 = arith.constant 0 : index
      %169 = vector.load %arg19[%c1_95, %c0_96, %c0_97] : memref<4x128x8xbf16, #tpu.memory_space<vmem>>, vector<1x128x8xbf16>
      %170 = vector.shape_cast %169 : vector<1x128x8xbf16> to vector<128x8xbf16>
      %171 = vector.shape_cast %168 : vector<128x8xbf16> to vector<1x128x8xbf16>
      tpu.vector_store %arg19[%c1_95, %c0_96, %c0_97], %171 {strides = array<i32>} : memref<4x128x8xbf16, #tpu.memory_space<vmem>>, vector<1x128x8xbf16>,
      %172 = vector.extract_strided_slice %152 {offsets = [0, 16], sizes = [128, 8], strides = [1, 1]} : vector<128x32xbf16> to vector<128x8xbf16>
      %c2_98 = arith.constant 2 : index
      %c0_99 = arith.constant 0 : index
      %c0_100 = arith.constant 0 : index
      %173 = vector.load %arg18[%c2_98, %c0_99, %c0_100] : memref<4x128x8xbf16, #tpu.memory_space<vmem>>, vector<1x128x8xbf16>
      %174 = vector.shape_cast %173 : vector<1x128x8xbf16> to vector<128x8xbf16>
      %175 = vector.shape_cast %172 : vector<128x8xbf16> to vector<1x128x8xbf16>
      tpu.vector_store %arg18[%c2_98, %c0_99, %c0_100], %175 {strides = array<i32>} : memref<4x128x8xbf16, #tpu.memory_space<vmem>>, vector<1x128x8xbf16>,
      %176 = vector.extract_strided_slice %155 {offsets = [0, 16], sizes = [128, 8], strides = [1, 1]} : vector<128x32xbf16> to vector<128x8xbf16>
      %c2_101 = arith.constant 2 : index
      %c0_102 = arith.constant 0 : index
      %c0_103 = arith.constant 0 : index
      %177 = vector.load %arg19[%c2_101, %c0_102, %c0_103] : memref<4x128x8xbf16, #tpu.memory_space<vmem>>, vector<1x128x8xbf16>
      %178 = vector.shape_cast %177 : vector<1x128x8xbf16> to vector<128x8xbf16>
      %179 = vector.shape_cast %176 : vector<128x8xbf16> to vector<1x128x8xbf16>
      tpu.vector_store %arg19[%c2_101, %c0_102, %c0_103], %179 {strides = array<i32>} : memref<4x128x8xbf16, #tpu.memory_space<vmem>>, vector<1x128x8xbf16>,
      %180 = vector.extract_strided_slice %152 {offsets = [0, 24], sizes = [128, 8], strides = [1, 1]} : vector<128x32xbf16> to vector<128x8xbf16>
      %c3_104 = arith.constant 3 : index
      %c0_105 = arith.constant 0 : index
      %c0_106 = arith.constant 0 : index
      %181 = vector.load %arg18[%c3_104, %c0_105, %c0_106] : memref<4x128x8xbf16, #tpu.memory_space<vmem>>, vector<1x128x8xbf16>
      %182 = vector.shape_cast %181 : vector<1x128x8xbf16> to vector<128x8xbf16>
      %183 = vector.shape_cast %180 : vector<128x8xbf16> to vector<1x128x8xbf16>
      tpu.vector_store %arg18[%c3_104, %c0_105, %c0_106], %183 {strides = array<i32>} : memref<4x128x8xbf16, #tpu.memory_space<vmem>>, vector<1x128x8xbf16>,
      %184 = vector.extract_strided_slice %155 {offsets = [0, 24], sizes = [128, 8], strides = [1, 1]} : vector<128x32xbf16> to vector<128x8xbf16>
      %c3_107 = arith.constant 3 : index
      %c0_108 = arith.constant 0 : index
      %c0_109 = arith.constant 0 : index
      %185 = vector.load %arg19[%c3_107, %c0_108, %c0_109] : memref<4x128x8xbf16, #tpu.memory_space<vmem>>, vector<1x128x8xbf16>
      %186 = vector.shape_cast %185 : vector<1x128x8xbf16> to vector<128x8xbf16>
      %187 = vector.shape_cast %184 : vector<128x8xbf16> to vector<1x128x8xbf16>
      tpu.vector_store %arg19[%c3_107, %c0_108, %c0_109], %187 {strides = array<i32>} : memref<4x128x8xbf16, #tpu.memory_space<vmem>>, vector<1x128x8xbf16>,
    } else {
    }
    %c128_i32 = arith.constant 128 : i32
    %3 = arith.muli %arg1, %c128_i32 : i32
    %4 = tpu.assume_multiple %3, 128 : i32
    %c0 = arith.constant 0 : index
    %5 = arith.index_cast %4 : i32 to index
    %c0_1 = arith.constant 0 : index
    %6 = vector.load %arg2[%c0, %5, %c0_1] : memref<1x128x32xf32, #tpu.memory_space<vmem>>, vector<1x128x32xf32>
    %7 = vector.shape_cast %6 : vector<1x128x32xf32> to vector<128x32xf32>
    %8 = arith.index_cast %4 : i32 to index
    %c0_2 = arith.constant 0 : index
    %9 = vector.load %arg3[%8, %c0_2] : memref<128x32xf32, #tpu.memory_space<vmem>>, vector<128x32xf32>
    %10 = arith.addf %7, %9 : vector<128x32xf32>
    %11 = arith.truncf %10 : vector<128x32xf32> to vector<128x32xbf16>
    %c0_3 = arith.constant 0 : index
    %c0_4 = arith.constant 0 : index
    %12 = vector.load %arg4[%c0_3, %c0_4] : memref<32x32xbf16, #tpu.memory_space<vmem>>, vector<32x32xbf16>
    %cst = arith.constant dense<0.000000e+00> : vector<128x32xf32>
    %13 = tpu.matmul %11, %12, %cst {dimension_numbers = #tpu.dot_dimension_numbers<[1], [0], [0], [1], [0, 0, 1, 1], [], []>} : vector<128x32xbf16>, vector<32x32xbf16>, vector<128x32xf32> -> vector<128x32xf32>
    %14 = arith.truncf %13 : vector<128x32xf32> to vector<128x32xbf16>
    %15 = vector.extract_strided_slice %14 {offsets = [0, 0], sizes = [128, 8], strides = [1, 1]} : vector<128x32xbf16> to vector<128x8xbf16>
    %c0_5 = arith.constant 0 : index
    %c0_6 = arith.constant 0 : index
    %c0_7 = arith.constant 0 : index
    %16 = vector.load %arg20[%c0_5, %c0_6, %c0_7] : memref<4x128x8xbf16, #tpu.memory_space<vmem>>, vector<1x128x8xbf16>
    %17 = vector.shape_cast %16 : vector<1x128x8xbf16> to vector<128x8xbf16>
    %18 = vector.shape_cast %15 : vector<128x8xbf16> to vector<1x128x8xbf16>
    tpu.vector_store %arg20[%c0_5, %c0_6, %c0_7], %18 {strides = array<i32>} : memref<4x128x8xbf16, #tpu.memory_space<vmem>>, vector<1x128x8xbf16>,
    %19 = vector.extract_strided_slice %14 {offsets = [0, 8], sizes = [128, 8], strides = [1, 1]} : vector<128x32xbf16> to vector<128x8xbf16>
    %c1 = arith.constant 1 : index
    %c0_8 = arith.constant 0 : index
    %c0_9 = arith.constant 0 : index
    %20 = vector.load %arg20[%c1, %c0_8, %c0_9] : memref<4x128x8xbf16, #tpu.memory_space<vmem>>, vector<1x128x8xbf16>
    %21 = vector.shape_cast %20 : vector<1x128x8xbf16> to vector<128x8xbf16>
    %22 = vector.shape_cast %19 : vector<128x8xbf16> to vector<1x128x8xbf16>
    tpu.vector_store %arg20[%c1, %c0_8, %c0_9], %22 {strides = array<i32>} : memref<4x128x8xbf16, #tpu.memory_space<vmem>>, vector<1x128x8xbf16>,
    %23 = vector.extract_strided_slice %14 {offsets = [0, 16], sizes = [128, 8], strides = [1, 1]} : vector<128x32xbf16> to vector<128x8xbf16>
    %c2 = arith.constant 2 : index
    %c0_10 = arith.constant 0 : index
    %c0_11 = arith.constant 0 : index
    %24 = vector.load %arg20[%c2, %c0_10, %c0_11] : memref<4x128x8xbf16, #tpu.memory_space<vmem>>, vector<1x128x8xbf16>
    %25 = vector.shape_cast %24 : vector<1x128x8xbf16> to vector<128x8xbf16>
    %26 = vector.shape_cast %23 : vector<128x8xbf16> to vector<1x128x8xbf16>
    tpu.vector_store %arg20[%c2, %c0_10, %c0_11], %26 {strides = array<i32>} : memref<4x128x8xbf16, #tpu.memory_space<vmem>>, vector<1x128x8xbf16>,
    %27 = vector.extract_strided_slice %14 {offsets = [0, 24], sizes = [128, 8], strides = [1, 1]} : vector<128x32xbf16> to vector<128x8xbf16>
    %c3 = arith.constant 3 : index
    %c0_12 = arith.constant 0 : index
    %c0_13 = arith.constant 0 : index
    %28 = vector.load %arg20[%c3, %c0_12, %c0_13] : memref<4x128x8xbf16, #tpu.memory_space<vmem>>, vector<1x128x8xbf16>
    %29 = vector.shape_cast %28 : vector<1x128x8xbf16> to vector<128x8xbf16>
    %30 = vector.shape_cast %27 : vector<128x8xbf16> to vector<1x128x8xbf16>
    tpu.vector_store %arg20[%c3, %c0_12, %c0_13], %30 {strides = array<i32>} : memref<4x128x8xbf16, #tpu.memory_space<vmem>>, vector<1x128x8xbf16>,
    %c0_14 = arith.constant 0 : index
    %c0_15 = arith.constant 0 : index
    %c0_16 = arith.constant 0 : index
    %31 = vector.load %arg20[%c0_14, %c0_15, %c0_16] : memref<4x128x8xbf16, #tpu.memory_space<vmem>>, vector<4x128x8xbf16>
    %c0_17 = arith.constant 0 : index
    %c0_18 = arith.constant 0 : index
    %c0_19 = arith.constant 0 : index
    %32 = vector.load %arg18[%c0_17, %c0_18, %c0_19] : memref<4x128x8xbf16, #tpu.memory_space<vmem>>, vector<4x128x8xbf16>
    %cst_20 = arith.constant dense<0.000000e+00> : vector<4x128x128xf32>
    %33 = tpu.matmul %31, %32, %cst_20 {dimension_numbers = #tpu.dot_dimension_numbers<[2], [2], [1], [1], [0, 0, 0, 1, 1, 1], [0], [0]>} : vector<4x128x8xbf16>, vector<4x128x8xbf16>, vector<4x128x128xf32> -> vector<4x128x128xf32>
    %34 = tpu.iota {dimensions = array<i32: 2>} : vector<1x128x128xi32>
    %c8_i32 = arith.constant 8 : i32
    %35 = vector.broadcast %c8_i32 : i32 to vector<1x128x128xi32>
    %36 = arith.cmpi slt, %34, %35 : vector<1x128x128xi32>
    %cst_21 = arith.constant -1.000000e+30 : f32
    %37 = vector.shape_cast %36 : vector<1x128x128xi1> to vector<1x128x128xi1>
    %38 = vector.broadcast %37 : vector<1x128x128xi1> to vector<4x128x128xi1>
    %39 = vector.broadcast %cst_21 : f32 to vector<4x128x128xf32>
    %40 = arith.select %38, %33, %39 : vector<4x128x128xi1>, vector<4x128x128xf32>
    %cst_22 = arith.constant dense<0xFF800000> : vector<4x128xf32>
    %41 = vector.multi_reduction <maximumf>, %40, %cst_22 [2] : vector<4x128x128xf32> to vector<4x128xf32>
    %42 = vector.shape_cast %41 : vector<4x128xf32> to vector<4x128x1xf32>
    %43 = vector.broadcast %42 : vector<4x128x1xf32> to vector<4x128x128xf32>
    %44 = arith.subf %40, %43 : vector<4x128x128xf32>
    %45 = math.exp %44 : vector<4x128x128xf32>
    %cst_23 = arith.constant dense<0.000000e+00> : vector<4x128xf32>
    %46 = vector.multi_reduction <add>, %45, %cst_23 [2] : vector<4x128x128xf32> to vector<4x128xf32>
    %47 = vector.shape_cast %46 : vector<4x128xf32> to vector<4x128x1xf32>
    %cst_24 = arith.constant 1.000000e+00 : f32
    %48 = vector.broadcast %cst_24 : f32 to vector<4x128x1xf32>
    %49 = arith.divf %48, %47 : vector<4x128x1xf32>
    %50 = vector.broadcast %49 : vector<4x128x1xf32> to vector<4x128x128xf32>
    %51 = arith.mulf %45, %50 : vector<4x128x128xf32>
    %52 = arith.truncf %51 : vector<4x128x128xf32> to vector<4x128x128xbf16>
    %c0_25 = arith.constant 0 : index
    %c0_26 = arith.constant 0 : index
    %c0_27 = arith.constant 0 : index
    %c0_28 = arith.constant 0 : index
    %53 = vector.load %arg17[%c0_25, %c0_26, %c0_27, %c0_28] : memref<1x4x128x128xbf16, #tpu.memory_space<vmem>>, vector<1x4x128x128xbf16>
    %54 = vector.shape_cast %53 : vector<1x4x128x128xbf16> to vector<4x128x128xbf16>
    %55 = vector.shape_cast %52 : vector<4x128x128xbf16> to vector<1x4x128x128xbf16>
    tpu.vector_store %arg17[%c0_25, %c0_26, %c0_27, %c0_28], %55 {strides = array<i32>} : memref<1x4x128x128xbf16, #tpu.memory_space<vmem>>, vector<1x4x128x128xbf16>,
    %56 = arith.truncf %51 : vector<4x128x128xf32> to vector<4x128x128xbf16>
    %c0_29 = arith.constant 0 : index
    %c0_30 = arith.constant 0 : index
    %c0_31 = arith.constant 0 : index
    %57 = vector.load %arg19[%c0_29, %c0_30, %c0_31] : memref<4x128x8xbf16, #tpu.memory_space<vmem>>, vector<4x128x8xbf16>
    %cst_32 = arith.constant dense<0.000000e+00> : vector<4x128x8xf32>
    %58 = tpu.matmul %56, %57, %cst_32 {dimension_numbers = #tpu.dot_dimension_numbers<[2], [1], [1], [2], [0, 0, 0, 1, 1, 2], [0], [0]>} : vector<4x128x128xbf16>, vector<4x128x8xbf16>, vector<4x128x8xf32> -> vector<4x128x8xf32>
    %59 = vector.extract_strided_slice %58 {offsets = [0, 0, 0], sizes = [1, 128, 8], strides = [1, 1, 1]} : vector<4x128x8xf32> to vector<1x128x8xf32>
    %60 = vector.shape_cast %59 : vector<1x128x8xf32> to vector<128x8xf32>
    %61 = arith.truncf %60 : vector<128x8xf32> to vector<128x8xbf16>
    %c0_33 = arith.constant 0 : index
    %c0_34 = arith.constant 0 : index
    %62 = vector.load %arg21[%c0_33, %c0_34] : memref<128x32xbf16, #tpu.memory_space<vmem>>, vector<128x8xbf16>
    tpu.vector_store %arg21[%c0_33, %c0_34], %61 {strides = array<i32>} : memref<128x32xbf16, #tpu.memory_space<vmem>>, vector<128x8xbf16>,
    %63 = vector.extract_strided_slice %58 {offsets = [1, 0, 0], sizes = [1, 128, 8], strides = [1, 1, 1]} : vector<4x128x8xf32> to vector<1x128x8xf32>
    %64 = vector.shape_cast %63 : vector<1x128x8xf32> to vector<128x8xf32>
    %65 = arith.truncf %64 : vector<128x8xf32> to vector<128x8xbf16>
    %c0_35 = arith.constant 0 : index
    %c8 = arith.constant 8 : index
    %66 = vector.load %arg21[%c0_35, %c8] : memref<128x32xbf16, #tpu.memory_space<vmem>>, vector<128x8xbf16>
    tpu.vector_store %arg21[%c0_35, %c8], %65 {strides = array<i32>} : memref<128x32xbf16, #tpu.memory_space<vmem>>, vector<128x8xbf16>,
    %67 = vector.extract_strided_slice %58 {offsets = [2, 0, 0], sizes = [1, 128, 8], strides = [1, 1, 1]} : vector<4x128x8xf32> to vector<1x128x8xf32>
    %68 = vector.shape_cast %67 : vector<1x128x8xf32> to vector<128x8xf32>
    %69 = arith.truncf %68 : vector<128x8xf32> to vector<128x8xbf16>
    %c0_36 = arith.constant 0 : index
    %c16 = arith.constant 16 : index
    %70 = vector.load %arg21[%c0_36, %c16] : memref<128x32xbf16, #tpu.memory_space<vmem>>, vector<128x8xbf16>
    tpu.vector_store %arg21[%c0_36, %c16], %69 {strides = array<i32>} : memref<128x32xbf16, #tpu.memory_space<vmem>>, vector<128x8xbf16>,
    %71 = vector.extract_strided_slice %58 {offsets = [3, 0, 0], sizes = [1, 128, 8], strides = [1, 1, 1]} : vector<4x128x8xf32> to vector<1x128x8xf32>
    %72 = vector.shape_cast %71 : vector<1x128x8xf32> to vector<128x8xf32>
    %73 = arith.truncf %72 : vector<128x8xf32> to vector<128x8xbf16>
    %c0_37 = arith.constant 0 : index
    %c24 = arith.constant 24 : index
    %74 = vector.load %arg21[%c0_37, %c24] : memref<128x32xbf16, #tpu.memory_space<vmem>>, vector<128x8xbf16>
    tpu.vector_store %arg21[%c0_37, %c24], %73 {strides = array<i32>} : memref<128x32xbf16, #tpu.memory_space<vmem>>, vector<128x8xbf16>,
    %c0_38 = arith.constant 0 : index
    %c0_39 = arith.constant 0 : index
    %75 = vector.load %arg21[%c0_38, %c0_39] : memref<128x32xbf16, #tpu.memory_space<vmem>>, vector<128x32xbf16>
    %c0_40 = arith.constant 0 : index
    %c0_41 = arith.constant 0 : index
    %76 = vector.load %arg7[%c0_40, %c0_41] : memref<32x32xbf16, #tpu.memory_space<vmem>>, vector<32x32xbf16>
    %cst_42 = arith.constant dense<0.000000e+00> : vector<128x32xf32>
    %77 = tpu.matmul %75, %76, %cst_42 {dimension_numbers = #tpu.dot_dimension_numbers<[1], [0], [0], [1], [0, 0, 1, 1], [], []>} : vector<128x32xbf16>, vector<32x32xbf16>, vector<128x32xf32> -> vector<128x32xf32>
    %78 = arith.addf %77, %10 : vector<128x32xf32>
    %cst_43 = arith.constant dense<0.000000e+00> : vector<128xf32>
    %79 = vector.multi_reduction <add>, %78, %cst_43 [1] : vector<128x32xf32> to vector<128xf32>
    %80 = vector.shape_cast %79 : vector<128xf32> to vector<128x1xf32>
    %cst_44 = arith.constant 3.200000e+01 : f32
    %81 = vector.broadcast %cst_44 : f32 to vector<128x1xf32>
    %82 = arith.divf %80, %81 : vector<128x1xf32>
    %83 = vector.broadcast %82 : vector<128x1xf32> to vector<128x32xf32>
    %84 = arith.subf %78, %83 : vector<128x32xf32>
    %85 = arith.mulf %84, %84 : vector<128x32xf32>
    %cst_45 = arith.constant dense<0.000000e+00> : vector<128xf32>
    %86 = vector.multi_reduction <add>, %85, %cst_45 [1] : vector<128x32xf32> to vector<128xf32>
    %87 = vector.shape_cast %86 : vector<128xf32> to vector<128x1xf32>
    %cst_46 = arith.constant 3.200000e+01 : f32
    %88 = vector.broadcast %cst_46 : f32 to vector<128x1xf32>
    %89 = arith.divf %87, %88 : vector<128x1xf32>
    %90 = vector.broadcast %82 : vector<128x1xf32> to vector<128x32xf32>
    %91 = arith.subf %78, %90 : vector<128x32xf32>
    %cst_47 = arith.constant 9.99999974E-6 : f32
    %92 = vector.broadcast %cst_47 : f32 to vector<128x1xf32>
    %93 = arith.addf %89, %92 : vector<128x1xf32>
    %94 = math.rsqrt %93 : vector<128x1xf32>
    %95 = vector.broadcast %94 : vector<128x1xf32> to vector<128x32xf32>
    %96 = arith.mulf %91, %95 : vector<128x32xf32>
    %c0_48 = arith.constant 0 : index
    %c0_49 = arith.constant 0 : index
    %97 = vector.load %arg8[%c0_48, %c0_49] : memref<1x32xf32, #tpu.memory_space<vmem>>, vector<1x32xf32>
    %98 = vector.broadcast %97 : vector<1x32xf32> to vector<128x32xf32>
    %99 = arith.mulf %96, %98 : vector<128x32xf32>
    %c0_50 = arith.constant 0 : index
    %c0_51 = arith.constant 0 : index
    %100 = vector.load %arg9[%c0_50, %c0_51] : memref<1x32xf32, #tpu.memory_space<vmem>>, vector<1x32xf32>
    %101 = vector.broadcast %100 : vector<1x32xf32> to vector<128x32xf32>
    %102 = arith.addf %99, %101 : vector<128x32xf32>
    %103 = arith.truncf %102 : vector<128x32xf32> to vector<128x32xbf16>
    %c0_52 = arith.constant 0 : index
    %c0_53 = arith.constant 0 : index
    %104 = vector.load %arg10[%c0_52, %c0_53] : memref<32x64xbf16, #tpu.memory_space<vmem>>, vector<32x64xbf16>
    %cst_54 = arith.constant dense<0.000000e+00> : vector<128x64xf32>
    %105 = tpu.matmul %103, %104, %cst_54 {dimension_numbers = #tpu.dot_dimension_numbers<[1], [0], [0], [1], [0, 0, 1, 1], [], []>} : vector<128x32xbf16>, vector<32x64xbf16>, vector<128x64xf32> -> vector<128x64xf32>
    %c0_55 = arith.constant 0 : index
    %c0_56 = arith.constant 0 : index
    %106 = vector.load %arg11[%c0_55, %c0_56] : memref<1x64xf32, #tpu.memory_space<vmem>>, vector<1x64xf32>
    %107 = vector.broadcast %106 : vector<1x64xf32> to vector<128x64xf32>
    %108 = arith.addf %105, %107 : vector<128x64xf32>
    %cst_57 = arith.constant 0.000000e+00 : f32
    %109 = vector.broadcast %cst_57 : f32 to vector<128x64xf32>
    %110 = arith.maximumf %108, %109 : vector<128x64xf32>
    %111 = arith.truncf %110 : vector<128x64xf32> to vector<128x64xbf16>
    %c0_58 = arith.constant 0 : index
    %c0_59 = arith.constant 0 : index
    %112 = vector.load %arg12[%c0_58, %c0_59] : memref<64x32xbf16, #tpu.memory_space<vmem>>, vector<64x32xbf16>
    %cst_60 = arith.constant dense<0.000000e+00> : vector<128x32xf32>
    %113 = tpu.matmul %111, %112, %cst_60 {dimension_numbers = #tpu.dot_dimension_numbers<[1], [0], [0], [1], [0, 0, 1, 1], [], []>} : vector<128x64xbf16>, vector<64x32xbf16>, vector<128x32xf32> -> vector<128x32xf32>
    %c0_61 = arith.constant 0 : index
    %c0_62 = arith.constant 0 : index
    %114 = vector.load %arg13[%c0_61, %c0_62] : memref<1x32xf32, #tpu.memory_space<vmem>>, vector<1x32xf32>
    %115 = vector.broadcast %114 : vector<1x32xf32> to vector<128x32xf32>
    %116 = arith.addf %113, %115 : vector<128x32xf32>
    %117 = arith.addf %116, %102 : vector<128x32xf32>
    %cst_63 = arith.constant dense<0.000000e+00> : vector<128xf32>
    %118 = vector.multi_reduction <add>, %117, %cst_63 [1] : vector<128x32xf32> to vector<128xf32>
    %119 = vector.shape_cast %118 : vector<128xf32> to vector<128x1xf32>
    %cst_64 = arith.constant 3.200000e+01 : f32
    %120 = vector.broadcast %cst_64 : f32 to vector<128x1xf32>
    %121 = arith.divf %119, %120 : vector<128x1xf32>
    %122 = vector.broadcast %121 : vector<128x1xf32> to vector<128x32xf32>
    %123 = arith.subf %117, %122 : vector<128x32xf32>
    %124 = arith.mulf %123, %123 : vector<128x32xf32>
    %cst_65 = arith.constant dense<0.000000e+00> : vector<128xf32>
    %125 = vector.multi_reduction <add>, %124, %cst_65 [1] : vector<128x32xf32> to vector<128xf32>
    %126 = vector.shape_cast %125 : vector<128xf32> to vector<128x1xf32>
    %cst_66 = arith.constant 3.200000e+01 : f32
    %127 = vector.broadcast %cst_66 : f32 to vector<128x1xf32>
    %128 = arith.divf %126, %127 : vector<128x1xf32>
    %129 = vector.broadcast %121 : vector<128x1xf32> to vector<128x32xf32>
    %130 = arith.subf %117, %129 : vector<128x32xf32>
    %cst_67 = arith.constant 9.99999974E-6 : f32
    %131 = vector.broadcast %cst_67 : f32 to vector<128x1xf32>
    %132 = arith.addf %128, %131 : vector<128x1xf32>
    %133 = math.rsqrt %132 : vector<128x1xf32>
    %134 = vector.broadcast %133 : vector<128x1xf32> to vector<128x32xf32>
    %135 = arith.mulf %130, %134 : vector<128x32xf32>
    %c0_68 = arith.constant 0 : index
    %c0_69 = arith.constant 0 : index
    %136 = vector.load %arg14[%c0_68, %c0_69] : memref<1x32xf32, #tpu.memory_space<vmem>>, vector<1x32xf32>
    %137 = vector.broadcast %136 : vector<1x32xf32> to vector<128x32xf32>
    %138 = arith.mulf %135, %137 : vector<128x32xf32>
    %c0_70 = arith.constant 0 : index
    %c0_71 = arith.constant 0 : index
    %139 = vector.load %arg15[%c0_70, %c0_71] : memref<1x32xf32, #tpu.memory_space<vmem>>, vector<1x32xf32>
    %140 = vector.broadcast %139 : vector<1x32xf32> to vector<128x32xf32>
    %141 = arith.addf %138, %140 : vector<128x32xf32>
    %c0_72 = arith.constant 0 : index
    %c0_73 = arith.constant 0 : index
    %c0_74 = arith.constant 0 : index
    %142 = vector.load %arg16[%c0_72, %c0_73, %c0_74] : memref<1x128x32xf32, #tpu.memory_space<vmem>>, vector<1x128x32xf32>
    %143 = vector.shape_cast %142 : vector<1x128x32xf32> to vector<128x32xf32>
    %144 = vector.shape_cast %141 : vector<128x32xf32> to vector<1x128x32xf32>
    tpu.vector_store %arg16[%c0_72, %c0_73, %c0_74], %144 {strides = array<i32>} : memref<1x128x32xf32, #tpu.memory_space<vmem>>, vector<1x128x32xf32>,
    return
  }
  func.func @transform_0(%arg0: i32, %arg1: i32) -> (i32, i32, i32) {
    %c0_i32 = arith.constant 0 : i32
    %c0_i32_0 = arith.constant 0 : i32
    %c0_i32_1 = arith.constant 0 : i32
    return %arg0, %c0_i32, %c0_i32_0 : i32, i32, i32
  }
  func.func @transform_1(%arg0: i32, %arg1: i32) -> (i32, i32) {
    %c0_i32 = arith.constant 0 : i32
    %c0_i32_0 = arith.constant 0 : i32
    %c0_i32_1 = arith.constant 0 : i32
    return %c0_i32, %c0_i32_0 : i32, i32
  }
  func.func @transform_2(%arg0: i32, %arg1: i32) -> (i32, i32) {
    %c0_i32 = arith.constant 0 : i32
    %c0_i32_0 = arith.constant 0 : i32
    %c0_i32_1 = arith.constant 0 : i32
    return %c0_i32, %c0_i32_0 : i32, i32
  }
  func.func @transform_3(%arg0: i32, %arg1: i32) -> (i32, i32) {
    %c0_i32 = arith.constant 0 : i32
    %c0_i32_0 = arith.constant 0 : i32
    %c0_i32_1 = arith.constant 0 : i32
    return %c0_i32, %c0_i32_0 : i32, i32
  }
  func.func @transform_4(%arg0: i32, %arg1: i32) -> (i32, i32) {
    %c0_i32 = arith.constant 0 : i32
    %c0_i32_0 = arith.constant 0 : i32
    %c0_i32_1 = arith.constant 0 : i32
    return %c0_i32, %c0_i32_0 : i32, i32
  }
  func.func @transform_5(%arg0: i32, %arg1: i32) -> (i32, i32) {
    %c0_i32 = arith.constant 0 : i32
    %c0_i32_0 = arith.constant 0 : i32
    %c0_i32_1 = arith.constant 0 : i32
    return %c0_i32, %c0_i32_0 : i32, i32
  }
  func.func @transform_6(%arg0: i32, %arg1: i32) -> (i32, i32) {
    %c0_i32 = arith.constant 0 : i32
    %c0_i32_0 = arith.constant 0 : i32
    %c0_i32_1 = arith.constant 0 : i32
    return %c0_i32, %c0_i32_0 : i32, i32
  }
  func.func @transform_7(%arg0: i32, %arg1: i32) -> (i32, i32) {
    %c0_i32 = arith.constant 0 : i32
    %c0_i32_0 = arith.constant 0 : i32
    %c0_i32_1 = arith.constant 0 : i32
    return %c0_i32, %c0_i32_0 : i32, i32
  }
  func.func @transform_8(%arg0: i32, %arg1: i32) -> (i32, i32) {
    %c0_i32 = arith.constant 0 : i32
    %c0_i32_0 = arith.constant 0 : i32
    %c0_i32_1 = arith.constant 0 : i32
    return %c0_i32, %c0_i32_0 : i32, i32
  }
  func.func @transform_9(%arg0: i32, %arg1: i32) -> (i32, i32) {
    %c0_i32 = arith.constant 0 : i32
    %c0_i32_0 = arith.constant 0 : i32
    %c0_i32_1 = arith.constant 0 : i32
    return %c0_i32, %c0_i32_0 : i32, i32
  }
  func.func @transform_10(%arg0: i32, %arg1: i32) -> (i32, i32) {
    %c0_i32 = arith.constant 0 : i32
    %c0_i32_0 = arith.constant 0 : i32
    %c0_i32_1 = arith.constant 0 : i32
    return %c0_i32, %c0_i32_0 : i32, i32
  }
  func.func @transform_11(%arg0: i32, %arg1: i32) -> (i32, i32) {
    %c0_i32 = arith.constant 0 : i32
    %c0_i32_0 = arith.constant 0 : i32
    %c0_i32_1 = arith.constant 0 : i32
    return %c0_i32, %c0_i32_0 : i32, i32
  }
  func.func @transform_12(%arg0: i32, %arg1: i32) -> (i32, i32) {
    %c0_i32 = arith.constant 0 : i32
    %c0_i32_0 = arith.constant 0 : i32
    %c0_i32_1 = arith.constant 0 : i32
    return %c0_i32, %c0_i32_0 : i32, i32
  }
  func.func @transform_13(%arg0: i32, %arg1: i32) -> (i32, i32) {
    %c0_i32 = arith.constant 0 : i32
    %c0_i32_0 = arith.constant 0 : i32
    %c0_i32_1 = arith.constant 0 : i32
    return %c0_i32, %c0_i32_0 : i32, i32
  }
  func.func @transform_14(%arg0: i32, %arg1: i32) -> (i32, i32, i32) {
    %c0_i32 = arith.constant 0 : i32
    %c0_i32_0 = arith.constant 0 : i32
    return %arg0, %arg1, %c0_i32 : i32, i32, i32
  }
  func.func @transform_15(%arg0: i32, %arg1: i32) -> (i32, i32, i32, i32) {
    %c0_i32 = arith.constant 0 : i32
    %c0_i32_0 = arith.constant 0 : i32
    %c0_i32_1 = arith.constant 0 : i32
    return %arg0, %c0_i32, %arg1, %c0_i32_0 : i32, i32, i32, i32
  }
}

</mosaic_0001>

<llo_original>
// kernel: tpu_custom_call.1
$region0: #{tpu_custom_call.1}
  #allocation0 [shape = 'u32[]', space=smem, size = 0x4, offset = 0x4, fixed_abs, tag = 'smem constant byte address 0x4 - core index']
  #allocation1 [shape = 'u32[144,128]{1,0:T(1,128)}', space=vmem, size = 0x12000, scoped, tag = 'internal scratch']
  #allocation2 [shape = 'bf16[4,128,8]{2,1,0:T(16,128)(2,1)}', space=vmem, size = 0x20000, scoped, tag = 'scratch operand']
  #allocation3 [shape = 'bf16[4,128,8]{2,1,0:T(16,128)(2,1)}', space=vmem, size = 0x20000, scoped, tag = 'scratch operand']
  #allocation4 [shape = 'bf16[4,128,8]{2,1,0:T(16,128)(2,1)}', space=vmem, size = 0x20000, scoped, tag = 'scratch operand']
  #allocation5 [shape = 'bf16[128,32]{1,0:T(16,128)(2,1)}', space=vmem, size = 0x8000, scoped, tag = 'scratch operand']
  %s0 = inlined_call_operand.vmem [shape: f32[2,128,32], index: 0, kind: input, shape index: {}]
  %s1 = inlined_call_operand.vmem [shape: f32[128,32], index: 1, kind: input, shape index: {}]
  %s2 = inlined_call_operand.vmem [shape: bf16[32,32], index: 2, kind: input, shape index: {}]
  %s3 = inlined_call_operand.vmem [shape: bf16[32,32], index: 3, kind: input, shape index: {}]
  %s4 = inlined_call_operand.vmem [shape: bf16[32,32], index: 4, kind: input, shape index: {}]
  %s5 = inlined_call_operand.vmem [shape: bf16[32,32], index: 5, kind: input, shape index: {}]
  %s6 = inlined_call_operand.vmem [shape: f32[1,32], index: 6, kind: input, shape index: {}]
  %s7 = inlined_call_operand.vmem [shape: f32[1,32], index: 7, kind: input, shape index: {}]
  %s8 = inlined_call_operand.vmem [shape: bf16[32,64], index: 8, kind: input, shape index: {}]
  %s9 = inlined_call_operand.vmem [shape: f32[1,64], index: 9, kind: input, shape index: {}]
  %s10 = inlined_call_operand.vmem [shape: bf16[64,32], index: 10, kind: input, shape index: {}]
  %s11 = inlined_call_operand.vmem [shape: f32[1,32], index: 11, kind: input, shape index: {}]
  %s12 = inlined_call_operand.vmem [shape: f32[1,32], index: 12, kind: input, shape index: {}]
  %s13 = inlined_call_operand.vmem [shape: f32[1,32], index: 13, kind: input, shape index: {}]
  %s14 = inlined_call_operand.vmem [shape: f32[2,128,32], index: 14, kind: output, shape index: {0}]
  %s15 = inlined_call_operand.hbm [shape: bf16[2,4,128,128], index: 15, kind: output, shape index: {1}]
  %16 = xla_tuple %s14, %s15
  %s17 = sld [smem:[#allocation0]]
  $region101: #{tpu_custom_call.1} parent=0
    _
  %s19 = ssub.s32 1, %s17
  %s20 = scalar_select 0, %s19, %s17
  $region1: #{tpu_custom_call.1} parent=0
    #allocation6 [shape = 'u8[262144]{0}', space=vmem, size = 0x40000, scoped, tag = 'output window, operand 1']
    #allocation7 [shape = 's32[2]{0}', space=sflag, size = 0x8, scoped, tag = 'scoped memory for tpu_custom_call.1']
    %21 = vsyncpa [#allocation7], 0
    %s22 = scalar_lea.sflag [#allocation7], 1
    %23 = vsyncpa %s22, 0
    loop: start=0, step=1, limit=4
    $region2: #{tpu_custom_call.1} parent=1 // loop_pre_header
      _
    $region3: #{tpu_custom_call.1} parent=1 // loop_header
      %s25 = sphi 0, %s29
      %p26 = scmp.ge.s32.totalorder %s25, 4
      %s32 = sphi 0, %s44
      %s33 = sphi 0, %s40
      %s34 = sphi 0, %s32
      %s35 = sphi 0, %s33
      %s36 = sphi 0, %s34
      %s37 = sphi 0, %s35
      %s47 = sphi 0, %s49
      %s50 = sphi 0, %s47
      %s51 = sphi 0, %s50
      %s67 = sphi 0, %s51
      %s71 = sphi 0, %s71
      %s73 = sphi 0, %s71
      %s74 = sphi 0, %s73
      %s88 = sphi 0, %s74
      %s92 = sphi 0, %s92
      %s94 = sphi 0, %s92
      %s95 = sphi 0, %s94
      %s109 = sphi 0, %s95
      %s113 = sphi 0, %s113
      %s115 = sphi 0, %s113
      %s116 = sphi 0, %s115
      %s130 = sphi 0, %s116
      %s134 = sphi 0, %s134
      %s136 = sphi 0, %s134
      %s137 = sphi 0, %s136
      %s151 = sphi 0, %s137
      %s155 = sphi 0, %s155
      %s157 = sphi 0, %s155
      %s158 = sphi 0, %s157
      %s172 = sphi 0, %s158
      %s176 = sphi 0, %s176
      %s178 = sphi 0, %s176
      %s179 = sphi 0, %s178
      %s193 = sphi 0, %s179
      %s197 = sphi 0, %s197
      %s199 = sphi 0, %s197
      %s200 = sphi 0, %s199
      %s214 = sphi 0, %s200
      %s218 = sphi 0, %s218
      %s220 = sphi 0, %s218
      %s221 = sphi 0, %s220
      %s235 = sphi 0, %s221
      %s239 = sphi 0, %s239
      %s241 = sphi 0, %s239
      %s242 = sphi 0, %s241
      %s256 = sphi 0, %s242
      %s260 = sphi 0, %s260
      %s262 = sphi 0, %s260
      %s263 = sphi 0, %s262
      %s277 = sphi 0, %s263
      %s281 = sphi 0, %s281
      %s283 = sphi 0, %s281
      %s284 = sphi 0, %s283
      %s298 = sphi 0, %s284
      %s302 = sphi 0, %s302
      %s304 = sphi 0, %s302
      %s305 = sphi 0, %s304
      %s319 = sphi 0, %s305
      %s323 = sphi 0, %s323
      %s325 = sphi 0, %s323
      %s326 = sphi 0, %s325
      %s340 = sphi 0, %s326
      %s348 = sphi 0, %s350
      %s351 = sphi 0, %s348
      %s352 = sphi 0, %s351
      %s368 = sphi 0, %s352
      %s376 = sphi 0, %s378
      %s379 = sphi 0, %s376
      %s380 = sphi 0, %s379
      %s396 = sphi 0, %s380
    $region4: #{tpu_custom_call.1} parent=1 // loop_header_branch
      %28 = sbr.rel (%p26) target = $region8
    $region5: #{tpu_custom_call.1} parent=1 // loop_body
      %s30 = ssub.s32 %s25, 1
      %s31 = ssub.s32 %s25, 2
      %s38 = sadd.s32 1, %s33
      %p39 = scmp.ge.s32.totalorder %s38, 1
      %s40 = scalar_select %p39, 0, %s38
      %s41 = sadd.s32 1, %s32
      %s42 = scalar_select %p39, %s41, %s32
      %p43 = scmp.ge.s32.totalorder %s42, 2
      %s44 = scalar_select %p43, 0, %s42
      %s45 = ssub.s32 %s32, %s44
      %p46 = scmp.eq.s32.totalorder %s45, 0
      %s48 = sadd.s32 %s47, 1
      %s49 = scalar_select %p46, %s47, %s48
      %p52 = pneg %p46
      %p53 = scmp.eq.s32.totalorder %s25, 1
      %p54 = por %p52, %p53
      %p55 = scmp.ne.s32.totalorder %s47, %s50
      %p56 = scmp.eq.s32.totalorder %s25, 0
      %p57 = por %p55, %p56
      %p58 = scmp.ne.s32.totalorder %s47, %s50
      %p59 = scmp.eq.s32.totalorder %s30, 1
      %p60 = por %p58, %p59
      %p61 = scmp.ne.s32.totalorder %s50, %s51
      %p62 = scmp.eq.s32.totalorder %s30, 0
      %p63 = por %p61, %p62
      %p64 = scmp.ne.s32.totalorder %s50, %s51
      %p65 = scmp.eq.s32.totalorder %s31, 1
      %p66 = por %p64, %p65
      %p68 = scmp.ne.s32.totalorder %s51, %s67
      %p69 = scmp.eq.s32.totalorder %s31, 0
      %p70 = por %p68, %p69
      %s72 = sadd.s32 %s71, 1
      %p75 = scmp.eq.s32.totalorder %s25, 1
      %p76 = scmp.ne.s32.totalorder %s71, %s73
      %p77 = scmp.eq.s32.totalorder %s25, 0
      %p78 = por %p76, %p77
      %p79 = scmp.ne.s32.totalorder %s71, %s73
      %p80 = scmp.eq.s32.totalorder %s30, 1
      %p81 = por %p79, %p80
      %p82 = scmp.ne.s32.totalorder %s73, %s74
      %p83 = scmp.eq.s32.totalorder %s30, 0
      %p84 = por %p82, %p83
      %p85 = scmp.ne.s32.totalorder %s73, %s74
      %p86 = scmp.eq.s32.totalorder %s31, 1
      %p87 = por %p85, %p86
      %p89 = scmp.ne.s32.totalorder %s74, %s88
      %p90 = scmp.eq.s32.totalorder %s31, 0
      %p91 = por %p89, %p90
      %s93 = sadd.s32 %s92, 1
      %p96 = scmp.eq.s32.totalorder %s25, 1
      %p97 = scmp.ne.s32.totalorder %s92, %s94
      %p98 = scmp.eq.s32.totalorder %s25, 0
      %p99 = por %p97, %p98
      %p100 = scmp.ne.s32.totalorder %s92, %s94
      %p101 = scmp.eq.s32.totalorder %s30, 1
      %p102 = por %p100, %p101
      %p103 = scmp.ne.s32.totalorder %s94, %s95
      %p104 = scmp.eq.s32.totalorder %s30, 0
      %p105 = por %p103, %p104
      %p106 = scmp.ne.s32.totalorder %s94, %s95
      %p107 = scmp.eq.s32.totalorder %s31, 1
      %p108 = por %p106, %p107
      %p110 = scmp.ne.s32.totalorder %s95, %s109
      %p111 = scmp.eq.s32.totalorder %s31, 0
      %p112 = por %p110, %p111
      %s114 = sadd.s32 %s113, 1
      %p117 = scmp.eq.s32.totalorder %s25, 1
      %p118 = scmp.ne.s32.totalorder %s113, %s115
      %p119 = scmp.eq.s32.totalorder %s25, 0
      %p120 = por %p118, %p119
      %p121 = scmp.ne.s32.totalorder %s113, %s115
      %p122 = scmp.eq.s32.totalorder %s30, 1
      %p123 = por %p121, %p122
      %p124 = scmp.ne.s32.totalorder %s115, %s116
      %p125 = scmp.eq.s32.totalorder %s30, 0
      %p126 = por %p124, %p125
      %p127 = scmp.ne.s32.totalorder %s115, %s116
      %p128 = scmp.eq.s32.totalorder %s31, 1
      %p129 = por %p127, %p128
      %p131 = scmp.ne.s32.totalorder %s116, %s130
      %p132 = scmp.eq.s32.totalorder %s31, 0
      %p133 = por %p131, %p132
      %s135 = sadd.s32 %s134, 1
      %p138 = scmp.eq.s32.totalorder %s25, 1
      %p139 = scmp.ne.s32.totalorder %s134, %s136
      %p140 = scmp.eq.s32.totalorder %s25, 0
      %p141 = por %p139, %p140
      %p142 = scmp.ne.s32.totalorder %s134, %s136
      %p143 = scmp.eq.s32.totalorder %s30, 1
      %p144 = por %p142, %p143
      %p145 = scmp.ne.s32.totalorder %s136, %s137
      %p146 = scmp.eq.s32.totalorder %s30, 0
      %p147 = por %p145, %p146
      %p148 = scmp.ne.s32.totalorder %s136, %s137
      %p149 = scmp.eq.s32.totalorder %s31, 1
      %p150 = por %p148, %p149
      %p152 = scmp.ne.s32.totalorder %s137, %s151
      %p153 = scmp.eq.s32.totalorder %s31, 0
      %p154 = por %p152, %p153
      %s156 = sadd.s32 %s155, 1
      %p159 = scmp.eq.s32.totalorder %s25, 1
      %p160 = scmp.ne.s32.totalorder %s155, %s157
      %p161 = scmp.eq.s32.totalorder %s25, 0
      %p162 = por %p160, %p161
      %p163 = scmp.ne.s32.totalorder %s155, %s157
      %p164 = scmp.eq.s32.totalorder %s30, 1
      %p165 = por %p163, %p164
      %p166 = scmp.ne.s32.totalorder %s157, %s158
      %p167 = scmp.eq.s32.totalorder %s30, 0
      %p168 = por %p166, %p167
      %p169 = scmp.ne.s32.totalorder %s157, %s158
      %p170 = scmp.eq.s32.totalorder %s31, 1
      %p171 = por %p169, %p170
      %p173 = scmp.ne.s32.totalorder %s158, %s172
      %p174 = scmp.eq.s32.totalorder %s31, 0
      %p175 = por %p173, %p174
      %s177 = sadd.s32 %s176, 1
      %p180 = scmp.eq.s32.totalorder %s25, 1
      %p181 = scmp.ne.s32.totalorder %s176, %s178
      %p182 = scmp.eq.s32.totalorder %s25, 0
      %p183 = por %p181, %p182
      %p184 = scmp.ne.s32.totalorder %s176, %s178
      %p185 = scmp.eq.s32.totalorder %s30, 1
      %p186 = por %p184, %p185
      %p187 = scmp.ne.s32.totalorder %s178, %s179
      %p188 = scmp.eq.s32.totalorder %s30, 0
      %p189 = por %p187, %p188
      %p190 = scmp.ne.s32.totalorder %s178, %s179
      %p191 = scmp.eq.s32.totalorder %s31, 1
      %p192 = por %p190, %p191
      %p194 = scmp.ne.s32.totalorder %s179, %s193
      %p195 = scmp.eq.s32.totalorder %s31, 0
      %p196 = por %p194, %p195
      %s198 = sadd.s32 %s197, 1
      %p201 = scmp.eq.s32.totalorder %s25, 1
      %p202 = scmp.ne.s32.totalorder %s197, %s199
      %p203 = scmp.eq.s32.totalorder %s25, 0
      %p204 = por %p202, %p203
      %p205 = scmp.ne.s32.totalorder %s197, %s199
      %p206 = scmp.eq.s32.totalorder %s30, 1
      %p207 = por %p205, %p206
      %p208 = scmp.ne.s32.totalorder %s199, %s200
      %p209 = scmp.eq.s32.totalorder %s30, 0
      %p210 = por %p208, %p209
      %p211 = scmp.ne.s32.totalorder %s199, %s200
      %p212 = scmp.eq.s32.totalorder %s31, 1
      %p213 = por %p211, %p212
      %p215 = scmp.ne.s32.totalorder %s200, %s214
      %p216 = scmp.eq.s32.totalorder %s31, 0
      %p217 = por %p215, %p216
      %s219 = sadd.s32 %s218, 1
      %p222 = scmp.eq.s32.totalorder %s25, 1
      %p223 = scmp.ne.s32.totalorder %s218, %s220
      %p224 = scmp.eq.s32.totalorder %s25, 0
      %p225 = por %p223, %p224
      %p226 = scmp.ne.s32.totalorder %s218, %s220
      %p227 = scmp.eq.s32.totalorder %s30, 1
      %p228 = por %p226, %p227
      %p229 = scmp.ne.s32.totalorder %s220, %s221
      %p230 = scmp.eq.s32.totalorder %s30, 0
      %p231 = por %p229, %p230
      %p232 = scmp.ne.s32.totalorder %s220, %s221
      %p233 = scmp.eq.s32.totalorder %s31, 1
      %p234 = por %p232, %p233
      %p236 = scmp.ne.s32.totalorder %s221, %s235
      %p237 = scmp.eq.s32.totalorder %s31, 0
      %p238 = por %p236, %p237
      %s240 = sadd.s32 %s239, 1
      %p243 = scmp.eq.s32.totalorder %s25, 1
      %p244 = scmp.ne.s32.totalorder %s239, %s241
      %p245 = scmp.eq.s32.totalorder %s25, 0
      %p246 = por %p244, %p245
      %p247 = scmp.ne.s32.totalorder %s239, %s241
      %p248 = scmp.eq.s32.totalorder %s30, 1
      %p249 = por %p247, %p248
      %p250 = scmp.ne.s32.totalorder %s241, %s242
      %p251 = scmp.eq.s32.totalorder %s30, 0
      %p252 = por %p250, %p251
      %p253 = scmp.ne.s32.totalorder %s241, %s242
      %p254 = scmp.eq.s32.totalorder %s31, 1
      %p255 = por %p253, %p254
      %p257 = scmp.ne.s32.totalorder %s242, %s256
      %p258 = scmp.eq.s32.totalorder %s31, 0
      %p259 = por %p257, %p258
      %s261 = sadd.s32 %s260, 1
      %p264 = scmp.eq.s32.totalorder %s25, 1
      %p265 = scmp.ne.s32.totalorder %s260, %s262
      %p266 = scmp.eq.s32.totalorder %s25, 0
      %p267 = por %p265, %p266
      %p268 = scmp.ne.s32.totalorder %s260, %s262
      %p269 = scmp.eq.s32.totalorder %s30, 1
      %p270 = por %p268, %p269
      %p271 = scmp.ne.s32.totalorder %s262, %s263
      %p272 = scmp.eq.s32.totalorder %s30, 0
      %p273 = por %p271, %p272
      %p274 = scmp.ne.s32.totalorder %s262, %s263
      %p275 = scmp.eq.s32.totalorder %s31, 1
      %p276 = por %p274, %p275
      %p278 = scmp.ne.s32.totalorder %s263, %s277
      %p279 = scmp.eq.s32.totalorder %s31, 0
      %p280 = por %p278, %p279
      %s282 = sadd.s32 %s281, 1
      %p285 = scmp.eq.s32.totalorder %s25, 1
      %p286 = scmp.ne.s32.totalorder %s281, %s283
      %p287 = scmp.eq.s32.totalorder %s25, 0
      %p288 = por %p286, %p287
      %p289 = scmp.ne.s32.totalorder %s281, %s283
      %p290 = scmp.eq.s32.totalorder %s30, 1
      %p291 = por %p289, %p290
      %p292 = scmp.ne.s32.totalorder %s283, %s284
      %p293 = scmp.eq.s32.totalorder %s30, 0
      %p294 = por %p292, %p293
      %p295 = scmp.ne.s32.totalorder %s283, %s284
      %p296 = scmp.eq.s32.totalorder %s31, 1
      %p297 = por %p295, %p296
      %p299 = scmp.ne.s32.totalorder %s284, %s298
      %p300 = scmp.eq.s32.totalorder %s31, 0
      %p301 = por %p299, %p300
      %s303 = sadd.s32 %s302, 1
      %p306 = scmp.eq.s32.totalorder %s25, 1
      %p307 = scmp.ne.s32.totalorder %s302, %s304
      %p308 = scmp.eq.s32.totalorder %s25, 0
      %p309 = por %p307, %p308
      %p310 = scmp.ne.s32.totalorder %s302, %s304
      %p311 = scmp.eq.s32.totalorder %s30, 1
      %p312 = por %p310, %p311
      %p313 = scmp.ne.s32.totalorder %s304, %s305
      %p314 = scmp.eq.s32.totalorder %s30, 0
      %p315 = por %p313, %p314
      %p316 = scmp.ne.s32.totalorder %s304, %s305
      %p317 = scmp.eq.s32.totalorder %s31, 1
      %p318 = por %p316, %p317
      %p320 = scmp.ne.s32.totalorder %s305, %s319
      %p321 = scmp.eq.s32.totalorder %s31, 0
      %p322 = por %p320, %p321
      %s324 = sadd.s32 %s323, 1
      %p327 = scmp.eq.s32.totalorder %s25, 1
      %p328 = scmp.ne.s32.totalorder %s323, %s325
      %p329 = scmp.eq.s32.totalorder %s25, 0
      %p330 = por %p328, %p329
      %p331 = scmp.ne.s32.totalorder %s323, %s325
      %p332 = scmp.eq.s32.totalorder %s30, 1
      %p333 = por %p331, %p332
      %p334 = scmp.ne.s32.totalorder %s325, %s326
      %p335 = scmp.eq.s32.totalorder %s30, 0
      %p336 = por %p334, %p335
      %p337 = scmp.ne.s32.totalorder %s325, %s326
      %p338 = scmp.eq.s32.totalorder %s31, 1
      %p339 = por %p337, %p338
      %p341 = scmp.ne.s32.totalorder %s326, %s340
      %p342 = scmp.eq.s32.totalorder %s31, 0
      %p343 = por %p341, %p342
      %s344 = ssub.s32 %s32, %s44
      %s345 = ssub.s32 %s33, %s40
      %s346 = sor.u32 %s344, %s345
      %p347 = scmp.eq.s32.totalorder %s346, 0
      %s349 = sadd.s32 %s348, 1
      %s350 = scalar_select %p347, %s348, %s349
      %p353 = pneg %p347
      %p354 = scmp.eq.s32.totalorder %s25, 1
      %p355 = por %p353, %p354
      %p356 = scmp.ne.s32.totalorder %s348, %s351
      %p357 = scmp.eq.s32.totalorder %s25, 0
      %p358 = por %p356, %p357
      %p359 = scmp.ne.s32.totalorder %s348, %s351
      %p360 = scmp.eq.s32.totalorder %s30, 1
      %p361 = por %p359, %p360
      %p362 = scmp.ne.s32.totalorder %s351, %s352
      %p363 = scmp.eq.s32.totalorder %s30, 0
      %p364 = por %p362, %p363
      %p365 = scmp.ne.s32.totalorder %s351, %s352
      %p366 = scmp.eq.s32.totalorder %s31, 1
      %p367 = por %p365, %p366
      %p369 = scmp.ne.s32.totalorder %s352, %s368
      %p370 = scmp.eq.s32.totalorder %s31, 0
      %p371 = por %p369, %p370
      %s372 = ssub.s32 %s32, %s44
      %s373 = ssub.s32 %s33, %s40
      %s374 = sor.u32 %s372, %s373
      %p375 = scmp.eq.s32.totalorder %s374, 0
      %s377 = sadd.s32 %s376, 1
      %s378 = scalar_select %p375, %s376, %s377
      %p381 = pneg %p375
      %p382 = scmp.eq.s32.totalorder %s25, 1
      %p383 = por %p381, %p382
      %p384 = scmp.ne.s32.totalorder %s376, %s379
      %p385 = scmp.eq.s32.totalorder %s25, 0
      %p386 = por %p384, %p385
      %p387 = scmp.ne.s32.totalorder %s376, %s379
      %p388 = scmp.eq.s32.totalorder %s30, 1
      %p389 = por %p387, %p388
      %p390 = scmp.ne.s32.totalorder %s379, %s380
      %p391 = scmp.eq.s32.totalorder %s30, 0
      %p392 = por %p390, %p391
      %p393 = scmp.ne.s32.totalorder %s379, %s380
      %p394 = scmp.eq.s32.totalorder %s31, 1
      %p395 = por %p393, %p394
      %p397 = scmp.ne.s32.totalorder %s380, %s396
      %p398 = scmp.eq.s32.totalorder %s31, 0
      %p399 = por %p397, %p398
      %p400 = scmp.le.s32.totalorder 1, %s25
      %p401 = scmp.lt.s32.totalorder %s25, 3
      %p402 = pnand %p400, %p401
      %p403 = pneg %p402
      // Predicated region
      $region9: #{tpu_custom_call.1} parent=5 // pred_check
        _
      $region10: #{tpu_custom_call.1} parent=5 // pred_check_branch
        %405 = sbr.rel (%p402) target = $region12
      $region11: #{tpu_custom_call.1} parent=5 // pred_region
        %s406 = ssub.s32 %s25, 1
        // Predicated region
        $region13: #{tpu_custom_call.1} parent=11 // pred_check
          %p407 = pneg %p84
        $region14: #{tpu_custom_call.1} parent=11 // pred_check_branch
          %409 = sbr.rel (%p407) target = $region16
        $region15: #{tpu_custom_call.1} parent=11 // pred_region
          _
        $region16: #{tpu_custom_call.1} parent=11 // pred_fallthru
          _
        // Predicated region
        $region17: #{tpu_custom_call.1} parent=11 // pred_check
          %p410 = pneg %p105
        $region18: #{tpu_custom_call.1} parent=11 // pred_check_branch
          %412 = sbr.rel (%p410) target = $region20
        $region19: #{tpu_custom_call.1} parent=11 // pred_region
          _
        $region20: #{tpu_custom_call.1} parent=11 // pred_fallthru
          _
        // Predicated region
        $region21: #{tpu_custom_call.1} parent=11 // pred_check
          %p413 = pneg %p126
        $region22: #{tpu_custom_call.1} parent=11 // pred_check_branch
          %415 = sbr.rel (%p413) target = $region24
        $region23: #{tpu_custom_call.1} parent=11 // pred_region
          _
        $region24: #{tpu_custom_call.1} parent=11 // pred_fallthru
          _
        // Predicated region
        $region25: #{tpu_custom_call.1} parent=11 // pred_check
          %p416 = pneg %p147
        $region26: #{tpu_custom_call.1} parent=11 // pred_check_branch
          %418 = sbr.rel (%p416) target = $region28
        $region27: #{tpu_custom_call.1} parent=11 // pred_region
          _
        $region28: #{tpu_custom_call.1} parent=11 // pred_fallthru
          _
        // Predicated region
        $region29: #{tpu_custom_call.1} parent=11 // pred_check
          %p419 = pneg %p168
        $region30: #{tpu_custom_call.1} parent=11 // pred_check_branch
          %421 = sbr.rel (%p419) target = $region32
        $region31: #{tpu_custom_call.1} parent=11 // pred_region
          _
        $region32: #{tpu_custom_call.1} parent=11 // pred_fallthru
          _
        // Predicated region
        $region33: #{tpu_custom_call.1} parent=11 // pred_check
          %p422 = pneg %p189
        $region34: #{tpu_custom_call.1} parent=11 // pred_check_branch
          %424 = sbr.rel (%p422) target = $region36
        $region35: #{tpu_custom_call.1} parent=11 // pred_region
          _
        $region36: #{tpu_custom_call.1} parent=11 // pred_fallthru
          _
        // Predicated region
        $region37: #{tpu_custom_call.1} parent=11 // pred_check
          %p425 = pneg %p210
        $region38: #{tpu_custom_call.1} parent=11 // pred_check_branch
          %427 = sbr.rel (%p425) target = $region40
        $region39: #{tpu_custom_call.1} parent=11 // pred_region
          _
        $region40: #{tpu_custom_call.1} parent=11 // pred_fallthru
          _
        // Predicated region
        $region41: #{tpu_custom_call.1} parent=11 // pred_check
          %p428 = pneg %p231
        $region42: #{tpu_custom_call.1} parent=11 // pred_check_branch
          %430 = sbr.rel (%p428) target = $region44
        $region43: #{tpu_custom_call.1} parent=11 // pred_region
          _
        $region44: #{tpu_custom_call.1} parent=11 // pred_fallthru
          _
        // Predicated region
        $region45: #{tpu_custom_call.1} parent=11 // pred_check
          %p431 = pneg %p252
        $region46: #{tpu_custom_call.1} parent=11 // pred_check_branch
          %433 = sbr.rel (%p431) target = $region48
        $region47: #{tpu_custom_call.1} parent=11 // pred_region
          _
        $region48: #{tpu_custom_call.1} parent=11 // pred_fallthru
          _
        // Predicated region
        $region49: #{tpu_custom_call.1} parent=11 // pred_check
          %p434 = pneg %p273
        $region50: #{tpu_custom_call.1} parent=11 // pred_check_branch
          %436 = sbr.rel (%p434) target = $region52
        $region51: #{tpu_custom_call.1} parent=11 // pred_region
          _
        $region52: #{tpu_custom_call.1} parent=11 // pred_fallthru
          _
        // Predicated region
        $region53: #{tpu_custom_call.1} parent=11 // pred_check
          %p437 = pneg %p294
        $region54: #{tpu_custom_call.1} parent=11 // pred_check_branch
          %439 = sbr.rel (%p437) target = $region56
        $region55: #{tpu_custom_call.1} parent=11 // pred_region
          _
        $region56: #{tpu_custom_call.1} parent=11 // pred_fallthru
          _
        // Predicated region
        $region57: #{tpu_custom_call.1} parent=11 // pred_check
          %p440 = pneg %p315
        $region58: #{tpu_custom_call.1} parent=11 // pred_check_branch
          %442 = sbr.rel (%p440) target = $region60
        $region59: #{tpu_custom_call.1} parent=11 // pred_region
          _
        $region60: #{tpu_custom_call.1} parent=11 // pred_fallthru
          _
        // Predicated region
        $region61: #{tpu_custom_call.1} parent=11 // pred_check
          %p443 = pneg %p336
        $region62: #{tpu_custom_call.1} parent=11 // pred_check_branch
          %445 = sbr.rel (%p443) target = $region64
        $region63: #{tpu_custom_call.1} parent=11 // pred_region
          _
        $region64: #{tpu_custom_call.1} parent=11 // pred_fallthru
          _
      $region12: #{tpu_custom_call.1} parent=5 // pred_fallthru
        _
      %p446 = scmp.lt.s32.totalorder %s25, 2
      // Predicated region
      $region65: #{tpu_custom_call.1} parent=5 // pred_check
        %p447 = pneg %p446
      $region66: #{tpu_custom_call.1} parent=5 // pred_check_branch
        %449 = sbr.rel (%p447) target = $region68
      $region67: #{tpu_custom_call.1} parent=5 // pred_region
        // Predicated region
        $region69: #{tpu_custom_call.1} parent=67 // pred_check
          %p450 = pneg %p57
        $region70: #{tpu_custom_call.1} parent=67 // pred_check_branch
          %452 = sbr.rel (%p450) target = $region72
        $region71: #{tpu_custom_call.1} parent=67 // pred_region
          %p453 = scmp.lt.s32.totalorder %s32, 1
          %s454 = scalar_select %p453, %s32, 1
          %s455 = smul.addr %s454, 16
          %s456 = smul.addr %s455, 8
          %s457 = scalar_lea.vmem %s0, %s456
        $region72: #{tpu_custom_call.1} parent=67 // pred_fallthru
          _
      $region68: #{tpu_custom_call.1} parent=5 // pred_fallthru
        _
      %p458 = scmp.le.s32.totalorder 1, %s25
      %p459 = scmp.lt.s32.totalorder %s25, 3
      %p460 = pnand %p458, %p459
      %p461 = pneg %p460
      // Predicated region
      $region73: #{tpu_custom_call.1} parent=5 // pred_check
        _
      $region74: #{tpu_custom_call.1} parent=5 // pred_check_branch
        %463 = sbr.rel (%p460) target = $region76
      $region75: #{tpu_custom_call.1} parent=5 // pred_region
        %s464 = ssub.s32 %s25, 1
        %p465 = scmp.lt.s32.totalorder %s34, 1
        %s466 = scalar_select %p465, %s34, 1
        %s467 = smul.addr %s466, 16
        %s468 = smul.addr %s467, 8
        %s469 = scalar_lea.vmem %s0, %s468
        %p470 = pneg %p63
        %p471 = pneg %p60
        %p472 = pneg %p84
        %p473 = pneg %p81
        %p474 = pneg %p105
        %p475 = pneg %p102
        %p476 = pneg %p126
        %p477 = pneg %p123
        %p478 = pneg %p147
        %p479 = pneg %p144
        %p480 = pneg %p168
        %p481 = pneg %p165
        %p482 = pneg %p189
        %p483 = pneg %p186
        %p484 = pneg %p210
        %p485 = pneg %p207
        %p486 = pneg %p231
        %p487 = pneg %p228
        %p488 = pneg %p252
        %p489 = pneg %p249
        %p490 = pneg %p273
        %p491 = pneg %p270
        %p492 = pneg %p294
        %p493 = pneg %p291
        %p494 = pneg %p315
        %p495 = pneg %p312
        %p496 = pneg %p336
        %p497 = pneg %p333
        %p498 = pneg %p364
        %p499 = pneg %p361
        %s500 = smul.u32 16, %s35
        %p501 = scmp.lt.s32.totalorder %s34, 1
        %s502 = scalar_select %p501, %s34, 1
        %p503 = scmp.lt.s32.totalorder %s500, 15
        %s504 = scalar_select %p503, %s500, 15
        %s505 = smul.addr %s502, 16
        %s506 = sadd.s32 %s504, %s505
        %s507 = smul.addr %s506, 8
        %s508 = scalar_lea.vmem %s14, %s507
        %p509 = pneg %p392
        %p510 = pneg %p389
        %s511 = sand.u32 %s379, 1
        %s512 = scalar_lea.sflag [#allocation7], %s511
        %s513 = sand.u32 %s379, 1
        %s514 = smul.addr %s513, 256
        %s515 = scalar_lea.vmem [#allocation6], %s514
        %p516 = scmp.lt.s32.totalorder %s34, 1
        %s517 = scalar_select %p516, %s34, 1
        %s518 = smul.addr %s517, 16
        %s519 = smul.addr %s518, 8
        %s520 = scalar_lea.vmem %s0, %s519
        %s521 = smul.u32 16, %s35
        %p522 = scmp.lt.s32.totalorder %s34, 1
        %s523 = scalar_select %p522, %s34, 1
        %p524 = scmp.lt.s32.totalorder %s521, 15
        %s525 = scalar_select %p524, %s521, 15
        %s526 = smul.addr %s523, 16
        %s527 = sadd.s32 %s525, %s526
        %s528 = smul.addr %s527, 8
        %s529 = scalar_lea.vmem %s14, %s528
        %s530 = smul.u32 16, %s35
        %s531 = smul.u32 16, %s35
        %p533 = scmp.eq.s32.totalorder %s35, 0
        // Predicated region
        $region77: #{tpu_custom_call.1} parent=75 // pred_check
          %p534 = pneg %p533
        $region78: #{tpu_custom_call.1} parent=75 // pred_check_branch
          %536 = sbr.rel (%p534) target = $region80
        $region79: #{tpu_custom_call.1} parent=75 // pred_region
          %v537 = vld [vmem:[%s520] sm:$0xff]
          %v538 = vld [vmem:[%s520 + $0x8] sm:$0xff]
          %v539 = vld [vmem:[%s520 + $0x10] sm:$0xff]
          %v540 = vld [vmem:[%s520 + $0x18] sm:$0xff]
          %v541 = vld [vmem:[%s520 + $0x20] sm:$0xff]
          %v542 = vld [vmem:[%s520 + $0x28] sm:$0xff]
          %v543 = vld [vmem:[%s520 + $0x30] sm:$0xff]
          %v544 = vld [vmem:[%s520 + $0x38] sm:$0xff]
          %v545 = vld [vmem:[%s520 + $0x40] sm:$0xff]
          %v546 = vld [vmem:[%s520 + $0x48] sm:$0xff]
          %v547 = vld [vmem:[%s520 + $0x50] sm:$0xff]
          %v548 = vld [vmem:[%s520 + $0x58] sm:$0xff]
          %v549 = vld [vmem:[%s520 + $0x60] sm:$0xff]
          %v550 = vld [vmem:[%s520 + $0x68] sm:$0xff]
          %v551 = vld [vmem:[%s520 + $0x70] sm:$0xff]
          %v552 = vld [vmem:[%s520 + $0x78] sm:$0xff]
          %v553 = vld [vmem:[%s1] sm:$0xff]
          %v554 = vld [vmem:[%s1 + $0x8] sm:$0xff]
          %v555 = vld [vmem:[%s1 + $0x10] sm:$0xff]
          %v556 = vld [vmem:[%s1 + $0x18] sm:$0xff]
          %v557 = vld [vmem:[%s1 + $0x20] sm:$0xff]
          %v558 = vld [vmem:[%s1 + $0x28] sm:$0xff]
          %v559 = vld [vmem:[%s1 + $0x30] sm:$0xff]
          %v560 = vld [vmem:[%s1 + $0x38] sm:$0xff]
          %v561 = vld [vmem:[%s1 + $0x40] sm:$0xff]
          %v562 = vld [vmem:[%s1 + $0x48] sm:$0xff]
          %v563 = vld [vmem:[%s1 + $0x50] sm:$0xff]
          %v564 = vld [vmem:[%s1 + $0x58] sm:$0xff]
          %v565 = vld [vmem:[%s1 + $0x60] sm:$0xff]
          %v566 = vld [vmem:[%s1 + $0x68] sm:$0xff]
          %v567 = vld [vmem:[%s1 + $0x70] sm:$0xff]
          %v568 = vld [vmem:[%s1 + $0x78] sm:$0xff]
          %v569 = vadd.f32 %v537, %v553
          %v570 = vadd.f32 %v538, %v554
          %v571 = vadd.f32 %v539, %v555
          %v572 = vadd.f32 %v540, %v556
          %v573 = vadd.f32 %v541, %v557
          %v574 = vadd.f32 %v542, %v558
          %v575 = vadd.f32 %v543, %v559
          %v576 = vadd.f32 %v544, %v560
          %v577 = vadd.f32 %v545, %v561
          %v578 = vadd.f32 %v546, %v562
          %v579 = vadd.f32 %v547, %v563
          %v580 = vadd.f32 %v548, %v564
          %v581 = vadd.f32 %v549, %v565
          %v582 = vadd.f32 %v550, %v566
          %v583 = vadd.f32 %v551, %v567
          %v584 = vadd.f32 %v552, %v568
          %v585 = vpack.c.bf16 %v570, %v569
          %v586 = vpack.c.bf16 %v572, %v571
          %v587 = vpack.c.bf16 %v574, %v573
          %v588 = vpack.c.bf16 %v576, %v575
          %v589 = vpack.c.bf16 %v578, %v577
          %v590 = vpack.c.bf16 %v580, %v579
          %v591 = vpack.c.bf16 %v582, %v581
          %v592 = vpack.c.bf16 %v584, %v583
          %v593 = vld [vmem:[%s3] sm:$0xf]
          %v594 = vld [vmem:[%s3 + $0x4] sm:$0xf]
          %v595 = vld [vmem:[%s3 + $0x8] sm:$0xf]
          %v596 = vld [vmem:[%s3 + $0xc] sm:$0xf]
          %v601 = vunpack.c.l.b16 %v593
          %v602 = vunpack.c.l.b16 %v594
          %v603 = vunpack.c.l.b16 %v595
          %v604 = vunpack.c.l.b16 %v596
          %v605 = vpack.c.b16 %v602, %v601
          %v606 = vpack.c.b16 %v604, %v603
          %vm609 = vcmask 261120
          %v611 = vsel %vm609, %v585, 0
          %v614 = vsel %vm609, %v586, 0
          %v617 = vsel %vm609, %v587, 0
          %v620 = vsel %vm609, %v588, 0
          %v623 = vsel %vm609, %v589, 0
          %v626 = vsel %vm609, %v590, 0
          %v629 = vsel %vm609, %v591, 0
          %v632 = vsel %vm609, %v592, 0
          %634 = vmatprep.subr.bf16.mxu0 0
          %635 = vmatpush1.bf16.msra.mxu0 %v605
          %636 = vmatprep.subr.bf16.mxu0 0
          %637 = vmatpush1.bf16.msra.mxu0 %v606
          %638 = vmatprep.subr.bf16.mxu0 0
          %639 = vmatpush1.bf16.msra.mxu0 0
          %640 = vmatprep.subr.bf16.mxu0 0
          %641 = vmatpush1.bf16.msra.mxu0 0
          %642 = vmatprep.subr.bf16.mxu0 0
          %643 = vmatpush1.bf16.msra.mxu0 0
          %644 = vmatprep.subr.bf16.mxu0 0
          %645 = vmatpush1.bf16.msra.mxu0 0
          %646 = vmatprep.subr.bf16.mxu0 0
          %647 = vmatpush1.bf16.msra.mxu0 0
          %648 = vmatprep.subr.bf16.mxu0 0
          %649 = vmatpush1.bf16.msra.mxu0 0
          %650 = vmatprep.subr.bf16.mxu0 0
          %651 = vmatpush1.bf16.msra.mxu0 0
          %652 = vmatprep.subr.bf16.mxu0 0
          %653 = vmatpush1.bf16.msra.mxu0 0
          %654 = vmatprep.subr.bf16.mxu0 0
          %655 = vmatpush1.bf16.msra.mxu0 0
          %656 = vmatprep.subr.bf16.mxu0 0
          %657 = vmatpush1.bf16.msra.mxu0 0
          %658 = vmatprep.subr.bf16.mxu0 0
          %659 = vmatpush1.bf16.msra.mxu0 0
          %660 = vmatprep.subr.bf16.mxu0 0
          %661 = vmatpush1.bf16.msra.mxu0 0
          %662 = vmatprep.subr.bf16.mxu0 0
          %663 = vmatpush1.bf16.msra.mxu0 0
          %664 = vmatprep.subr.bf16.mxu0 0
          %665 = vmatpush1.bf16.msra.mxu0 0
          %666 = vmatprep.mubr.bf16.mxu0 0
          %667 = vmatmul.mubr.bf16.gmra.mrb[0].mxu0 %v611
          %v668 = vpop.f32.mrb[0].mxu0
          %v669 = vadd.f32 0.0, %v668
          %v670 = vpop.f32.mrb[0].mxu0
          %v671 = vpop.f32.mrb[0].mxu0
          %v672 = vadd.f32 0.0, %v671
          %v673 = vpop.f32.mrb[0].mxu0
          %674 = vmatprep.mubr.bf16.mxu0 0
          %675 = vmatmul.mubr.bf16.gmra.mrb[0].mxu0 %v614
          %v676 = vpop.f32.mrb[0].mxu0
          %v677 = vadd.f32 0.0, %v676
          %v678 = vpop.f32.mrb[0].mxu0
          %v679 = vpop.f32.mrb[0].mxu0
          %v680 = vadd.f32 0.0, %v679
          %v681 = vpop.f32.mrb[0].mxu0
          %682 = vmatprep.mubr.bf16.mxu0 0
          %683 = vmatmul.mubr.bf16.gmra.mrb[0].mxu0 %v617
          %v684 = vpop.f32.mrb[0].mxu0
          %v685 = vadd.f32 0.0, %v684
          %v686 = vpop.f32.mrb[0].mxu0
          %v687 = vpop.f32.mrb[0].mxu0
          %v688 = vadd.f32 0.0, %v687
          %v689 = vpop.f32.mrb[0].mxu0
          %690 = vmatprep.mubr.bf16.mxu0 0
          %691 = vmatmul.mubr.bf16.gmra.mrb[0].mxu0 %v620
          %v692 = vpop.f32.mrb[0].mxu0
          %v693 = vadd.f32 0.0, %v692
          %v694 = vpop.f32.mrb[0].mxu0
          %v695 = vpop.f32.mrb[0].mxu0
          %v696 = vadd.f32 0.0, %v695
          %v697 = vpop.f32.mrb[0].mxu0
          %698 = vmatprep.mubr.bf16.mxu0 0
          %699 = vmatmul.mubr.bf16.gmra.mrb[0].mxu0 %v623
          %v700 = vpop.f32.mrb[0].mxu0
          %v701 = vadd.f32 0.0, %v700
          %v702 = vpop.f32.mrb[0].mxu0
          %v703 = vpop.f32.mrb[0].mxu0
          %v704 = vadd.f32 0.0, %v703
          %v705 = vpop.f32.mrb[0].mxu0
          %706 = vmatprep.mubr.bf16.mxu0 0
          %707 = vmatmul.mubr.bf16.gmra.mrb[0].mxu0 %v626
          %v708 = vpop.f32.mrb[0].mxu0
          %v709 = vadd.f32 0.0, %v708
          %v710 = vpop.f32.mrb[0].mxu0
          %v711 = vpop.f32.mrb[0].mxu0
          %v712 = vadd.f32 0.0, %v711
          %v713 = vpop.f32.mrb[0].mxu0
          %714 = vmatprep.mubr.bf16.mxu0 0
          %715 = vmatmul.mubr.bf16.gmra.mrb[0].mxu0 %v629
          %v716 = vpop.f32.mrb[0].mxu0
          %v717 = vadd.f32 0.0, %v716
          %v718 = vpop.f32.mrb[0].mxu0
          %v719 = vpop.f32.mrb[0].mxu0
          %v720 = vadd.f32 0.0, %v719
          %v721 = vpop.f32.mrb[0].mxu0
          %722 = vmatprep.mubr.bf16.mxu0 0
          %723 = vmatmul.mubr.bf16.gmra.mrb[0].mxu0 %v632
          %v724 = vpop.f32.mrb[0].mxu0
          %v725 = vadd.f32 0.0, %v724
          %v726 = vpop.f32.mrb[0].mxu0
          %v727 = vpop.f32.mrb[0].mxu0
          %v728 = vadd.f32 0.0, %v727
          %v729 = vpop.f32.mrb[0].mxu0
          %730 = vdwg.mxu0
          %v731 = vpack.c.bf16 %v672, %v669
          %v732 = vpack.c.bf16 %v680, %v677
          %v733 = vpack.c.bf16 %v688, %v685
          %v734 = vpack.c.bf16 %v696, %v693
          %v735 = vpack.c.bf16 %v704, %v701
          %v736 = vpack.c.bf16 %v712, %v709
          %v737 = vpack.c.bf16 %v720, %v717
          %v738 = vpack.c.bf16 %v728, %v725
          %v739 = vld [vmem:[%s4] sm:$0xf]
          %v740 = vld [vmem:[%s4 + $0x4] sm:$0xf]
          %v741 = vld [vmem:[%s4 + $0x8] sm:$0xf]
          %v742 = vld [vmem:[%s4 + $0xc] sm:$0xf]
          %v747 = vunpack.c.l.b16 %v739
          %v748 = vunpack.c.l.b16 %v740
          %v749 = vunpack.c.l.b16 %v741
          %v750 = vunpack.c.l.b16 %v742
          %v751 = vpack.c.b16 %v748, %v747
          %v752 = vpack.c.b16 %v750, %v749
          %755 = vmatprep.subr.bf16.mxu0 0
          %756 = vmatpush1.bf16.msra.mxu0 %v751
          %757 = vmatprep.subr.bf16.mxu0 0
          %758 = vmatpush1.bf16.msra.mxu0 %v752
          %759 = vmatprep.subr.bf16.mxu0 0
          %760 = vmatpush1.bf16.msra.mxu0 0
          %761 = vmatprep.subr.bf16.mxu0 0
          %762 = vmatpush1.bf16.msra.mxu0 0
          %763 = vmatprep.subr.bf16.mxu0 0
          %764 = vmatpush1.bf16.msra.mxu0 0
          %765 = vmatprep.subr.bf16.mxu0 0
          %766 = vmatpush1.bf16.msra.mxu0 0
          %767 = vmatprep.subr.bf16.mxu0 0
          %768 = vmatpush1.bf16.msra.mxu0 0
          %769 = vmatprep.subr.bf16.mxu0 0
          %770 = vmatpush1.bf16.msra.mxu0 0
          %771 = vmatprep.subr.bf16.mxu0 0
          %772 = vmatpush1.bf16.msra.mxu0 0
          %773 = vmatprep.subr.bf16.mxu0 0
          %774 = vmatpush1.bf16.msra.mxu0 0
          %775 = vmatprep.subr.bf16.mxu0 0
          %776 = vmatpush1.bf16.msra.mxu0 0
          %777 = vmatprep.subr.bf16.mxu0 0
          %778 = vmatpush1.bf16.msra.mxu0 0
          %779 = vmatprep.subr.bf16.mxu0 0
          %780 = vmatpush1.bf16.msra.mxu0 0
          %781 = vmatprep.subr.bf16.mxu0 0
          %782 = vmatpush1.bf16.msra.mxu0 0
          %783 = vmatprep.subr.bf16.mxu0 0
          %784 = vmatpush1.bf16.msra.mxu0 0
          %785 = vmatprep.subr.bf16.mxu0 0
          %786 = vmatpush1.bf16.msra.mxu0 0
          %787 = vmatprep.mubr.bf16.mxu0 0
          %788 = vmatmul.mubr.bf16.gmra.mrb[0].mxu0 %v611
          %v789 = vpop.f32.mrb[0].mxu0
          %v790 = vadd.f32 0.0, %v789
          %v791 = vpop.f32.mrb[0].mxu0
          %v792 = vpop.f32.mrb[0].mxu0
          %v793 = vadd.f32 0.0, %v792
          %v794 = vpop.f32.mrb[0].mxu0
          %795 = vmatprep.mubr.bf16.mxu0 0
          %796 = vmatmul.mubr.bf16.gmra.mrb[0].mxu0 %v614
          %v797 = vpop.f32.mrb[0].mxu0
          %v798 = vadd.f32 0.0, %v797
          %v799 = vpop.f32.mrb[0].mxu0
          %v800 = vpop.f32.mrb[0].mxu0
          %v801 = vadd.f32 0.0, %v800
          %v802 = vpop.f32.mrb[0].mxu0
          %803 = vmatprep.mubr.bf16.mxu0 0
          %804 = vmatmul.mubr.bf16.gmra.mrb[0].mxu0 %v617
          %v805 = vpop.f32.mrb[0].mxu0
          %v806 = vadd.f32 0.0, %v805
          %v807 = vpop.f32.mrb[0].mxu0
          %v808 = vpop.f32.mrb[0].mxu0
          %v809 = vadd.f32 0.0, %v808
          %v810 = vpop.f32.mrb[0].mxu0
          %811 = vmatprep.mubr.bf16.mxu0 0
          %812 = vmatmul.mubr.bf16.gmra.mrb[0].mxu0 %v620
          %v813 = vpop.f32.mrb[0].mxu0
          %v814 = vadd.f32 0.0, %v813
          %v815 = vpop.f32.mrb[0].mxu0
          %v816 = vpop.f32.mrb[0].mxu0
          %v817 = vadd.f32 0.0, %v816
          %v818 = vpop.f32.mrb[0].mxu0
          %819 = vmatprep.mubr.bf16.mxu0 0
          %820 = vmatmul.mubr.bf16.gmra.mrb[0].mxu0 %v623
          %v821 = vpop.f32.mrb[0].mxu0
          %v822 = vadd.f32 0.0, %v821
          %v823 = vpop.f32.mrb[0].mxu0
          %v824 = vpop.f32.mrb[0].mxu0
          %v825 = vadd.f32 0.0, %v824
          %v826 = vpop.f32.mrb[0].mxu0
          %827 = vmatprep.mubr.bf16.mxu0 0
          %828 = vmatmul.mubr.bf16.gmra.mrb[0].mxu0 %v626
          %v829 = vpop.f32.mrb[0].mxu0
          %v830 = vadd.f32 0.0, %v829
          %v831 = vpop.f32.mrb[0].mxu0
          %v832 = vpop.f32.mrb[0].mxu0
          %v833 = vadd.f32 0.0, %v832
          %v834 = vpop.f32.mrb[0].mxu0
          %835 = vmatprep.mubr.bf16.mxu0 0
          %836 = vmatmul.mubr.bf16.gmra.mrb[0].mxu0 %v629
          %v837 = vpop.f32.mrb[0].mxu0
          %v838 = vadd.f32 0.0, %v837
          %v839 = vpop.f32.mrb[0].mxu0
          %v840 = vpop.f32.mrb[0].mxu0
          %v841 = vadd.f32 0.0, %v840
          %v842 = vpop.f32.mrb[0].mxu0
          %843 = vmatprep.mubr.bf16.mxu0 0
          %844 = vmatmul.mubr.bf16.gmra.mrb[0].mxu0 %v632
          %v845 = vpop.f32.mrb[0].mxu0
          %v846 = vadd.f32 0.0, %v845
          %v847 = vpop.f32.mrb[0].mxu0
          %v848 = vpop.f32.mrb[0].mxu0
          %v849 = vadd.f32 0.0, %v848
          %v850 = vpop.f32.mrb[0].mxu0
          %851 = vdwg.mxu0
          %v852 = vpack.c.bf16 %v793, %v790
          %v853 = vpack.c.bf16 %v801, %v798
          %v854 = vpack.c.bf16 %v809, %v806
          %v855 = vpack.c.bf16 %v817, %v814
          %v856 = vpack.c.bf16 %v825, %v822
          %v857 = vpack.c.bf16 %v833, %v830
          %v858 = vpack.c.bf16 %v841, %v838
          %v859 = vpack.c.bf16 %v849, %v846
          %vm860 = vcmask 64512
          %861 = vst.msk [vmem:[#allocation2] sm:$0xff] %vm860, %v731
          %862 = vst.msk [vmem:[#allocation2 + $0x8] sm:$0xff] %vm860, %v732
          %863 = vst.msk [vmem:[#allocation2 + $0x10] sm:$0xff] %vm860, %v733
          %864 = vst.msk [vmem:[#allocation2 + $0x18] sm:$0xff] %vm860, %v734
          %865 = vst.msk [vmem:[#allocation2 + $0x20] sm:$0xff] %vm860, %v735
          %866 = vst.msk [vmem:[#allocation2 + $0x28] sm:$0xff] %vm860, %v736
          %867 = vst.msk [vmem:[#allocation2 + $0x30] sm:$0xff] %vm860, %v737
          %868 = vst.msk [vmem:[#allocation2 + $0x38] sm:$0xff] %vm860, %v738
          %869 = vst.msk [vmem:[#allocation3] sm:$0xff] %vm860, %v852
          %870 = vst.msk [vmem:[#allocation3 + $0x8] sm:$0xff] %vm860, %v853
          %871 = vst.msk [vmem:[#allocation3 + $0x10] sm:$0xff] %vm860, %v854
          %872 = vst.msk [vmem:[#allocation3 + $0x18] sm:$0xff] %vm860, %v855
          %873 = vst.msk [vmem:[#allocation3 + $0x20] sm:$0xff] %vm860, %v856
          %874 = vst.msk [vmem:[#allocation3 + $0x28] sm:$0xff] %vm860, %v857
          %875 = vst.msk [vmem:[#allocation3 + $0x30] sm:$0xff] %vm860, %v858
          %876 = vst.msk [vmem:[#allocation3 + $0x38] sm:$0xff] %vm860, %v859
          %885 = vrot.lane.b32.xlu0 %v731, 120
          %v886 = vpop.permute.xlu0 %885
          %887 = vrot.lane.b32.xlu0 %v732, 120
          %v888 = vpop.permute.xlu0 %887
          %889 = vrot.lane.b32.xlu0 %v733, 120
          %v890 = vpop.permute.xlu0 %889
          %891 = vrot.lane.b32.xlu0 %v734, 120
          %v892 = vpop.permute.xlu0 %891
          %893 = vrot.lane.b32.xlu0 %v735, 120
          %v894 = vpop.permute.xlu0 %893
          %895 = vrot.lane.b32.xlu0 %v736, 120
          %v896 = vpop.permute.xlu0 %895
          %897 = vrot.lane.b32.xlu0 %v737, 120
          %v898 = vpop.permute.xlu0 %897
          %899 = vrot.lane.b32.xlu0 %v738, 120
          %v900 = vpop.permute.xlu0 %899
          %s909 = scalar_lea.vmem [#allocation2], 64
          %910 = vst.msk [vmem:[%s909] sm:$0xff] %vm860, %v886
          %911 = vst.msk [vmem:[%s909 + $0x8] sm:$0xff] %vm860, %v888
          %912 = vst.msk [vmem:[%s909 + $0x10] sm:$0xff] %vm860, %v890
          %913 = vst.msk [vmem:[%s909 + $0x18] sm:$0xff] %vm860, %v892
          %914 = vst.msk [vmem:[%s909 + $0x20] sm:$0xff] %vm860, %v894
          %915 = vst.msk [vmem:[%s909 + $0x28] sm:$0xff] %vm860, %v896
          %916 = vst.msk [vmem:[%s909 + $0x30] sm:$0xff] %vm860, %v898
          %917 = vst.msk [vmem:[%s909 + $0x38] sm:$0xff] %vm860, %v900
          %926 = vrot.lane.b32.xlu0 %v852, 120
          %v927 = vpop.permute.xlu0 %926
          %928 = vrot.lane.b32.xlu0 %v853, 120
          %v929 = vpop.permute.xlu0 %928
          %930 = vrot.lane.b32.xlu0 %v854, 120
          %v931 = vpop.permute.xlu0 %930
          %932 = vrot.lane.b32.xlu0 %v855, 120
          %v933 = vpop.permute.xlu0 %932
          %934 = vrot.lane.b32.xlu0 %v856, 120
          %v935 = vpop.permute.xlu0 %934
          %936 = vrot.lane.b32.xlu0 %v857, 120
          %v937 = vpop.permute.xlu0 %936
          %938 = vrot.lane.b32.xlu0 %v858, 120
          %v939 = vpop.permute.xlu0 %938
          %940 = vrot.lane.b32.xlu0 %v859, 120
          %v941 = vpop.permute.xlu0 %940
          %s950 = scalar_lea.vmem [#allocation3], 64
          %951 = vst.msk [vmem:[%s950] sm:$0xff] %vm860, %v927
          %952 = vst.msk [vmem:[%s950 + $0x8] sm:$0xff] %vm860, %v929
          %953 = vst.msk [vmem:[%s950 + $0x10] sm:$0xff] %vm860, %v931
          %954 = vst.msk [vmem:[%s950 + $0x18] sm:$0xff] %vm860, %v933
          %955 = vst.msk [vmem:[%s950 + $0x20] sm:$0xff] %vm860, %v935
          %956 = vst.msk [vmem:[%s950 + $0x28] sm:$0xff] %vm860, %v937
          %957 = vst.msk [vmem:[%s950 + $0x30] sm:$0xff] %vm860, %v939
          %958 = vst.msk [vmem:[%s950 + $0x38] sm:$0xff] %vm860, %v941
          %959 = vrot.lane.b32.xlu0 %v731, 112
          %v960 = vpop.permute.xlu0 %959
          %961 = vrot.lane.b32.xlu0 %v732, 112
          %v962 = vpop.permute.xlu0 %961
          %963 = vrot.lane.b32.xlu0 %v733, 112
          %v964 = vpop.permute.xlu0 %963
          %965 = vrot.lane.b32.xlu0 %v734, 112
          %v966 = vpop.permute.xlu0 %965
          %967 = vrot.lane.b32.xlu0 %v735, 112
          %v968 = vpop.permute.xlu0 %967
          %969 = vrot.lane.b32.xlu0 %v736, 112
          %v970 = vpop.permute.xlu0 %969
          %971 = vrot.lane.b32.xlu0 %v737, 112
          %v972 = vpop.permute.xlu0 %971
          %973 = vrot.lane.b32.xlu0 %v738, 112
          %v974 = vpop.permute.xlu0 %973
          %s983 = scalar_lea.vmem [#allocation2], 128
          %984 = vst.msk [vmem:[%s983] sm:$0xff] %vm860, %v960
          %985 = vst.msk [vmem:[%s983 + $0x8] sm:$0xff] %vm860, %v962
          %986 = vst.msk [vmem:[%s983 + $0x10] sm:$0xff] %vm860, %v964
          %987 = vst.msk [vmem:[%s983 + $0x18] sm:$0xff] %vm860, %v966
          %988 = vst.msk [vmem:[%s983 + $0x20] sm:$0xff] %vm860, %v968
          %989 = vst.msk [vmem:[%s983 + $0x28] sm:$0xff] %vm860, %v970
          %990 = vst.msk [vmem:[%s983 + $0x30] sm:$0xff] %vm860, %v972
          %991 = vst.msk [vmem:[%s983 + $0x38] sm:$0xff] %vm860, %v974
          %992 = vrot.lane.b32.xlu0 %v852, 112
          %v993 = vpop.permute.xlu0 %992
          %994 = vrot.lane.b32.xlu0 %v853, 112
          %v995 = vpop.permute.xlu0 %994
          %996 = vrot.lane.b32.xlu0 %v854, 112
          %v997 = vpop.permute.xlu0 %996
          %998 = vrot.lane.b32.xlu0 %v855, 112
          %v999 = vpop.permute.xlu0 %998
          %1000 = vrot.lane.b32.xlu0 %v856, 112
          %v1001 = vpop.permute.xlu0 %1000
          %1002 = vrot.lane.b32.xlu0 %v857, 112
          %v1003 = vpop.permute.xlu0 %1002
          %1004 = vrot.lane.b32.xlu0 %v858, 112
          %v1005 = vpop.permute.xlu0 %1004
          %1006 = vrot.lane.b32.xlu0 %v859, 112
          %v1007 = vpop.permute.xlu0 %1006
          %s1016 = scalar_lea.vmem [#allocation3], 128
          %1017 = vst.msk [vmem:[%s1016] sm:$0xff] %vm860, %v993
          %1018 = vst.msk [vmem:[%s1016 + $0x8] sm:$0xff] %vm860, %v995
          %1019 = vst.msk [vmem:[%s1016 + $0x10] sm:$0xff] %vm860, %v997
          %1020 = vst.msk [vmem:[%s1016 + $0x18] sm:$0xff] %vm860, %v999
          %1021 = vst.msk [vmem:[%s1016 + $0x20] sm:$0xff] %vm860, %v1001
          %1022 = vst.msk [vmem:[%s1016 + $0x28] sm:$0xff] %vm860, %v1003
          %1023 = vst.msk [vmem:[%s1016 + $0x30] sm:$0xff] %vm860, %v1005
          %1024 = vst.msk [vmem:[%s1016 + $0x38] sm:$0xff] %vm860, %v1007
          %1025 = vrot.lane.b32.xlu0 %v731, 104
          %v1026 = vpop.permute.xlu0 %1025
          %1027 = vrot.lane.b32.xlu0 %v732, 104
          %v1028 = vpop.permute.xlu0 %1027
          %1029 = vrot.lane.b32.xlu0 %v733, 104
          %v1030 = vpop.permute.xlu0 %1029
          %1031 = vrot.lane.b32.xlu0 %v734, 104
          %v1032 = vpop.permute.xlu0 %1031
          %1033 = vrot.lane.b32.xlu0 %v735, 104
          %v1034 = vpop.permute.xlu0 %1033
          %1035 = vrot.lane.b32.xlu0 %v736, 104
          %v1036 = vpop.permute.xlu0 %1035
          %1037 = vrot.lane.b32.xlu0 %v737, 104
          %v1038 = vpop.permute.xlu0 %1037
          %1039 = vrot.lane.b32.xlu0 %v738, 104
          %v1040 = vpop.permute.xlu0 %1039
          %s1049 = scalar_lea.vmem [#allocation2], 192
          %1050 = vst.msk [vmem:[%s1049] sm:$0xff] %vm860, %v1026
          %1051 = vst.msk [vmem:[%s1049 + $0x8] sm:$0xff] %vm860, %v1028
          %1052 = vst.msk [vmem:[%s1049 + $0x10] sm:$0xff] %vm860, %v1030
          %1053 = vst.msk [vmem:[%s1049 + $0x18] sm:$0xff] %vm860, %v1032
          %1054 = vst.msk [vmem:[%s1049 + $0x20] sm:$0xff] %vm860, %v1034
          %1055 = vst.msk [vmem:[%s1049 + $0x28] sm:$0xff] %vm860, %v1036
          %1056 = vst.msk [vmem:[%s1049 + $0x30] sm:$0xff] %vm860, %v1038
          %1057 = vst.msk [vmem:[%s1049 + $0x38] sm:$0xff] %vm860, %v1040
          %1058 = vrot.lane.b32.xlu0 %v852, 104
          %v1059 = vpop.permute.xlu0 %1058
          %1060 = vrot.lane.b32.xlu0 %v853, 104
          %v1061 = vpop.permute.xlu0 %1060
          %1062 = vrot.lane.b32.xlu0 %v854, 104
          %v1063 = vpop.permute.xlu0 %1062
          %1064 = vrot.lane.b32.xlu0 %v855, 104
          %v1065 = vpop.permute.xlu0 %1064
          %1066 = vrot.lane.b32.xlu0 %v856, 104
          %v1067 = vpop.permute.xlu0 %1066
          %1068 = vrot.lane.b32.xlu0 %v857, 104
          %v1069 = vpop.permute.xlu0 %1068
          %1070 = vrot.lane.b32.xlu0 %v858, 104
          %v1071 = vpop.permute.xlu0 %1070
          %1072 = vrot.lane.b32.xlu0 %v859, 104
          %v1073 = vpop.permute.xlu0 %1072
          %s1082 = scalar_lea.vmem [#allocation3], 192
          %1083 = vst.msk [vmem:[%s1082] sm:$0xff] %vm860, %v1059
          %1084 = vst.msk [vmem:[%s1082 + $0x8] sm:$0xff] %vm860, %v1061
          %1085 = vst.msk [vmem:[%s1082 + $0x10] sm:$0xff] %vm860, %v1063
          %1086 = vst.msk [vmem:[%s1082 + $0x18] sm:$0xff] %vm860, %v1065
          %1087 = vst.msk [vmem:[%s1082 + $0x20] sm:$0xff] %vm860, %v1067
          %1088 = vst.msk [vmem:[%s1082 + $0x28] sm:$0xff] %vm860, %v1069
          %1089 = vst.msk [vmem:[%s1082 + $0x30] sm:$0xff] %vm860, %v1071
          %1090 = vst.msk [vmem:[%s1082 + $0x38] sm:$0xff] %vm860, %v1073
        $region80: #{tpu_custom_call.1} parent=75 // pred_fallthru
          _
        %s1091 = smul.u32 %s35, 128
        %s1092 = scalar_lea.vmem %s520, %s1091
        %v1093 = vld [vmem:[%s1092] sm:$0xff]
        %v1094 = vld [vmem:[%s1092 + $0x8] sm:$0xff]
        %v1095 = vld [vmem:[%s1092 + $0x10] sm:$0xff]
        %v1096 = vld [vmem:[%s1092 + $0x18] sm:$0xff]
        %v1097 = vld [vmem:[%s1092 + $0x20] sm:$0xff]
        %v1098 = vld [vmem:[%s1092 + $0x28] sm:$0xff]
        %v1099 = vld [vmem:[%s1092 + $0x30] sm:$0xff]
        %v1100 = vld [vmem:[%s1092 + $0x38] sm:$0xff]
        %v1101 = vld [vmem:[%s1092 + $0x40] sm:$0xff]
        %v1102 = vld [vmem:[%s1092 + $0x48] sm:$0xff]
        %v1103 = vld [vmem:[%s1092 + $0x50] sm:$0xff]
        %v1104 = vld [vmem:[%s1092 + $0x58] sm:$0xff]
        %v1105 = vld [vmem:[%s1092 + $0x60] sm:$0xff]
        %v1106 = vld [vmem:[%s1092 + $0x68] sm:$0xff]
        %v1107 = vld [vmem:[%s1092 + $0x70] sm:$0xff]
        %v1108 = vld [vmem:[%s1092 + $0x78] sm:$0xff]
        %s1109 = scalar_lea.vmem %s1, %s1091
        %v1110 = vld [vmem:[%s1109] sm:$0xff]
        %v1111 = vld [vmem:[%s1109 + $0x8] sm:$0xff]
        %v1112 = vld [vmem:[%s1109 + $0x10] sm:$0xff]
        %v1113 = vld [vmem:[%s1109 + $0x18] sm:$0xff]
        %v1114 = vld [vmem:[%s1109 + $0x20] sm:$0xff]
        %v1115 = vld [vmem:[%s1109 + $0x28] sm:$0xff]
        %v1116 = vld [vmem:[%s1109 + $0x30] sm:$0xff]
        %v1117 = vld [vmem:[%s1109 + $0x38] sm:$0xff]
        %v1118 = vld [vmem:[%s1109 + $0x40] sm:$0xff]
        %v1119 = vld [vmem:[%s1109 + $0x48] sm:$0xff]
        %v1120 = vld [vmem:[%s1109 + $0x50] sm:$0xff]
        %v1121 = vld [vmem:[%s1109 + $0x58] sm:$0xff]
        %v1122 = vld [vmem:[%s1109 + $0x60] sm:$0xff]
        %v1123 = vld [vmem:[%s1109 + $0x68] sm:$0xff]
        %v1124 = vld [vmem:[%s1109 + $0x70] sm:$0xff]
        %v1125 = vld [vmem:[%s1109 + $0x78] sm:$0xff]
        %v1126 = vadd.f32 %v1093, %v1110
        %v1127 = vadd.f32 %v1094, %v1111
        %v1128 = vadd.f32 %v1095, %v1112
        %v1129 = vadd.f32 %v1096, %v1113
        %v1130 = vadd.f32 %v1097, %v1114
        %v1131 = vadd.f32 %v1098, %v1115
        %v1132 = vadd.f32 %v1099, %v1116
        %v1133 = vadd.f32 %v1100, %v1117
        %v1134 = vadd.f32 %v1101, %v1118
        %v1135 = vadd.f32 %v1102, %v1119
        %v1136 = vadd.f32 %v1103, %v1120
        %v1137 = vadd.f32 %v1104, %v1121
        %v1138 = vadd.f32 %v1105, %v1122
        %v1139 = vadd.f32 %v1106, %v1123
        %v1140 = vadd.f32 %v1107, %v1124
        %v1141 = vadd.f32 %v1108, %v1125
        %v1142 = vpack.c.bf16 %v1127, %v1126
        %v1143 = vpack.c.bf16 %v1129, %v1128
        %v1144 = vpack.c.bf16 %v1131, %v1130
        %v1145 = vpack.c.bf16 %v1133, %v1132
        %v1146 = vpack.c.bf16 %v1135, %v1134
        %v1147 = vpack.c.bf16 %v1137, %v1136
        %v1148 = vpack.c.bf16 %v1139, %v1138
        %v1149 = vpack.c.bf16 %v1141, %v1140
        %v1150 = vld [vmem:[%s2] sm:$0xf]
        %v1151 = vld [vmem:[%s2 + $0x4] sm:$0xf]
        %v1152 = vld [vmem:[%s2 + $0x8] sm:$0xf]
        %v1153 = vld [vmem:[%s2 + $0xc] sm:$0xf]
        %v1158 = vunpack.c.l.b16 %v1150
        %v1159 = vunpack.c.l.b16 %v1151
        %v1160 = vunpack.c.l.b16 %v1152
        %v1161 = vunpack.c.l.b16 %v1153
        %v1162 = vpack.c.b16 %v1159, %v1158
        %v1163 = vpack.c.b16 %v1161, %v1160
        %vm1166 = vcmask 261120
        %v1168 = vsel %vm1166, %v1142, 0
        %v1171 = vsel %vm1166, %v1143, 0
        %v1174 = vsel %vm1166, %v1144, 0
        %v1177 = vsel %vm1166, %v1145, 0
        %v1180 = vsel %vm1166, %v1146, 0
        %v1183 = vsel %vm1166, %v1147, 0
        %v1186 = vsel %vm1166, %v1148, 0
        %v1189 = vsel %vm1166, %v1149, 0
        %1191 = vmatprep.subr.bf16.mxu0 0
        %1192 = vmatpush1.bf16.msra.mxu0 %v1162
        %1193 = vmatprep.subr.bf16.mxu0 0
        %1194 = vmatpush1.bf16.msra.mxu0 %v1163
        %1195 = vmatprep.subr.bf16.mxu0 0
        %1196 = vmatpush1.bf16.msra.mxu0 0
        %1197 = vmatprep.subr.bf16.mxu0 0
        %1198 = vmatpush1.bf16.msra.mxu0 0
        %1199 = vmatprep.subr.bf16.mxu0 0
        %1200 = vmatpush1.bf16.msra.mxu0 0
        %1201 = vmatprep.subr.bf16.mxu0 0
        %1202 = vmatpush1.bf16.msra.mxu0 0
        %1203 = vmatprep.subr.bf16.mxu0 0
        %1204 = vmatpush1.bf16.msra.mxu0 0
        %1205 = vmatprep.subr.bf16.mxu0 0
        %1206 = vmatpush1.bf16.msra.mxu0 0
        %1207 = vmatprep.subr.bf16.mxu0 0
        %1208 = vmatpush1.bf16.msra.mxu0 0
        %1209 = vmatprep.subr.bf16.mxu0 0
        %1210 = vmatpush1.bf16.msra.mxu0 0
        %1211 = vmatprep.subr.bf16.mxu0 0
        %1212 = vmatpush1.bf16.msra.mxu0 0
        %1213 = vmatprep.subr.bf16.mxu0 0
        %1214 = vmatpush1.bf16.msra.mxu0 0
        %1215 = vmatprep.subr.bf16.mxu0 0
        %1216 = vmatpush1.bf16.msra.mxu0 0
        %1217 = vmatprep.subr.bf16.mxu0 0
        %1218 = vmatpush1.bf16.msra.mxu0 0
        %1219 = vmatprep.subr.bf16.mxu0 0
        %1220 = vmatpush1.bf16.msra.mxu0 0
        %1221 = vmatprep.subr.bf16.mxu0 0
        %1222 = vmatpush1.bf16.msra.mxu0 0
        %1223 = vmatprep.mubr.bf16.mxu0 0
        %1224 = vmatmul.mubr.bf16.gmra.mrb[0].mxu0 %v1168
        %v1225 = vpop.f32.mrb[0].mxu0
        %v1226 = vadd.f32 0.0, %v1225
        %v1227 = vpop.f32.mrb[0].mxu0
        %v1228 = vpop.f32.mrb[0].mxu0
        %v1229 = vadd.f32 0.0, %v1228
        %v1230 = vpop.f32.mrb[0].mxu0
        %1231 = vmatprep.mubr.bf16.mxu0 0
        %1232 = vmatmul.mubr.bf16.gmra.mrb[0].mxu0 %v1171
        %v1233 = vpop.f32.mrb[0].mxu0
        %v1234 = vadd.f32 0.0, %v1233
        %v1235 = vpop.f32.mrb[0].mxu0
        %v1236 = vpop.f32.mrb[0].mxu0
        %v1237 = vadd.f32 0.0, %v1236
        %v1238 = vpop.f32.mrb[0].mxu0
        %1239 = vmatprep.mubr.bf16.mxu0 0
        %1240 = vmatmul.mubr.bf16.gmra.mrb[0].mxu0 %v1174
        %v1241 = vpop.f32.mrb[0].mxu0
        %v1242 = vadd.f32 0.0, %v1241
        %v1243 = vpop.f32.mrb[0].mxu0
        %v1244 = vpop.f32.mrb[0].mxu0
        %v1245 = vadd.f32 0.0, %v1244
        %v1246 = vpop.f32.mrb[0].mxu0
        %1247 = vmatprep.mubr.bf16.mxu0 0
        %1248 = vmatmul.mubr.bf16.gmra.mrb[0].mxu0 %v1177
        %v1249 = vpop.f32.mrb[0].mxu0
        %v1250 = vadd.f32 0.0, %v1249
        %v1251 = vpop.f32.mrb[0].mxu0
        %v1252 = vpop.f32.mrb[0].mxu0
        %v1253 = vadd.f32 0.0, %v1252
        %v1254 = vpop.f32.mrb[0].mxu0
        %1255 = vmatprep.mubr.bf16.mxu0 0
        %1256 = vmatmul.mubr.bf16.gmra.mrb[0].mxu0 %v1180
        %v1257 = vpop.f32.mrb[0].mxu0
        %v1258 = vadd.f32 0.0, %v1257
        %v1259 = vpop.f32.mrb[0].mxu0
        %v1260 = vpop.f32.mrb[0].mxu0
        %v1261 = vadd.f32 0.0, %v1260
        %v1262 = vpop.f32.mrb[0].mxu0
        %1263 = vmatprep.mubr.bf16.mxu0 0
        %1264 = vmatmul.mubr.bf16.gmra.mrb[0].mxu0 %v1183
        %v1265 = vpop.f32.mrb[0].mxu0
        %v1266 = vadd.f32 0.0, %v1265
        %v1267 = vpop.f32.mrb[0].mxu0
        %v1268 = vpop.f32.mrb[0].mxu0
        %v1269 = vadd.f32 0.0, %v1268
        %v1270 = vpop.f32.mrb[0].mxu0
        %1271 = vmatprep.mubr.bf16.mxu0 0
        %1272 = vmatmul.mubr.bf16.gmra.mrb[0].mxu0 %v1186
        %v1273 = vpop.f32.mrb[0].mxu0
        %v1274 = vadd.f32 0.0, %v1273
        %v1275 = vpop.f32.mrb[0].mxu0
        %v1276 = vpop.f32.mrb[0].mxu0
        %v1277 = vadd.f32 0.0, %v1276
        %v1278 = vpop.f32.mrb[0].mxu0
        %1279 = vmatprep.mubr.bf16.mxu0 0
        %1280 = vmatmul.mubr.bf16.gmra.mrb[0].mxu0 %v1189
        %v1281 = vpop.f32.mrb[0].mxu0
        %v1282 = vadd.f32 0.0, %v1281
        %v1283 = vpop.f32.mrb[0].mxu0
        %v1284 = vpop.f32.mrb[0].mxu0
        %v1285 = vadd.f32 0.0, %v1284
        %v1286 = vpop.f32.mrb[0].mxu0
        %1287 = vdwg.mxu0
        %v1288 = vpack.c.bf16 %v1229, %v1226
        %v1289 = vpack.c.bf16 %v1237, %v1234
        %v1290 = vpack.c.bf16 %v1245, %v1242
        %v1291 = vpack.c.bf16 %v1253, %v1250
        %v1292 = vpack.c.bf16 %v1261, %v1258
        %v1293 = vpack.c.bf16 %v1269, %v1266
        %v1294 = vpack.c.bf16 %v1277, %v1274
        %v1295 = vpack.c.bf16 %v1285, %v1282
        %vm1296 = vcmask 64512
        %1297 = vst.msk [vmem:[#allocation4] sm:$0xff] %vm1296, %v1288
        %1298 = vst.msk [vmem:[#allocation4 + $0x8] sm:$0xff] %vm1296, %v1289
        %1299 = vst.msk [vmem:[#allocation4 + $0x10] sm:$0xff] %vm1296, %v1290
        %1300 = vst.msk [vmem:[#allocation4 + $0x18] sm:$0xff] %vm1296, %v1291
        %1301 = vst.msk [vmem:[#allocation4 + $0x20] sm:$0xff] %vm1296, %v1292
        %1302 = vst.msk [vmem:[#allocation4 + $0x28] sm:$0xff] %vm1296, %v1293
        %1303 = vst.msk [vmem:[#allocation4 + $0x30] sm:$0xff] %vm1296, %v1294
        %1304 = vst.msk [vmem:[#allocation4 + $0x38] sm:$0xff] %vm1296, %v1295
        %1313 = vrot.lane.b32.xlu0 %v1288, 120
        %v1314 = vpop.permute.xlu0 %1313
        %1315 = vrot.lane.b32.xlu0 %v1289, 120
        %v1316 = vpop.permute.xlu0 %1315
        %1317 = vrot.lane.b32.xlu0 %v1290, 120
        %v1318 = vpop.permute.xlu0 %1317
        %1319 = vrot.lane.b32.xlu0 %v1291, 120
        %v1320 = vpop.permute.xlu0 %1319
        %1321 = vrot.lane.b32.xlu0 %v1292, 120
        %v1322 = vpop.permute.xlu0 %1321
        %1323 = vrot.lane.b32.xlu0 %v1293, 120
        %v1324 = vpop.permute.xlu0 %1323
        %1325 = vrot.lane.b32.xlu0 %v1294, 120
        %v1326 = vpop.permute.xlu0 %1325
        %1327 = vrot.lane.b32.xlu0 %v1295, 120
        %v1328 = vpop.permute.xlu0 %1327
        %s1337 = scalar_lea.vmem [#allocation4], 64
        %1338 = vst.msk [vmem:[%s1337] sm:$0xff] %vm1296, %v1314
        %1339 = vst.msk [vmem:[%s1337 + $0x8] sm:$0xff] %vm1296, %v1316
        %1340 = vst.msk [vmem:[%s1337 + $0x10] sm:$0xff] %vm1296, %v1318
        %1341 = vst.msk [vmem:[%s1337 + $0x18] sm:$0xff] %vm1296, %v1320
        %1342 = vst.msk [vmem:[%s1337 + $0x20] sm:$0xff] %vm1296, %v1322
        %1343 = vst.msk [vmem:[%s1337 + $0x28] sm:$0xff] %vm1296, %v1324
        %1344 = vst.msk [vmem:[%s1337 + $0x30] sm:$0xff] %vm1296, %v1326
        %1345 = vst.msk [vmem:[%s1337 + $0x38] sm:$0xff] %vm1296, %v1328
        %1346 = vrot.lane.b32.xlu0 %v1288, 112
        %v1347 = vpop.permute.xlu0 %1346
        %1348 = vrot.lane.b32.xlu0 %v1289, 112
        %v1349 = vpop.permute.xlu0 %1348
        %1350 = vrot.lane.b32.xlu0 %v1290, 112
        %v1351 = vpop.permute.xlu0 %1350
        %1352 = vrot.lane.b32.xlu0 %v1291, 112
        %v1353 = vpop.permute.xlu0 %1352
        %1354 = vrot.lane.b32.xlu0 %v1292, 112
        %v1355 = vpop.permute.xlu0 %1354
        %1356 = vrot.lane.b32.xlu0 %v1293, 112
        %v1357 = vpop.permute.xlu0 %1356
        %1358 = vrot.lane.b32.xlu0 %v1294, 112
        %v1359 = vpop.permute.xlu0 %1358
        %1360 = vrot.lane.b32.xlu0 %v1295, 112
        %v1361 = vpop.permute.xlu0 %1360
        %s1370 = scalar_lea.vmem [#allocation4], 128
        %1371 = vst.msk [vmem:[%s1370] sm:$0xff] %vm1296, %v1347
        %1372 = vst.msk [vmem:[%s1370 + $0x8] sm:$0xff] %vm1296, %v1349
        %1373 = vst.msk [vmem:[%s1370 + $0x10] sm:$0xff] %vm1296, %v1351
        %1374 = vst.msk [vmem:[%s1370 + $0x18] sm:$0xff] %vm1296, %v1353
        %1375 = vst.msk [vmem:[%s1370 + $0x20] sm:$0xff] %vm1296, %v1355
        %1376 = vst.msk [vmem:[%s1370 + $0x28] sm:$0xff] %vm1296, %v1357
        %1377 = vst.msk [vmem:[%s1370 + $0x30] sm:$0xff] %vm1296, %v1359
        %1378 = vst.msk [vmem:[%s1370 + $0x38] sm:$0xff] %vm1296, %v1361
        %1379 = vrot.lane.b32.xlu0 %v1288, 104
        %v1380 = vpop.permute.xlu0 %1379
        %1381 = vrot.lane.b32.xlu0 %v1289, 104
        %v1382 = vpop.permute.xlu0 %1381
        %1383 = vrot.lane.b32.xlu0 %v1290, 104
        %v1384 = vpop.permute.xlu0 %1383
        %1385 = vrot.lane.b32.xlu0 %v1291, 104
        %v1386 = vpop.permute.xlu0 %1385
        %1387 = vrot.lane.b32.xlu0 %v1292, 104
        %v1388 = vpop.permute.xlu0 %1387
        %1389 = vrot.lane.b32.xlu0 %v1293, 104
        %v1390 = vpop.permute.xlu0 %1389
        %1391 = vrot.lane.b32.xlu0 %v1294, 104
        %v1392 = vpop.permute.xlu0 %1391
        %1393 = vrot.lane.b32.xlu0 %v1295, 104
        %v1394 = vpop.permute.xlu0 %1393
        %s1403 = scalar_lea.vmem [#allocation4], 192
        %1404 = vst.msk [vmem:[%s1403] sm:$0xff] %vm1296, %v1380
        %1405 = vst.msk [vmem:[%s1403 + $0x8] sm:$0xff] %vm1296, %v1382
        %1406 = vst.msk [vmem:[%s1403 + $0x10] sm:$0xff] %vm1296, %v1384
        %1407 = vst.msk [vmem:[%s1403 + $0x18] sm:$0xff] %vm1296, %v1386
        %1408 = vst.msk [vmem:[%s1403 + $0x20] sm:$0xff] %vm1296, %v1388
        %1409 = vst.msk [vmem:[%s1403 + $0x28] sm:$0xff] %vm1296, %v1390
        %1410 = vst.msk [vmem:[%s1403 + $0x30] sm:$0xff] %vm1296, %v1392
        %1411 = vst.msk [vmem:[%s1403 + $0x38] sm:$0xff] %vm1296, %v1394
        %v1412 = vld [vmem:[#allocation4] sm:$0xff]
        %v1413 = vld [vmem:[#allocation4 + $0x8] sm:$0xff]
        %v1414 = vld [vmem:[#allocation4 + $0x10] sm:$0xff]
        %v1415 = vld [vmem:[#allocation4 + $0x18] sm:$0xff]
        %v1416 = vld [vmem:[#allocation4 + $0x20] sm:$0xff]
        %v1417 = vld [vmem:[#allocation4 + $0x28] sm:$0xff]
        %v1418 = vld [vmem:[#allocation4 + $0x30] sm:$0xff]
        %v1419 = vld [vmem:[#allocation4 + $0x38] sm:$0xff]
        %v1420 = vld [vmem:[#allocation4 + $0x40] sm:$0xff]
        %v1421 = vld [vmem:[#allocation4 + $0x48] sm:$0xff]
        %v1422 = vld [vmem:[#allocation4 + $0x50] sm:$0xff]
        %v1423 = vld [vmem:[#allocation4 + $0x58] sm:$0xff]
        %v1424 = vld [vmem:[#allocation4 + $0x60] sm:$0xff]
        %v1425 = vld [vmem:[#allocation4 + $0x68] sm:$0xff]
        %v1426 = vld [vmem:[#allocation4 + $0x70] sm:$0xff]
        %v1427 = vld [vmem:[#allocation4 + $0x78] sm:$0xff]
        %v1428 = vld [vmem:[#allocation4 + $0x80] sm:$0xff]
        %v1429 = vld [vmem:[#allocation4 + $0x88] sm:$0xff]
        %v1430 = vld [vmem:[#allocation4 + $0x90] sm:$0xff]
        %v1431 = vld [vmem:[#allocation4 + $0x98] sm:$0xff]
        %v1432 = vld [vmem:[#allocation4 + $0xa0] sm:$0xff]
        %v1433 = vld [vmem:[#allocation4 + $0xa8] sm:$0xff]
        %v1434 = vld [vmem:[#allocation4 + $0xb0] sm:$0xff]
        %v1435 = vld [vmem:[#allocation4 + $0xb8] sm:$0xff]
        %v1436 = vld [vmem:[#allocation4 + $0xc0] sm:$0xff]
        %v1437 = vld [vmem:[#allocation4 + $0xc8] sm:$0xff]
        %v1438 = vld [vmem:[#allocation4 + $0xd0] sm:$0xff]
        %v1439 = vld [vmem:[#allocation4 + $0xd8] sm:$0xff]
        %v1440 = vld [vmem:[#allocation4 + $0xe0] sm:$0xff]
        %v1441 = vld [vmem:[#allocation4 + $0xe8] sm:$0xff]
        %v1442 = vld [vmem:[#allocation4 + $0xf0] sm:$0xff]
        %v1443 = vld [vmem:[#allocation4 + $0xf8] sm:$0xff]
        %v1444 = vld [vmem:[#allocation2] sm:$0xff]
        %v1445 = vld [vmem:[#allocation2 + $0x8] sm:$0xff]
        %v1446 = vld [vmem:[#allocation2 + $0x10] sm:$0xff]
        %v1447 = vld [vmem:[#allocation2 + $0x18] sm:$0xff]
        %v1448 = vld [vmem:[#allocation2 + $0x20] sm:$0xff]
        %v1449 = vld [vmem:[#allocation2 + $0x28] sm:$0xff]
        %v1450 = vld [vmem:[#allocation2 + $0x30] sm:$0xff]
        %v1451 = vld [vmem:[#allocation2 + $0x38] sm:$0xff]
        %v1452 = vld [vmem:[#allocation2 + $0x40] sm:$0xff]
        %v1453 = vld [vmem:[#allocation2 + $0x48] sm:$0xff]
        %v1454 = vld [vmem:[#allocation2 + $0x50] sm:$0xff]
        %v1455 = vld [vmem:[#allocation2 + $0x58] sm:$0xff]
        %v1456 = vld [vmem:[#allocation2 + $0x60] sm:$0xff]
        %v1457 = vld [vmem:[#allocation2 + $0x68] sm:$0xff]
        %v1458 = vld [vmem:[#allocation2 + $0x70] sm:$0xff]
        %v1459 = vld [vmem:[#allocation2 + $0x78] sm:$0xff]
        %v1460 = vld [vmem:[#allocation2 + $0x80] sm:$0xff]
        %v1461 = vld [vmem:[#allocation2 + $0x88] sm:$0xff]
        %v1462 = vld [vmem:[#allocation2 + $0x90] sm:$0xff]
        %v1463 = vld [vmem:[#allocation2 + $0x98] sm:$0xff]
        %v1464 = vld [vmem:[#allocation2 + $0xa0] sm:$0xff]
        %v1465 = vld [vmem:[#allocation2 + $0xa8] sm:$0xff]
        %v1466 = vld [vmem:[#allocation2 + $0xb0] sm:$0xff]
        %v1467 = vld [vmem:[#allocation2 + $0xb8] sm:$0xff]
        %v1468 = vld [vmem:[#allocation2 + $0xc0] sm:$0xff]
        %v1469 = vld [vmem:[#allocation2 + $0xc8] sm:$0xff]
        %v1470 = vld [vmem:[#allocation2 + $0xd0] sm:$0xff]
        %v1471 = vld [vmem:[#allocation2 + $0xd8] sm:$0xff]
        %v1472 = vld [vmem:[#allocation2 + $0xe0] sm:$0xff]
        %v1473 = vld [vmem:[#allocation2 + $0xe8] sm:$0xff]
        %v1474 = vld [vmem:[#allocation2 + $0xf0] sm:$0xff]
        %v1475 = vld [vmem:[#allocation2 + $0xf8] sm:$0xff]
        %v1477 = vsel %vm1296, %v1412, 0
        %v1480 = vsel %vm1296, %v1413, 0
        %v1483 = vsel %vm1296, %v1414, 0
        %v1486 = vsel %vm1296, %v1415, 0
        %v1489 = vsel %vm1296, %v1416, 0
        %v1492 = vsel %vm1296, %v1417, 0
        %v1495 = vsel %vm1296, %v1418, 0
        %v1498 = vsel %vm1296, %v1419, 0
        %v1501 = vsel %vm1296, %v1444, 0
        %v1504 = vsel %vm1296, %v1445, 0
        %v1507 = vsel %vm1296, %v1446, 0
        %v1510 = vsel %vm1296, %v1447, 0
        %v1513 = vsel %vm1296, %v1448, 0
        %v1516 = vsel %vm1296, %v1449, 0
        %v1519 = vsel %vm1296, %v1450, 0
        %v1522 = vsel %vm1296, %v1451, 0
        %1524 = vmatprep.subr.bf16.mxu0 0
        %1525 = vmatpush1.bf16.xpose.msra.mxu0 %v1501
        %1526 = vmatprep.subr.bf16.mxu0 0
        %1527 = vmatpush1.bf16.xpose.msra.mxu0 %v1504
        %1528 = vmatprep.subr.bf16.mxu0 0
        %1529 = vmatpush1.bf16.xpose.msra.mxu0 %v1507
        %1530 = vmatprep.subr.bf16.mxu0 0
        %1531 = vmatpush1.bf16.xpose.msra.mxu0 %v1510
        %1532 = vmatprep.subr.bf16.mxu0 0
        %1533 = vmatpush1.bf16.xpose.msra.mxu0 %v1513
        %1534 = vmatprep.subr.bf16.mxu0 0
        %1535 = vmatpush1.bf16.xpose.msra.mxu0 %v1516
        %1536 = vmatprep.subr.bf16.mxu0 0
        %1537 = vmatpush1.bf16.xpose.msra.mxu0 %v1519
        %1538 = vmatprep.subr.bf16.mxu0 0
        %1539 = vmatpush1.bf16.xpose.msra.mxu0 %v1522
        %1540 = vmatprep.subr.bf16.mxu0 0
        %1541 = vmatpush1.bf16.xpose.msra.mxu0 0
        %1542 = vmatprep.subr.bf16.mxu0 0
        %1543 = vmatpush1.bf16.xpose.msra.mxu0 0
        %1544 = vmatprep.subr.bf16.mxu0 0
        %1545 = vmatpush1.bf16.xpose.msra.mxu0 0
        %1546 = vmatprep.subr.bf16.mxu0 0
        %1547 = vmatpush1.bf16.xpose.msra.mxu0 0
        %1548 = vmatprep.subr.bf16.mxu0 0
        %1549 = vmatpush1.bf16.xpose.msra.mxu0 0
        %1550 = vmatprep.subr.bf16.mxu0 0
        %1551 = vmatpush1.bf16.xpose.msra.mxu0 0
        %1552 = vmatprep.subr.bf16.mxu0 0
        %1553 = vmatpush1.bf16.xpose.msra.mxu0 0
        %1554 = vmatprep.subr.bf16.mxu0 0
        %1555 = vmatpush1.bf16.xpose.msra.mxu0 0
        %1556 = vmatprep.mubr.bf16.mxu0 0
        %1557 = vmatmul.mubr.bf16.gmra.mrb[0].mxu0 %v1477
        %v1558 = vpop.f32.mrb[0].mxu0
        %v1559 = vadd.f32 0.0, %v1558
        %v1560 = vpop.f32.mrb[0].mxu0
        %v1561 = vpop.f32.mrb[0].mxu0
        %v1562 = vadd.f32 0.0, %v1561
        %v1563 = vpop.f32.mrb[0].mxu0
        %1564 = vmatprep.mubr.bf16.mxu0 0
        %1565 = vmatmul.mubr.bf16.gmra.mrb[0].mxu0 %v1480
        %v1566 = vpop.f32.mrb[0].mxu0
        %v1567 = vadd.f32 0.0, %v1566
        %v1568 = vpop.f32.mrb[0].mxu0
        %v1569 = vpop.f32.mrb[0].mxu0
        %v1570 = vadd.f32 0.0, %v1569
        %v1571 = vpop.f32.mrb[0].mxu0
        %1572 = vmatprep.mubr.bf16.mxu0 0
        %1573 = vmatmul.mubr.bf16.gmra.mrb[0].mxu0 %v1483
        %v1574 = vpop.f32.mrb[0].mxu0
        %v1575 = vadd.f32 0.0, %v1574
        %v1576 = vpop.f32.mrb[0].mxu0
        %v1577 = vpop.f32.mrb[0].mxu0
        %v1578 = vadd.f32 0.0, %v1577
        %v1579 = vpop.f32.mrb[0].mxu0
        %1580 = vmatprep.mubr.bf16.mxu0 0
        %1581 = vmatmul.mubr.bf16.gmra.mrb[0].mxu0 %v1486
        %v1582 = vpop.f32.mrb[0].mxu0
        %v1583 = vadd.f32 0.0, %v1582
        %v1584 = vpop.f32.mrb[0].mxu0
        %v1585 = vpop.f32.mrb[0].mxu0
        %v1586 = vadd.f32 0.0, %v1585
        %v1587 = vpop.f32.mrb[0].mxu0
        %1588 = vmatprep.mubr.bf16.mxu0 0
        %1589 = vmatmul.mubr.bf16.gmra.mrb[0].mxu0 %v1489
        %v1590 = vpop.f32.mrb[0].mxu0
        %v1591 = vadd.f32 0.0, %v1590
        %v1592 = vpop.f32.mrb[0].mxu0
        %v1593 = vpop.f32.mrb[0].mxu0
        %v1594 = vadd.f32 0.0, %v1593
        %v1595 = vpop.f32.mrb[0].mxu0
        %1596 = vmatprep.mubr.bf16.mxu0 0
        %1597 = vmatmul.mubr.bf16.gmra.mrb[0].mxu0 %v1492
        %v1598 = vpop.f32.mrb[0].mxu0
        %v1599 = vadd.f32 0.0, %v1598
        %v1600 = vpop.f32.mrb[0].mxu0
        %v1601 = vpop.f32.mrb[0].mxu0
        %v1602 = vadd.f32 0.0, %v1601
        %v1603 = vpop.f32.mrb[0].mxu0
        %1604 = vmatprep.mubr.bf16.mxu0 0
        %1605 = vmatmul.mubr.bf16.gmra.mrb[0].mxu0 %v1495
        %v1606 = vpop.f32.mrb[0].mxu0
        %v1607 = vadd.f32 0.0, %v1606
        %v1608 = vpop.f32.mrb[0].mxu0
        %v1609 = vpop.f32.mrb[0].mxu0
        %v1610 = vadd.f32 0.0, %v1609
        %v1611 = vpop.f32.mrb[0].mxu0
        %1612 = vmatprep.mubr.bf16.mxu0 0
        %1613 = vmatmul.mubr.bf16.gmra.mrb[0].mxu0 %v1498
        %v1614 = vpop.f32.mrb[0].mxu0
        %v1615 = vadd.f32 0.0, %v1614
        %v1616 = vpop.f32.mrb[0].mxu0
        %v1617 = vpop.f32.mrb[0].mxu0
        %v1618 = vadd.f32 0.0, %v1617
        %v1619 = vpop.f32.mrb[0].mxu0
        %1620 = vdwg.mxu0
        %v1622 = vsel %vm1296, %v1420, 0
        %v1625 = vsel %vm1296, %v1421, 0
        %v1628 = vsel %vm1296, %v1422, 0
        %v1631 = vsel %vm1296, %v1423, 0
        %v1634 = vsel %vm1296, %v1424, 0
        %v1637 = vsel %vm1296, %v1425, 0
        %v1640 = vsel %vm1296, %v1426, 0
        %v1643 = vsel %vm1296, %v1427, 0
        %v1646 = vsel %vm1296, %v1452, 0
        %v1649 = vsel %vm1296, %v1453, 0
        %v1652 = vsel %vm1296, %v1454, 0
        %v1655 = vsel %vm1296, %v1455, 0
        %v1658 = vsel %vm1296, %v1456, 0
        %v1661 = vsel %vm1296, %v1457, 0
        %v1664 = vsel %vm1296, %v1458, 0
        %v1667 = vsel %vm1296, %v1459, 0
        %1669 = vmatprep.subr.bf16.mxu0 0
        %1670 = vmatpush1.bf16.xpose.msra.mxu0 %v1646
        %1671 = vmatprep.subr.bf16.mxu0 0
        %1672 = vmatpush1.bf16.xpose.msra.mxu0 %v1649
        %1673 = vmatprep.subr.bf16.mxu0 0
        %1674 = vmatpush1.bf16.xpose.msra.mxu0 %v1652
        %1675 = vmatprep.subr.bf16.mxu0 0
        %1676 = vmatpush1.bf16.xpose.msra.mxu0 %v1655
        %1677 = vmatprep.subr.bf16.mxu0 0
        %1678 = vmatpush1.bf16.xpose.msra.mxu0 %v1658
        %1679 = vmatprep.subr.bf16.mxu0 0
        %1680 = vmatpush1.bf16.xpose.msra.mxu0 %v1661
        %1681 = vmatprep.subr.bf16.mxu0 0
        %1682 = vmatpush1.bf16.xpose.msra.mxu0 %v1664
        %1683 = vmatprep.subr.bf16.mxu0 0
        %1684 = vmatpush1.bf16.xpose.msra.mxu0 %v1667
        %1685 = vmatprep.subr.bf16.mxu0 0
        %1686 = vmatpush1.bf16.xpose.msra.mxu0 0
        %1687 = vmatprep.subr.bf16.mxu0 0
        %1688 = vmatpush1.bf16.xpose.msra.mxu0 0
        %1689 = vmatprep.subr.bf16.mxu0 0
        %1690 = vmatpush1.bf16.xpose.msra.mxu0 0
        %1691 = vmatprep.subr.bf16.mxu0 0
        %1692 = vmatpush1.bf16.xpose.msra.mxu0 0
        %1693 = vmatprep.subr.bf16.mxu0 0
        %1694 = vmatpush1.bf16.xpose.msra.mxu0 0
        %1695 = vmatprep.subr.bf16.mxu0 0
        %1696 = vmatpush1.bf16.xpose.msra.mxu0 0
        %1697 = vmatprep.subr.bf16.mxu0 0
        %1698 = vmatpush1.bf16.xpose.msra.mxu0 0
        %1699 = vmatprep.subr.bf16.mxu0 0
        %1700 = vmatpush1.bf16.xpose.msra.mxu0 0
        %1701 = vmatprep.mubr.bf16.mxu0 0
        %1702 = vmatmul.mubr.bf16.gmra.mrb[0].mxu0 %v1622
        %v1703 = vpop.f32.mrb[0].mxu0
        %v1704 = vadd.f32 0.0, %v1703
        %v1705 = vpop.f32.mrb[0].mxu0
        %v1706 = vpop.f32.mrb[0].mxu0
        %v1707 = vadd.f32 0.0, %v1706
        %v1708 = vpop.f32.mrb[0].mxu0
        %1709 = vmatprep.mubr.bf16.mxu0 0
        %1710 = vmatmul.mubr.bf16.gmra.mrb[0].mxu0 %v1625
        %v1711 = vpop.f32.mrb[0].mxu0
        %v1712 = vadd.f32 0.0, %v1711
        %v1713 = vpop.f32.mrb[0].mxu0
        %v1714 = vpop.f32.mrb[0].mxu0
        %v1715 = vadd.f32 0.0, %v1714
        %v1716 = vpop.f32.mrb[0].mxu0
        %1717 = vmatprep.mubr.bf16.mxu0 0
        %1718 = vmatmul.mubr.bf16.gmra.mrb[0].mxu0 %v1628
        %v1719 = vpop.f32.mrb[0].mxu0
        %v1720 = vadd.f32 0.0, %v1719
        %v1721 = vpop.f32.mrb[0].mxu0
        %v1722 = vpop.f32.mrb[0].mxu0
        %v1723 = vadd.f32 0.0, %v1722
        %v1724 = vpop.f32.mrb[0].mxu0
        %1725 = vmatprep.mubr.bf16.mxu0 0
        %1726 = vmatmul.mubr.bf16.gmra.mrb[0].mxu0 %v1631
        %v1727 = vpop.f32.mrb[0].mxu0
        %v1728 = vadd.f32 0.0, %v1727
        %v1729 = vpop.f32.mrb[0].mxu0
        %v1730 = vpop.f32.mrb[0].mxu0
        %v1731 = vadd.f32 0.0, %v1730
        %v1732 = vpop.f32.mrb[0].mxu0
        %1733 = vmatprep.mubr.bf16.mxu0 0
        %1734 = vmatmul.mubr.bf16.gmra.mrb[0].mxu0 %v1634
        %v1735 = vpop.f32.mrb[0].mxu0
        %v1736 = vadd.f32 0.0, %v1735
        %v1737 = vpop.f32.mrb[0].mxu0
        %v1738 = vpop.f32.mrb[0].mxu0
        %v1739 = vadd.f32 0.0, %v1738
        %v1740 = vpop.f32.mrb[0].mxu0
        %1741 = vmatprep.mubr.bf16.mxu0 0
        %1742 = vmatmul.mubr.bf16.gmra.mrb[0].mxu0 %v1637
        %v1743 = vpop.f32.mrb[0].mxu0
        %v1744 = vadd.f32 0.0, %v1743
        %v1745 = vpop.f32.mrb[0].mxu0
        %v1746 = vpop.f32.mrb[0].mxu0
        %v1747 = vadd.f32 0.0, %v1746
        %v1748 = vpop.f32.mrb[0].mxu0
        %1749 = vmatprep.mubr.bf16.mxu0 0
        %1750 = vmatmul.mubr.bf16.gmra.mrb[0].mxu0 %v1640
        %v1751 = vpop.f32.mrb[0].mxu0
        %v1752 = vadd.f32 0.0, %v1751
        %v1753 = vpop.f32.mrb[0].mxu0
        %v1754 = vpop.f32.mrb[0].mxu0
        %v1755 = vadd.f32 0.0, %v1754
        %v1756 = vpop.f32.mrb[0].mxu0
        %1757 = vmatprep.mubr.bf16.mxu0 0
        %1758 = vmatmul.mubr.bf16.gmra.mrb[0].mxu0 %v1643
        %v1759 = vpop.f32.mrb[0].mxu0
        %v1760 = vadd.f32 0.0, %v1759
        %v1761 = vpop.f32.mrb[0].mxu0
        %v1762 = vpop.f32.mrb[0].mxu0
        %v1763 = vadd.f32 0.0, %v1762
        %v1764 = vpop.f32.mrb[0].mxu0
        %1765 = vdwg.mxu0
        %v1767 = vsel %vm1296, %v1428, 0
        %v1770 = vsel %vm1296, %v1429, 0
        %v1773 = vsel %vm1296, %v1430, 0
        %v1776 = vsel %vm1296, %v1431, 0
        %v1779 = vsel %vm1296, %v1432, 0
        %v1782 = vsel %vm1296, %v1433, 0
        %v1785 = vsel %vm1296, %v1434, 0
        %v1788 = vsel %vm1296, %v1435, 0
        %v1791 = vsel %vm1296, %v1460, 0
        %v1794 = vsel %vm1296, %v1461, 0
        %v1797 = vsel %vm1296, %v1462, 0
        %v1800 = vsel %vm1296, %v1463, 0
        %v1803 = vsel %vm1296, %v1464, 0
        %v1806 = vsel %vm1296, %v1465, 0
        %v1809 = vsel %vm1296, %v1466, 0
        %v1812 = vsel %vm1296, %v1467, 0
        %1814 = vmatprep.subr.bf16.mxu0 0
        %1815 = vmatpush1.bf16.xpose.msra.mxu0 %v1791
        %1816 = vmatprep.subr.bf16.mxu0 0
        %1817 = vmatpush1.bf16.xpose.msra.mxu0 %v1794
        %1818 = vmatprep.subr.bf16.mxu0 0
        %1819 = vmatpush1.bf16.xpose.msra.mxu0 %v1797
        %1820 = vmatprep.subr.bf16.mxu0 0
        %1821 = vmatpush1.bf16.xpose.msra.mxu0 %v1800
        %1822 = vmatprep.subr.bf16.mxu0 0
        %1823 = vmatpush1.bf16.xpose.msra.mxu0 %v1803
        %1824 = vmatprep.subr.bf16.mxu0 0
        %1825 = vmatpush1.bf16.xpose.msra.mxu0 %v1806
        %1826 = vmatprep.subr.bf16.mxu0 0
        %1827 = vmatpush1.bf16.xpose.msra.mxu0 %v1809
        %1828 = vmatprep.subr.bf16.mxu0 0
        %1829 = vmatpush1.bf16.xpose.msra.mxu0 %v1812
        %1830 = vmatprep.subr.bf16.mxu0 0
        %1831 = vmatpush1.bf16.xpose.msra.mxu0 0
        %1832 = vmatprep.subr.bf16.mxu0 0
        %1833 = vmatpush1.bf16.xpose.msra.mxu0 0
        %1834 = vmatprep.subr.bf16.mxu0 0
        %1835 = vmatpush1.bf16.xpose.msra.mxu0 0
        %1836 = vmatprep.subr.bf16.mxu0 0
        %1837 = vmatpush1.bf16.xpose.msra.mxu0 0
        %1838 = vmatprep.subr.bf16.mxu0 0
        %1839 = vmatpush1.bf16.xpose.msra.mxu0 0
        %1840 = vmatprep.subr.bf16.mxu0 0
        %1841 = vmatpush1.bf16.xpose.msra.mxu0 0
        %1842 = vmatprep.subr.bf16.mxu0 0
        %1843 = vmatpush1.bf16.xpose.msra.mxu0 0
        %1844 = vmatprep.subr.bf16.mxu0 0
        %1845 = vmatpush1.bf16.xpose.msra.mxu0 0
        %1846 = vmatprep.mubr.bf16.mxu0 0
        %1847 = vmatmul.mubr.bf16.gmra.mrb[0].mxu0 %v1767
        %v1848 = vpop.f32.mrb[0].mxu0
        %v1849 = vadd.f32 0.0, %v1848
        %v1850 = vpop.f32.mrb[0].mxu0
        %v1851 = vpop.f32.mrb[0].mxu0
        %v1852 = vadd.f32 0.0, %v1851
        %v1853 = vpop.f32.mrb[0].mxu0
        %1854 = vmatprep.mubr.bf16.mxu0 0
        %1855 = vmatmul.mubr.bf16.gmra.mrb[0].mxu0 %v1770
        %v1856 = vpop.f32.mrb[0].mxu0
        %v1857 = vadd.f32 0.0, %v1856
        %v1858 = vpop.f32.mrb[0].mxu0
        %v1859 = vpop.f32.mrb[0].mxu0
        %v1860 = vadd.f32 0.0, %v1859
        %v1861 = vpop.f32.mrb[0].mxu0
        %1862 = vmatprep.mubr.bf16.mxu0 0
        %1863 = vmatmul.mubr.bf16.gmra.mrb[0].mxu0 %v1773
        %v1864 = vpop.f32.mrb[0].mxu0
        %v1865 = vadd.f32 0.0, %v1864
        %v1866 = vpop.f32.mrb[0].mxu0
        %v1867 = vpop.f32.mrb[0].mxu0
        %v1868 = vadd.f32 0.0, %v1867
        %v1869 = vpop.f32.mrb[0].mxu0
        %1870 = vmatprep.mubr.bf16.mxu0 0
        %1871 = vmatmul.mubr.bf16.gmra.mrb[0].mxu0 %v1776
        %v1872 = vpop.f32.mrb[0].mxu0
        %v1873 = vadd.f32 0.0, %v1872
        %v1874 = vpop.f32.mrb[0].mxu0
        %v1875 = vpop.f32.mrb[0].mxu0
        %v1876 = vadd.f32 0.0, %v1875
        %v1877 = vpop.f32.mrb[0].mxu0
        %1878 = vmatprep.mubr.bf16.mxu0 0
        %1879 = vmatmul.mubr.bf16.gmra.mrb[0].mxu0 %v1779
        %v1880 = vpop.f32.mrb[0].mxu0
        %v1881 = vadd.f32 0.0, %v1880
        %v1882 = vpop.f32.mrb[0].mxu0
        %v1883 = vpop.f32.mrb[0].mxu0
        %v1884 = vadd.f32 0.0, %v1883
        %v1885 = vpop.f32.mrb[0].mxu0
        %1886 = vmatprep.mubr.bf16.mxu0 0
        %1887 = vmatmul.mubr.bf16.gmra.mrb[0].mxu0 %v1782
        %v1888 = vpop.f32.mrb[0].mxu0
        %v1889 = vadd.f32 0.0, %v1888
        %v1890 = vpop.f32.mrb[0].mxu0
        %v1891 = vpop.f32.mrb[0].mxu0
        %v1892 = vadd.f32 0.0, %v1891
        %v1893 = vpop.f32.mrb[0].mxu0
        %1894 = vmatprep.mubr.bf16.mxu0 0
        %1895 = vmatmul.mubr.bf16.gmra.mrb[0].mxu0 %v1785
        %v1896 = vpop.f32.mrb[0].mxu0
        %v1897 = vadd.f32 0.0, %v1896
        %v1898 = vpop.f32.mrb[0].mxu0
        %v1899 = vpop.f32.mrb[0].mxu0
        %v1900 = vadd.f32 0.0, %v1899
        %v1901 = vpop.f32.mrb[0].mxu0
        %1902 = vmatprep.mubr.bf16.mxu0 0
        %1903 = vmatmul.mubr.bf16.gmra.mrb[0].mxu0 %v1788
        %v1904 = vpop.f32.mrb[0].mxu0
        %v1905 = vadd.f32 0.0, %v1904
        %v1906 = vpop.f32.mrb[0].mxu0
        %v1907 = vpop.f32.mrb[0].mxu0
        %v1908 = vadd.f32 0.0, %v1907
        %v1909 = vpop.f32.mrb[0].mxu0
        %1910 = vdwg.mxu0
        %v1912 = vsel %vm1296, %v1436, 0
        %v1915 = vsel %vm1296, %v1437, 0
        %v1918 = vsel %vm1296, %v1438, 0
        %v1921 = vsel %vm1296, %v1439, 0
        %v1924 = vsel %vm1296, %v1440, 0
        %v1927 = vsel %vm1296, %v1441, 0
        %v1930 = vsel %vm1296, %v1442, 0
        %v1933 = vsel %vm1296, %v1443, 0
        %v1936 = vsel %vm1296, %v1468, 0
        %v1939 = vsel %vm1296, %v1469, 0
        %v1942 = vsel %vm1296, %v1470, 0
        %v1945 = vsel %vm1296, %v1471, 0
        %v1948 = vsel %vm1296, %v1472, 0
        %v1951 = vsel %vm1296, %v1473, 0
        %v1954 = vsel %vm1296, %v1474, 0
        %v1957 = vsel %vm1296, %v1475, 0
        %1959 = vmatprep.subr.bf16.mxu0 0
        %1960 = vmatpush1.bf16.xpose.msra.mxu0 %v1936
        %1961 = vmatprep.subr.bf16.mxu0 0
        %1962 = vmatpush1.bf16.xpose.msra.mxu0 %v1939
        %1963 = vmatprep.subr.bf16.mxu0 0
        %1964 = vmatpush1.bf16.xpose.msra.mxu0 %v1942
        %1965 = vmatprep.subr.bf16.mxu0 0
        %1966 = vmatpush1.bf16.xpose.msra.mxu0 %v1945
        %1967 = vmatprep.subr.bf16.mxu0 0
        %1968 = vmatpush1.bf16.xpose.msra.mxu0 %v1948
        %1969 = vmatprep.subr.bf16.mxu0 0
        %1970 = vmatpush1.bf16.xpose.msra.mxu0 %v1951
        %1971 = vmatprep.subr.bf16.mxu0 0
        %1972 = vmatpush1.bf16.xpose.msra.mxu0 %v1954
        %1973 = vmatprep.subr.bf16.mxu0 0
        %1974 = vmatpush1.bf16.xpose.msra.mxu0 %v1957
        %1975 = vmatprep.subr.bf16.mxu0 0
        %1976 = vmatpush1.bf16.xpose.msra.mxu0 0
        %1977 = vmatprep.subr.bf16.mxu0 0
        %1978 = vmatpush1.bf16.xpose.msra.mxu0 0
        %1979 = vmatprep.subr.bf16.mxu0 0
        %1980 = vmatpush1.bf16.xpose.msra.mxu0 0
        %1981 = vmatprep.subr.bf16.mxu0 0
        %1982 = vmatpush1.bf16.xpose.msra.mxu0 0
        %1983 = vmatprep.subr.bf16.mxu0 0
        %1984 = vmatpush1.bf16.xpose.msra.mxu0 0
        %1985 = vmatprep.subr.bf16.mxu0 0
        %1986 = vmatpush1.bf16.xpose.msra.mxu0 0
        %1987 = vmatprep.subr.bf16.mxu0 0
        %1988 = vmatpush1.bf16.xpose.msra.mxu0 0
        %1989 = vmatprep.subr.bf16.mxu0 0
        %1990 = vmatpush1.bf16.xpose.msra.mxu0 0
        %1991 = vmatprep.mubr.bf16.mxu0 0
        %1992 = vmatmul.mubr.bf16.gmra.mrb[0].mxu0 %v1912
        %v1993 = vpop.f32.mrb[0].mxu0
        %v1994 = vadd.f32 0.0, %v1993
        %v1995 = vpop.f32.mrb[0].mxu0
        %v1996 = vpop.f32.mrb[0].mxu0
        %v1997 = vadd.f32 0.0, %v1996
        %v1998 = vpop.f32.mrb[0].mxu0
        %1999 = vmatprep.mubr.bf16.mxu0 0
        %2000 = vmatmul.mubr.bf16.gmra.mrb[0].mxu0 %v1915
        %v2001 = vpop.f32.mrb[0].mxu0
        %v2002 = vadd.f32 0.0, %v2001
        %v2003 = vpop.f32.mrb[0].mxu0
        %v2004 = vpop.f32.mrb[0].mxu0
        %v2005 = vadd.f32 0.0, %v2004
        %v2006 = vpop.f32.mrb[0].mxu0
        %2007 = vmatprep.mubr.bf16.mxu0 0
        %2008 = vmatmul.mubr.bf16.gmra.mrb[0].mxu0 %v1918
        %v2009 = vpop.f32.mrb[0].mxu0
        %v2010 = vadd.f32 0.0, %v2009
        %v2011 = vpop.f32.mrb[0].mxu0
        %v2012 = vpop.f32.mrb[0].mxu0
        %v2013 = vadd.f32 0.0, %v2012
        %v2014 = vpop.f32.mrb[0].mxu0
        %2015 = vmatprep.mubr.bf16.mxu0 0
        %2016 = vmatmul.mubr.bf16.gmra.mrb[0].mxu0 %v1921
        %v2017 = vpop.f32.mrb[0].mxu0
        %v2018 = vadd.f32 0.0, %v2017
        %v2019 = vpop.f32.mrb[0].mxu0
        %v2020 = vpop.f32.mrb[0].mxu0
        %v2021 = vadd.f32 0.0, %v2020
        %v2022 = vpop.f32.mrb[0].mxu0
        %2023 = vmatprep.mubr.bf16.mxu0 0
        %2024 = vmatmul.mubr.bf16.gmra.mrb[0].mxu0 %v1924
        %v2025 = vpop.f32.mrb[0].mxu0
        %v2026 = vadd.f32 0.0, %v2025
        %v2027 = vpop.f32.mrb[0].mxu0
        %v2028 = vpop.f32.mrb[0].mxu0
        %v2029 = vadd.f32 0.0, %v2028
        %v2030 = vpop.f32.mrb[0].mxu0
        %2031 = vmatprep.mubr.bf16.mxu0 0
        %2032 = vmatmul.mubr.bf16.gmra.mrb[0].mxu0 %v1927
        %v2033 = vpop.f32.mrb[0].mxu0
        %v2034 = vadd.f32 0.0, %v2033
        %v2035 = vpop.f32.mrb[0].mxu0
        %v2036 = vpop.f32.mrb[0].mxu0
        %v2037 = vadd.f32 0.0, %v2036
        %v2038 = vpop.f32.mrb[0].mxu0
        %2039 = vmatprep.mubr.bf16.mxu0 0
        %2040 = vmatmul.mubr.bf16.gmra.mrb[0].mxu0 %v1930
        %v2041 = vpop.f32.mrb[0].mxu0
        %v2042 = vadd.f32 0.0, %v2041
        %v2043 = vpop.f32.mrb[0].mxu0
        %v2044 = vpop.f32.mrb[0].mxu0
        %v2045 = vadd.f32 0.0, %v2044
        %v2046 = vpop.f32.mrb[0].mxu0
        %2047 = vmatprep.mubr.bf16.mxu0 0
        %2048 = vmatmul.mubr.bf16.gmra.mrb[0].mxu0 %v1933
        %v2049 = vpop.f32.mrb[0].mxu0
        %v2050 = vadd.f32 0.0, %v2049
        %v2051 = vpop.f32.mrb[0].mxu0
        %v2052 = vpop.f32.mrb[0].mxu0
        %v2053 = vadd.f32 0.0, %v2052
        %v2054 = vpop.f32.mrb[0].mxu0
        %2055 = vdwg.mxu0
        %v2056 = vlaneseq
        %v2057 = vand.u32 %v2056, 127
        %vm2058 = vcmp.lt.s32.totalorder %v2057, 8
        %v2059 = vsel %vm2058, 1, 0
        %vm2060 = vcmp.eq.s32.totalorder %v2059, 1
        %v2061 = vsel %vm2060, %v1559, -1e+30
        %v2062 = vsel %vm2060, %v1562, -1e+30
        %v2063 = vsel %vm2060, %v1567, -1e+30
        %v2064 = vsel %vm2060, %v1570, -1e+30
        %v2065 = vsel %vm2060, %v1575, -1e+30
        %v2066 = vsel %vm2060, %v1578, -1e+30
        %v2067 = vsel %vm2060, %v1583, -1e+30
        %v2068 = vsel %vm2060, %v1586, -1e+30
        %v2069 = vsel %vm2060, %v1591, -1e+30
        %v2070 = vsel %vm2060, %v1594, -1e+30
        %v2071 = vsel %vm2060, %v1599, -1e+30
        %v2072 = vsel %vm2060, %v1602, -1e+30
        %v2073 = vsel %vm2060, %v1607, -1e+30
        %v2074 = vsel %vm2060, %v1610, -1e+30
        %v2075 = vsel %vm2060, %v1615, -1e+30
        %v2076 = vsel %vm2060, %v1618, -1e+30
        %v2077 = vsel %vm2060, %v1704, -1e+30
        %v2078 = vsel %vm2060, %v1707, -1e+30
        %v2079 = vsel %vm2060, %v1712, -1e+30
        %v2080 = vsel %vm2060, %v1715, -1e+30
        %v2081 = vsel %vm2060, %v1720, -1e+30
        %v2082 = vsel %vm2060, %v1723, -1e+30
        %v2083 = vsel %vm2060, %v1728, -1e+30
        %v2084 = vsel %vm2060, %v1731, -1e+30
        %v2085 = vsel %vm2060, %v1736, -1e+30
        %v2086 = vsel %vm2060, %v1739, -1e+30
        %v2087 = vsel %vm2060, %v1744, -1e+30
        %v2088 = vsel %vm2060, %v1747, -1e+30
        %v2089 = vsel %vm2060, %v1752, -1e+30
        %v2090 = vsel %vm2060, %v1755, -1e+30
        %v2091 = vsel %vm2060, %v1760, -1e+30
        %v2092 = vsel %vm2060, %v1763, -1e+30
        %v2093 = vsel %vm2060, %v1849, -1e+30
        %v2094 = vsel %vm2060, %v1852, -1e+30
        %v2095 = vsel %vm2060, %v1857, -1e+30
        %v2096 = vsel %vm2060, %v1860, -1e+30
        %v2097 = vsel %vm2060, %v1865, -1e+30
        %v2098 = vsel %vm2060, %v1868, -1e+30
        %v2099 = vsel %vm2060, %v1873, -1e+30
        %v2100 = vsel %vm2060, %v1876, -1e+30
        %v2101 = vsel %vm2060, %v1881, -1e+30
        %v2102 = vsel %vm2060, %v1884, -1e+30
        %v2103 = vsel %vm2060, %v1889, -1e+30
        %v2104 = vsel %vm2060, %v1892, -1e+30
        %v2105 = vsel %vm2060, %v1897, -1e+30
        %v2106 = vsel %vm2060, %v1900, -1e+30
        %v2107 = vsel %vm2060, %v1905, -1e+30
        %v2108 = vsel %vm2060, %v1908, -1e+30
        %v2109 = vsel %vm2060, %v1994, -1e+30
        %v2110 = vsel %vm2060, %v1997, -1e+30
        %v2111 = vsel %vm2060, %v2002, -1e+30
        %v2112 = vsel %vm2060, %v2005, -1e+30
        %v2113 = vsel %vm2060, %v2010, -1e+30
        %v2114 = vsel %vm2060, %v2013, -1e+30
        %v2115 = vsel %vm2060, %v2018, -1e+30
        %v2116 = vsel %vm2060, %v2021, -1e+30
        %v2117 = vsel %vm2060, %v2026, -1e+30
        %v2118 = vsel %vm2060, %v2029, -1e+30
        %v2119 = vsel %vm2060, %v2034, -1e+30
        %v2120 = vsel %vm2060, %v2037, -1e+30
        %v2121 = vsel %vm2060, %v2042, -1e+30
        %v2122 = vsel %vm2060, %v2045, -1e+30
        %v2123 = vsel %vm2060, %v2050, -1e+30
        %v2124 = vsel %vm2060, %v2053, -1e+30
        %2125 = vmax.xlane.f32.xlu0 %v2061
        %v2126 = vpop.xlane.xlu0 %2125
        %2127 = vmax.xlane.f32.xlu0 %v2062
        %v2128 = vpop.xlane.xlu0 %2127
        %2129 = vmax.xlane.f32.xlu0 %v2063
        %v2130 = vpop.xlane.xlu0 %2129
        %2131 = vmax.xlane.f32.xlu0 %v2064
        %v2132 = vpop.xlane.xlu0 %2131
        %2133 = vmax.xlane.f32.xlu0 %v2065
        %v2134 = vpop.xlane.xlu0 %2133
        %2135 = vmax.xlane.f32.xlu0 %v2066
        %v2136 = vpop.xlane.xlu0 %2135
        %2137 = vmax.xlane.f32.xlu0 %v2067
        %v2138 = vpop.xlane.xlu0 %2137
        %2139 = vmax.xlane.f32.xlu0 %v2068
        %v2140 = vpop.xlane.xlu0 %2139
        %2141 = vmax.xlane.f32.xlu0 %v2069
        %v2142 = vpop.xlane.xlu0 %2141
        %2143 = vmax.xlane.f32.xlu0 %v2070
        %v2144 = vpop.xlane.xlu0 %2143
        %2145 = vmax.xlane.f32.xlu0 %v2071
        %v2146 = vpop.xlane.xlu0 %2145
        %2147 = vmax.xlane.f32.xlu0 %v2072
        %v2148 = vpop.xlane.xlu0 %2147
        %2149 = vmax.xlane.f32.xlu0 %v2073
        %v2150 = vpop.xlane.xlu0 %2149
        %2151 = vmax.xlane.f32.xlu0 %v2074
        %v2152 = vpop.xlane.xlu0 %2151
        %2153 = vmax.xlane.f32.xlu0 %v2075
        %v2154 = vpop.xlane.xlu0 %2153
        %2155 = vmax.xlane.f32.xlu0 %v2076
        %v2156 = vpop.xlane.xlu0 %2155
        %2157 = vmax.xlane.f32.xlu0 %v2077
        %v2158 = vpop.xlane.xlu0 %2157
        %2159 = vmax.xlane.f32.xlu0 %v2078
        %v2160 = vpop.xlane.xlu0 %2159
        %2161 = vmax.xlane.f32.xlu0 %v2079
        %v2162 = vpop.xlane.xlu0 %2161
        %2163 = vmax.xlane.f32.xlu0 %v2080
        %v2164 = vpop.xlane.xlu0 %2163
        %2165 = vmax.xlane.f32.xlu0 %v2081
        %v2166 = vpop.xlane.xlu0 %2165
        %2167 = vmax.xlane.f32.xlu0 %v2082
        %v2168 = vpop.xlane.xlu0 %2167
        %2169 = vmax.xlane.f32.xlu0 %v2083
        %v2170 = vpop.xlane.xlu0 %2169
        %2171 = vmax.xlane.f32.xlu0 %v2084
        %v2172 = vpop.xlane.xlu0 %2171
        %2173 = vmax.xlane.f32.xlu0 %v2085
        %v2174 = vpop.xlane.xlu0 %2173
        %2175 = vmax.xlane.f32.xlu0 %v2086
        %v2176 = vpop.xlane.xlu0 %2175
        %2177 = vmax.xlane.f32.xlu0 %v2087
        %v2178 = vpop.xlane.xlu0 %2177
        %2179 = vmax.xlane.f32.xlu0 %v2088
        %v2180 = vpop.xlane.xlu0 %2179
        %2181 = vmax.xlane.f32.xlu0 %v2089
        %v2182 = vpop.xlane.xlu0 %2181
        %2183 = vmax.xlane.f32.xlu0 %v2090
        %v2184 = vpop.xlane.xlu0 %2183
        %2185 = vmax.xlane.f32.xlu0 %v2091
        %v2186 = vpop.xlane.xlu0 %2185
        %2187 = vmax.xlane.f32.xlu0 %v2092
        %v2188 = vpop.xlane.xlu0 %2187
        %2189 = vmax.xlane.f32.xlu0 %v2093
        %v2190 = vpop.xlane.xlu0 %2189
        %2191 = vmax.xlane.f32.xlu0 %v2094
        %v2192 = vpop.xlane.xlu0 %2191
        %2193 = vmax.xlane.f32.xlu0 %v2095
        %v2194 = vpop.xlane.xlu0 %2193
        %2195 = vmax.xlane.f32.xlu0 %v2096
        %v2196 = vpop.xlane.xlu0 %2195
        %2197 = vmax.xlane.f32.xlu0 %v2097
        %v2198 = vpop.xlane.xlu0 %2197
        %2199 = vmax.xlane.f32.xlu0 %v2098
        %v2200 = vpop.xlane.xlu0 %2199
        %2201 = vmax.xlane.f32.xlu0 %v2099
        %v2202 = vpop.xlane.xlu0 %2201
        %2203 = vmax.xlane.f32.xlu0 %v2100
        %v2204 = vpop.xlane.xlu0 %2203
        %2205 = vmax.xlane.f32.xlu0 %v2101
        %v2206 = vpop.xlane.xlu0 %2205
        %2207 = vmax.xlane.f32.xlu0 %v2102
        %v2208 = vpop.xlane.xlu0 %2207
        %2209 = vmax.xlane.f32.xlu0 %v2103
        %v2210 = vpop.xlane.xlu0 %2209
        %2211 = vmax.xlane.f32.xlu0 %v2104
        %v2212 = vpop.xlane.xlu0 %2211
        %2213 = vmax.xlane.f32.xlu0 %v2105
        %v2214 = vpop.xlane.xlu0 %2213
        %2215 = vmax.xlane.f32.xlu0 %v2106
        %v2216 = vpop.xlane.xlu0 %2215
        %2217 = vmax.xlane.f32.xlu0 %v2107
        %v2218 = vpop.xlane.xlu0 %2217
        %2219 = vmax.xlane.f32.xlu0 %v2108
        %v2220 = vpop.xlane.xlu0 %2219
        %2221 = vmax.xlane.f32.xlu0 %v2109
        %v2222 = vpop.xlane.xlu0 %2221
        %2223 = vmax.xlane.f32.xlu0 %v2110
        %v2224 = vpop.xlane.xlu0 %2223
        %2225 = vmax.xlane.f32.xlu0 %v2111
        %v2226 = vpop.xlane.xlu0 %2225
        %2227 = vmax.xlane.f32.xlu0 %v2112
        %v2228 = vpop.xlane.xlu0 %2227
        %2229 = vmax.xlane.f32.xlu0 %v2113
        %v2230 = vpop.xlane.xlu0 %2229
        %2231 = vmax.xlane.f32.xlu0 %v2114
        %v2232 = vpop.xlane.xlu0 %2231
        %2233 = vmax.xlane.f32.xlu0 %v2115
        %v2234 = vpop.xlane.xlu0 %2233
        %2235 = vmax.xlane.f32.xlu0 %v2116
        %v2236 = vpop.xlane.xlu0 %2235
        %2237 = vmax.xlane.f32.xlu0 %v2117
        %v2238 = vpop.xlane.xlu0 %2237
        %2239 = vmax.xlane.f32.xlu0 %v2118
        %v2240 = vpop.xlane.xlu0 %2239
        %2241 = vmax.xlane.f32.xlu0 %v2119
        %v2242 = vpop.xlane.xlu0 %2241
        %2243 = vmax.xlane.f32.xlu0 %v2120
        %v2244 = vpop.xlane.xlu0 %2243
        %2245 = vmax.xlane.f32.xlu0 %v2121
        %v2246 = vpop.xlane.xlu0 %2245
        %2247 = vmax.xlane.f32.xlu0 %v2122
        %v2248 = vpop.xlane.xlu0 %2247
        %2249 = vmax.xlane.f32.xlu0 %v2123
        %v2250 = vpop.xlane.xlu0 %2249
        %2251 = vmax.xlane.f32.xlu0 %v2124
        %v2252 = vpop.xlane.xlu0 %2251
        %v2253 = vsub.f32 %v2061, %v2126
        %v2254 = vsub.f32 %v2062, %v2128
        %v2255 = vsub.f32 %v2063, %v2130
        %v2256 = vsub.f32 %v2064, %v2132
        %v2257 = vsub.f32 %v2065, %v2134
        %v2258 = vsub.f32 %v2066, %v2136
        %v2259 = vsub.f32 %v2067, %v2138
        %v2260 = vsub.f32 %v2068, %v2140
        %v2261 = vsub.f32 %v2069, %v2142
        %v2262 = vsub.f32 %v2070, %v2144
        %v2263 = vsub.f32 %v2071, %v2146
        %v2264 = vsub.f32 %v2072, %v2148
        %v2265 = vsub.f32 %v2073, %v2150
        %v2266 = vsub.f32 %v2074, %v2152
        %v2267 = vsub.f32 %v2075, %v2154
        %v2268 = vsub.f32 %v2076, %v2156
        %v2269 = vsub.f32 %v2077, %v2158
        %v2270 = vsub.f32 %v2078, %v2160
        %v2271 = vsub.f32 %v2079, %v2162
        %v2272 = vsub.f32 %v2080, %v2164
        %v2273 = vsub.f32 %v2081, %v2166
        %v2274 = vsub.f32 %v2082, %v2168
        %v2275 = vsub.f32 %v2083, %v2170
        %v2276 = vsub.f32 %v2084, %v2172
        %v2277 = vsub.f32 %v2085, %v2174
        %v2278 = vsub.f32 %v2086, %v2176
        %v2279 = vsub.f32 %v2087, %v2178
        %v2280 = vsub.f32 %v2088, %v2180
        %v2281 = vsub.f32 %v2089, %v2182
        %v2282 = vsub.f32 %v2090, %v2184
        %v2283 = vsub.f32 %v2091, %v2186
        %v2284 = vsub.f32 %v2092, %v2188
        %v2285 = vsub.f32 %v2093, %v2190
        %v2286 = vsub.f32 %v2094, %v2192
        %v2287 = vsub.f32 %v2095, %v2194
        %v2288 = vsub.f32 %v2096, %v2196
        %v2289 = vsub.f32 %v2097, %v2198
        %v2290 = vsub.f32 %v2098, %v2200
        %v2291 = vsub.f32 %v2099, %v2202
        %v2292 = vsub.f32 %v2100, %v2204
        %v2293 = vsub.f32 %v2101, %v2206
        %v2294 = vsub.f32 %v2102, %v2208
        %v2295 = vsub.f32 %v2103, %v2210
        %v2296 = vsub.f32 %v2104, %v2212
        %v2297 = vsub.f32 %v2105, %v2214
        %v2298 = vsub.f32 %v2106, %v2216
        %v2299 = vsub.f32 %v2107, %v2218
        %v2300 = vsub.f32 %v2108, %v2220
        %v2301 = vsub.f32 %v2109, %v2222
        %v2302 = vsub.f32 %v2110, %v2224
        %v2303 = vsub.f32 %v2111, %v2226
        %v2304 = vsub.f32 %v2112, %v2228
        %v2305 = vsub.f32 %v2113, %v2230
        %v2306 = vsub.f32 %v2114, %v2232
        %v2307 = vsub.f32 %v2115, %v2234
        %v2308 = vsub.f32 %v2116, %v2236
        %v2309 = vsub.f32 %v2117, %v2238
        %v2310 = vsub.f32 %v2118, %v2240
        %v2311 = vsub.f32 %v2119, %v2242
        %v2312 = vsub.f32 %v2120, %v2244
        %v2313 = vsub.f32 %v2121, %v2246
        %v2314 = vsub.f32 %v2122, %v2248
        %v2315 = vsub.f32 %v2123, %v2250
        %v2316 = vsub.f32 %v2124, %v2252
        %v2317 = vmul.f32 %v2253, 1.442695
        %v2318 = vpow.pop %v2317
        %v2319 = vmul.f32 %v2254, 1.442695
        %v2320 = vpow.pop %v2319
        %v2321 = vmul.f32 %v2255, 1.442695
        %v2322 = vpow.pop %v2321
        %v2323 = vmul.f32 %v2256, 1.442695
        %v2324 = vpow.pop %v2323
        %v2325 = vmul.f32 %v2257, 1.442695
        %v2326 = vpow.pop %v2325
        %v2327 = vmul.f32 %v2258, 1.442695
        %v2328 = vpow.pop %v2327
        %v2329 = vmul.f32 %v2259, 1.442695
        %v2330 = vpow.pop %v2329
        %v2331 = vmul.f32 %v2260, 1.442695
        %v2332 = vpow.pop %v2331
        %v2333 = vmul.f32 %v2261, 1.442695
        %v2334 = vpow.pop %v2333
        %v2335 = vmul.f32 %v2262, 1.442695
        %v2336 = vpow.pop %v2335
        %v2337 = vmul.f32 %v2263, 1.442695
        %v2338 = vpow.pop %v2337
        %v2339 = vmul.f32 %v2264, 1.442695
        %v2340 = vpow.pop %v2339
        %v2341 = vmul.f32 %v2265, 1.442695
        %v2342 = vpow.pop %v2341
        %v2343 = vmul.f32 %v2266, 1.442695
        %v2344 = vpow.pop %v2343
        %v2345 = vmul.f32 %v2267, 1.442695
        %v2346 = vpow.pop %v2345
        %v2347 = vmul.f32 %v2268, 1.442695
        %v2348 = vpow.pop %v2347
        %v2349 = vmul.f32 %v2269, 1.442695
        %v2350 = vpow.pop %v2349
        %v2351 = vmul.f32 %v2270, 1.442695
        %v2352 = vpow.pop %v2351
        %v2353 = vmul.f32 %v2271, 1.442695
        %v2354 = vpow.pop %v2353
        %v2355 = vmul.f32 %v2272, 1.442695
        %v2356 = vpow.pop %v2355
        %v2357 = vmul.f32 %v2273, 1.442695
        %v2358 = vpow.pop %v2357
        %v2359 = vmul.f32 %v2274, 1.442695
        %v2360 = vpow.pop %v2359
        %v2361 = vmul.f32 %v2275, 1.442695
        %v2362 = vpow.pop %v2361
        %v2363 = vmul.f32 %v2276, 1.442695
        %v2364 = vpow.pop %v2363
        %v2365 = vmul.f32 %v2277, 1.442695
        %v2366 = vpow.pop %v2365
        %v2367 = vmul.f32 %v2278, 1.442695
        %v2368 = vpow.pop %v2367
        %v2369 = vmul.f32 %v2279, 1.442695
        %v2370 = vpow.pop %v2369
        %v2371 = vmul.f32 %v2280, 1.442695
        %v2372 = vpow.pop %v2371
        %v2373 = vmul.f32 %v2281, 1.442695
        %v2374 = vpow.pop %v2373
        %v2375 = vmul.f32 %v2282, 1.442695
        %v2376 = vpow.pop %v2375
        %v2377 = vmul.f32 %v2283, 1.442695
        %v2378 = vpow.pop %v2377
        %v2379 = vmul.f32 %v2284, 1.442695
        %v2380 = vpow.pop %v2379
        %v2381 = vmul.f32 %v2285, 1.442695
        %v2382 = vpow.pop %v2381
        %v2383 = vmul.f32 %v2286, 1.442695
        %v2384 = vpow.pop %v2383
        %v2385 = vmul.f32 %v2287, 1.442695
        %v2386 = vpow.pop %v2385
        %v2387 = vmul.f32 %v2288, 1.442695
        %v2388 = vpow.pop %v2387
        %v2389 = vmul.f32 %v2289, 1.442695
        %v2390 = vpow.pop %v2389
        %v2391 = vmul.f32 %v2290, 1.442695
        %v2392 = vpow.pop %v2391
        %v2393 = vmul.f32 %v2291, 1.442695
        %v2394 = vpow.pop %v2393
        %v2395 = vmul.f32 %v2292, 1.442695
        %v2396 = vpow.pop %v2395
        %v2397 = vmul.f32 %v2293, 1.442695
        %v2398 = vpow.pop %v2397
        %v2399 = vmul.f32 %v2294, 1.442695
        %v2400 = vpow.pop %v2399
        %v2401 = vmul.f32 %v2295, 1.442695
        %v2402 = vpow.pop %v2401
        %v2403 = vmul.f32 %v2296, 1.442695
        %v2404 = vpow.pop %v2403
        %v2405 = vmul.f32 %v2297, 1.442695
        %v2406 = vpow.pop %v2405
        %v2407 = vmul.f32 %v2298, 1.442695
        %v2408 = vpow.pop %v2407
        %v2409 = vmul.f32 %v2299, 1.442695
        %v2410 = vpow.pop %v2409
        %v2411 = vmul.f32 %v2300, 1.442695
        %v2412 = vpow.pop %v2411
        %v2413 = vmul.f32 %v2301, 1.442695
        %v2414 = vpow.pop %v2413
        %v2415 = vmul.f32 %v2302, 1.442695
        %v2416 = vpow.pop %v2415
        %v2417 = vmul.f32 %v2303, 1.442695
        %v2418 = vpow.pop %v2417
        %v2419 = vmul.f32 %v2304, 1.442695
        %v2420 = vpow.pop %v2419
        %v2421 = vmul.f32 %v2305, 1.442695
        %v2422 = vpow.pop %v2421
        %v2423 = vmul.f32 %v2306, 1.442695
        %v2424 = vpow.pop %v2423
        %v2425 = vmul.f32 %v2307, 1.442695
        %v2426 = vpow.pop %v2425
        %v2427 = vmul.f32 %v2308, 1.442695
        %v2428 = vpow.pop %v2427
        %v2429 = vmul.f32 %v2309, 1.442695
        %v2430 = vpow.pop %v2429
        %v2431 = vmul.f32 %v2310, 1.442695
        %v2432 = vpow.pop %v2431
        %v2433 = vmul.f32 %v2311, 1.442695
        %v2434 = vpow.pop %v2433
        %v2435 = vmul.f32 %v2312, 1.442695
        %v2436 = vpow.pop %v2435
        %v2437 = vmul.f32 %v2313, 1.442695
        %v2438 = vpow.pop %v2437
        %v2439 = vmul.f32 %v2314, 1.442695
        %v2440 = vpow.pop %v2439
        %v2441 = vmul.f32 %v2315, 1.442695
        %v2442 = vpow.pop %v2441
        %v2443 = vmul.f32 %v2316, 1.442695
        %v2444 = vpow.pop %v2443
        %2445 = vadd.xlane.f32.xlu0 %v2318
        %v2446 = vpop.xlane.xlu0 %2445
        %2447 = vadd.xlane.f32.xlu0 %v2320
        %v2448 = vpop.xlane.xlu0 %2447
        %2449 = vadd.xlane.f32.xlu0 %v2322
        %v2450 = vpop.xlane.xlu0 %2449
        %2451 = vadd.xlane.f32.xlu0 %v2324
        %v2452 = vpop.xlane.xlu0 %2451
        %2453 = vadd.xlane.f32.xlu0 %v2326
        %v2454 = vpop.xlane.xlu0 %2453
        %2455 = vadd.xlane.f32.xlu0 %v2328
        %v2456 = vpop.xlane.xlu0 %2455
        %2457 = vadd.xlane.f32.xlu0 %v2330
        %v2458 = vpop.xlane.xlu0 %2457
        %2459 = vadd.xlane.f32.xlu0 %v2332
        %v2460 = vpop.xlane.xlu0 %2459
        %2461 = vadd.xlane.f32.xlu0 %v2334
        %v2462 = vpop.xlane.xlu0 %2461
        %2463 = vadd.xlane.f32.xlu0 %v2336
        %v2464 = vpop.xlane.xlu0 %2463
        %2465 = vadd.xlane.f32.xlu0 %v2338
        %v2466 = vpop.xlane.xlu0 %2465
        %2467 = vadd.xlane.f32.xlu0 %v2340
        %v2468 = vpop.xlane.xlu0 %2467
        %2469 = vadd.xlane.f32.xlu0 %v2342
        %v2470 = vpop.xlane.xlu0 %2469
        %2471 = vadd.xlane.f32.xlu0 %v2344
        %v2472 = vpop.xlane.xlu0 %2471
        %2473 = vadd.xlane.f32.xlu0 %v2346
        %v2474 = vpop.xlane.xlu0 %2473
        %2475 = vadd.xlane.f32.xlu0 %v2348
        %v2476 = vpop.xlane.xlu0 %2475
        %2477 = vadd.xlane.f32.xlu0 %v2350
        %v2478 = vpop.xlane.xlu0 %2477
        %2479 = vadd.xlane.f32.xlu0 %v2352
        %v2480 = vpop.xlane.xlu0 %2479
        %2481 = vadd.xlane.f32.xlu0 %v2354
        %v2482 = vpop.xlane.xlu0 %2481
        %2483 = vadd.xlane.f32.xlu0 %v2356
        %v2484 = vpop.xlane.xlu0 %2483
        %2485 = vadd.xlane.f32.xlu0 %v2358
        %v2486 = vpop.xlane.xlu0 %2485
        %2487 = vadd.xlane.f32.xlu0 %v2360
        %v2488 = vpop.xlane.xlu0 %2487
        %2489 = vadd.xlane.f32.xlu0 %v2362
        %v2490 = vpop.xlane.xlu0 %2489
        %2491 = vadd.xlane.f32.xlu0 %v2364
        %v2492 = vpop.xlane.xlu0 %2491
        %2493 = vadd.xlane.f32.xlu0 %v2366
        %v2494 = vpop.xlane.xlu0 %2493
        %2495 = vadd.xlane.f32.xlu0 %v2368
        %v2496 = vpop.xlane.xlu0 %2495
        %2497 = vadd.xlane.f32.xlu0 %v2370
        %v2498 = vpop.xlane.xlu0 %2497
        %2499 = vadd.xlane.f32.xlu0 %v2372
        %v2500 = vpop.xlane.xlu0 %2499
        %2501 = vadd.xlane.f32.xlu0 %v2374
        %v2502 = vpop.xlane.xlu0 %2501
        %2503 = vadd.xlane.f32.xlu0 %v2376
        %v2504 = vpop.xlane.xlu0 %2503
        %2505 = vadd.xlane.f32.xlu0 %v2378
        %v2506 = vpop.xlane.xlu0 %2505
        %2507 = vadd.xlane.f32.xlu0 %v2380
        %v2508 = vpop.xlane.xlu0 %2507
        %2509 = vadd.xlane.f32.xlu0 %v2382
        %v2510 = vpop.xlane.xlu0 %2509
        %2511 = vadd.xlane.f32.xlu0 %v2384
        %v2512 = vpop.xlane.xlu0 %2511
        %2513 = vadd.xlane.f32.xlu0 %v2386
        %v2514 = vpop.xlane.xlu0 %2513
        %2515 = vadd.xlane.f32.xlu0 %v2388
        %v2516 = vpop.xlane.xlu0 %2515
        %2517 = vadd.xlane.f32.xlu0 %v2390
        %v2518 = vpop.xlane.xlu0 %2517
        %2519 = vadd.xlane.f32.xlu0 %v2392
        %v2520 = vpop.xlane.xlu0 %2519
        %2521 = vadd.xlane.f32.xlu0 %v2394
        %v2522 = vpop.xlane.xlu0 %2521
        %2523 = vadd.xlane.f32.xlu0 %v2396
        %v2524 = vpop.xlane.xlu0 %2523
        %2525 = vadd.xlane.f32.xlu0 %v2398
        %v2526 = vpop.xlane.xlu0 %2525
        %2527 = vadd.xlane.f32.xlu0 %v2400
        %v2528 = vpop.xlane.xlu0 %2527
        %2529 = vadd.xlane.f32.xlu0 %v2402
        %v2530 = vpop.xlane.xlu0 %2529
        %2531 = vadd.xlane.f32.xlu0 %v2404
        %v2532 = vpop.xlane.xlu0 %2531
        %2533 = vadd.xlane.f32.xlu0 %v2406
        %v2534 = vpop.xlane.xlu0 %2533
        %2535 = vadd.xlane.f32.xlu0 %v2408
        %v2536 = vpop.xlane.xlu0 %2535
        %2537 = vadd.xlane.f32.xlu0 %v2410
        %v2538 = vpop.xlane.xlu0 %2537
        %2539 = vadd.xlane.f32.xlu0 %v2412
        %v2540 = vpop.xlane.xlu0 %2539
        %2541 = vadd.xlane.f32.xlu0 %v2414
        %v2542 = vpop.xlane.xlu0 %2541
        %2543 = vadd.xlane.f32.xlu0 %v2416
        %v2544 = vpop.xlane.xlu0 %2543
        %2545 = vadd.xlane.f32.xlu0 %v2418
        %v2546 = vpop.xlane.xlu0 %2545
        %2547 = vadd.xlane.f32.xlu0 %v2420
        %v2548 = vpop.xlane.xlu0 %2547
        %2549 = vadd.xlane.f32.xlu0 %v2422
        %v2550 = vpop.xlane.xlu0 %2549
        %2551 = vadd.xlane.f32.xlu0 %v2424
        %v2552 = vpop.xlane.xlu0 %2551
        %2553 = vadd.xlane.f32.xlu0 %v2426
        %v2554 = vpop.xlane.xlu0 %2553
        %2555 = vadd.xlane.f32.xlu0 %v2428
        %v2556 = vpop.xlane.xlu0 %2555
        %2557 = vadd.xlane.f32.xlu0 %v2430
        %v2558 = vpop.xlane.xlu0 %2557
        %2559 = vadd.xlane.f32.xlu0 %v2432
        %v2560 = vpop.xlane.xlu0 %2559
        %2561 = vadd.xlane.f32.xlu0 %v2434
        %v2562 = vpop.xlane.xlu0 %2561
        %2563 = vadd.xlane.f32.xlu0 %v2436
        %v2564 = vpop.xlane.xlu0 %2563
        %2565 = vadd.xlane.f32.xlu0 %v2438
        %v2566 = vpop.xlane.xlu0 %2565
        %2567 = vadd.xlane.f32.xlu0 %v2440
        %v2568 = vpop.xlane.xlu0 %2567
        %2569 = vadd.xlane.f32.xlu0 %v2442
        %v2570 = vpop.xlane.xlu0 %2569
        %2571 = vadd.xlane.f32.xlu0 %v2444
        %v2572 = vpop.xlane.xlu0 %2571
        %v2573 = vrcp.pop %v2446
        %v2574 = vmul.f32 1.0, %v2573
        %v2575 = vrcp.pop %v2448
        %v2576 = vmul.f32 1.0, %v2575
        %v2577 = vrcp.pop %v2450
        %v2578 = vmul.f32 1.0, %v2577
        %v2579 = vrcp.pop %v2452
        %v2580 = vmul.f32 1.0, %v2579
        %v2581 = vrcp.pop %v2454
        %v2582 = vmul.f32 1.0, %v2581
        %v2583 = vrcp.pop %v2456
        %v2584 = vmul.f32 1.0, %v2583
        %v2585 = vrcp.pop %v2458
        %v2586 = vmul.f32 1.0, %v2585
        %v2587 = vrcp.pop %v2460
        %v2588 = vmul.f32 1.0, %v2587
        %v2589 = vrcp.pop %v2462
        %v2590 = vmul.f32 1.0, %v2589
        %v2591 = vrcp.pop %v2464
        %v2592 = vmul.f32 1.0, %v2591
        %v2593 = vrcp.pop %v2466
        %v2594 = vmul.f32 1.0, %v2593
        %v2595 = vrcp.pop %v2468
        %v2596 = vmul.f32 1.0, %v2595
        %v2597 = vrcp.pop %v2470
        %v2598 = vmul.f32 1.0, %v2597
        %v2599 = vrcp.pop %v2472
        %v2600 = vmul.f32 1.0, %v2599
        %v2601 = vrcp.pop %v2474
        %v2602 = vmul.f32 1.0, %v2601
        %v2603 = vrcp.pop %v2476
        %v2604 = vmul.f32 1.0, %v2603
        %v2605 = vrcp.pop %v2478
        %v2606 = vmul.f32 1.0, %v2605
        %v2607 = vrcp.pop %v2480
        %v2608 = vmul.f32 1.0, %v2607
        %v2609 = vrcp.pop %v2482
        %v2610 = vmul.f32 1.0, %v2609
        %v2611 = vrcp.pop %v2484
        %v2612 = vmul.f32 1.0, %v2611
        %v2613 = vrcp.pop %v2486
        %v2614 = vmul.f32 1.0, %v2613
        %v2615 = vrcp.pop %v2488
        %v2616 = vmul.f32 1.0, %v2615
        %v2617 = vrcp.pop %v2490
        %v2618 = vmul.f32 1.0, %v2617
        %v2619 = vrcp.pop %v2492
        %v2620 = vmul.f32 1.0, %v2619
        %v2621 = vrcp.pop %v2494
        %v2622 = vmul.f32 1.0, %v2621
        %v2623 = vrcp.pop %v2496
        %v2624 = vmul.f32 1.0, %v2623
        %v2625 = vrcp.pop %v2498
        %v2626 = vmul.f32 1.0, %v2625
        %v2627 = vrcp.pop %v2500
        %v2628 = vmul.f32 1.0, %v2627
        %v2629 = vrcp.pop %v2502
        %v2630 = vmul.f32 1.0, %v2629
        %v2631 = vrcp.pop %v2504
        %v2632 = vmul.f32 1.0, %v2631
        %v2633 = vrcp.pop %v2506
        %v2634 = vmul.f32 1.0, %v2633
        %v2635 = vrcp.pop %v2508
        %v2636 = vmul.f32 1.0, %v2635
        %v2637 = vrcp.pop %v2510
        %v2638 = vmul.f32 1.0, %v2637
        %v2639 = vrcp.pop %v2512
        %v2640 = vmul.f32 1.0, %v2639
        %v2641 = vrcp.pop %v2514
        %v2642 = vmul.f32 1.0, %v2641
        %v2643 = vrcp.pop %v2516
        %v2644 = vmul.f32 1.0, %v2643
        %v2645 = vrcp.pop %v2518
        %v2646 = vmul.f32 1.0, %v2645
        %v2647 = vrcp.pop %v2520
        %v2648 = vmul.f32 1.0, %v2647
        %v2649 = vrcp.pop %v2522
        %v2650 = vmul.f32 1.0, %v2649
        %v2651 = vrcp.pop %v2524
        %v2652 = vmul.f32 1.0, %v2651
        %v2653 = vrcp.pop %v2526
        %v2654 = vmul.f32 1.0, %v2653
        %v2655 = vrcp.pop %v2528
        %v2656 = vmul.f32 1.0, %v2655
        %v2657 = vrcp.pop %v2530
        %v2658 = vmul.f32 1.0, %v2657
        %v2659 = vrcp.pop %v2532
        %v2660 = vmul.f32 1.0, %v2659
        %v2661 = vrcp.pop %v2534
        %v2662 = vmul.f32 1.0, %v2661
        %v2663 = vrcp.pop %v2536
        %v2664 = vmul.f32 1.0, %v2663
        %v2665 = vrcp.pop %v2538
        %v2666 = vmul.f32 1.0, %v2665
        %v2667 = vrcp.pop %v2540
        %v2668 = vmul.f32 1.0, %v2667
        %v2669 = vrcp.pop %v2542
        %v2670 = vmul.f32 1.0, %v2669
        %v2671 = vrcp.pop %v2544
        %v2672 = vmul.f32 1.0, %v2671
        %v2673 = vrcp.pop %v2546
        %v2674 = vmul.f32 1.0, %v2673
        %v2675 = vrcp.pop %v2548
        %v2676 = vmul.f32 1.0, %v2675
        %v2677 = vrcp.pop %v2550
        %v2678 = vmul.f32 1.0, %v2677
        %v2679 = vrcp.pop %v2552
        %v2680 = vmul.f32 1.0, %v2679
        %v2681 = vrcp.pop %v2554
        %v2682 = vmul.f32 1.0, %v2681
        %v2683 = vrcp.pop %v2556
        %v2684 = vmul.f32 1.0, %v2683
        %v2685 = vrcp.pop %v2558
        %v2686 = vmul.f32 1.0, %v2685
        %v2687 = vrcp.pop %v2560
        %v2688 = vmul.f32 1.0, %v2687
        %v2689 = vrcp.pop %v2562
        %v2690 = vmul.f32 1.0, %v2689
        %v2691 = vrcp.pop %v2564
        %v2692 = vmul.f32 1.0, %v2691
        %v2693 = vrcp.pop %v2566
        %v2694 = vmul.f32 1.0, %v2693
        %v2695 = vrcp.pop %v2568
        %v2696 = vmul.f32 1.0, %v2695
        %v2697 = vrcp.pop %v2570
        %v2698 = vmul.f32 1.0, %v2697
        %v2699 = vrcp.pop %v2572
        %v2700 = vmul.f32 1.0, %v2699
        %v2701 = vmul.f32 %v2318, %v2574
        %v2702 = vmul.f32 %v2320, %v2576
        %v2703 = vmul.f32 %v2322, %v2578
        %v2704 = vmul.f32 %v2324, %v2580
        %v2705 = vmul.f32 %v2326, %v2582
        %v2706 = vmul.f32 %v2328, %v2584
        %v2707 = vmul.f32 %v2330, %v2586
        %v2708 = vmul.f32 %v2332, %v2588
        %v2709 = vmul.f32 %v2334, %v2590
        %v2710 = vmul.f32 %v2336, %v2592
        %v2711 = vmul.f32 %v2338, %v2594
        %v2712 = vmul.f32 %v2340, %v2596
        %v2713 = vmul.f32 %v2342, %v2598
        %v2714 = vmul.f32 %v2344, %v2600
        %v2715 = vmul.f32 %v2346, %v2602
        %v2716 = vmul.f32 %v2348, %v2604
        %v2717 = vmul.f32 %v2350, %v2606
        %v2718 = vmul.f32 %v2352, %v2608
        %v2719 = vmul.f32 %v2354, %v2610
        %v2720 = vmul.f32 %v2356, %v2612
        %v2721 = vmul.f32 %v2358, %v2614
        %v2722 = vmul.f32 %v2360, %v2616
        %v2723 = vmul.f32 %v2362, %v2618
        %v2724 = vmul.f32 %v2364, %v2620
        %v2725 = vmul.f32 %v2366, %v2622
        %v2726 = vmul.f32 %v2368, %v2624
        %v2727 = vmul.f32 %v2370, %v2626
        %v2728 = vmul.f32 %v2372, %v2628
        %v2729 = vmul.f32 %v2374, %v2630
        %v2730 = vmul.f32 %v2376, %v2632
        %v2731 = vmul.f32 %v2378, %v2634
        %v2732 = vmul.f32 %v2380, %v2636
        %v2733 = vmul.f32 %v2382, %v2638
        %v2734 = vmul.f32 %v2384, %v2640
        %v2735 = vmul.f32 %v2386, %v2642
        %v2736 = vmul.f32 %v2388, %v2644
        %v2737 = vmul.f32 %v2390, %v2646
        %v2738 = vmul.f32 %v2392, %v2648
        %v2739 = vmul.f32 %v2394, %v2650
        %v2740 = vmul.f32 %v2396, %v2652
        %v2741 = vmul.f32 %v2398, %v2654
        %v2742 = vmul.f32 %v2400, %v2656
        %v2743 = vmul.f32 %v2402, %v2658
        %v2744 = vmul.f32 %v2404, %v2660
        %v2745 = vmul.f32 %v2406, %v2662
        %v2746 = vmul.f32 %v2408, %v2664
        %v2747 = vmul.f32 %v2410, %v2666
        %v2748 = vmul.f32 %v2412, %v2668
        %v2749 = vmul.f32 %v2414, %v2670
        %v2750 = vmul.f32 %v2416, %v2672
        %v2751 = vmul.f32 %v2418, %v2674
        %v2752 = vmul.f32 %v2420, %v2676
        %v2753 = vmul.f32 %v2422, %v2678
        %v2754 = vmul.f32 %v2424, %v2680
        %v2755 = vmul.f32 %v2426, %v2682
        %v2756 = vmul.f32 %v2428, %v2684
        %v2757 = vmul.f32 %v2430, %v2686
        %v2758 = vmul.f32 %v2432, %v2688
        %v2759 = vmul.f32 %v2434, %v2690
        %v2760 = vmul.f32 %v2436, %v2692
        %v2761 = vmul.f32 %v2438, %v2694
        %v2762 = vmul.f32 %v2440, %v2696
        %v2763 = vmul.f32 %v2442, %v2698
        %v2764 = vmul.f32 %v2444, %v2700
        %v2765 = vpack.c.bf16 %v2702, %v2701
        %v2766 = vpack.c.bf16 %v2704, %v2703
        %v2767 = vpack.c.bf16 %v2706, %v2705
        %v2768 = vpack.c.bf16 %v2708, %v2707
        %v2769 = vpack.c.bf16 %v2710, %v2709
        %v2770 = vpack.c.bf16 %v2712, %v2711
        %v2771 = vpack.c.bf16 %v2714, %v2713
        %v2772 = vpack.c.bf16 %v2716, %v2715
        %v2773 = vpack.c.bf16 %v2718, %v2717
        %v2774 = vpack.c.bf16 %v2720, %v2719
        %v2775 = vpack.c.bf16 %v2722, %v2721
        %v2776 = vpack.c.bf16 %v2724, %v2723
        %v2777 = vpack.c.bf16 %v2726, %v2725
        %v2778 = vpack.c.bf16 %v2728, %v2727
        %v2779 = vpack.c.bf16 %v2730, %v2729
        %v2780 = vpack.c.bf16 %v2732, %v2731
        %v2781 = vpack.c.bf16 %v2734, %v2733
        %v2782 = vpack.c.bf16 %v2736, %v2735
        %v2783 = vpack.c.bf16 %v2738, %v2737
        %v2784 = vpack.c.bf16 %v2740, %v2739
        %v2785 = vpack.c.bf16 %v2742, %v2741
        %v2786 = vpack.c.bf16 %v2744, %v2743
        %v2787 = vpack.c.bf16 %v2746, %v2745
        %v2788 = vpack.c.bf16 %v2748, %v2747
        %v2789 = vpack.c.bf16 %v2750, %v2749
        %v2790 = vpack.c.bf16 %v2752, %v2751
        %v2791 = vpack.c.bf16 %v2754, %v2753
        %v2792 = vpack.c.bf16 %v2756, %v2755
        %v2793 = vpack.c.bf16 %v2758, %v2757
        %v2794 = vpack.c.bf16 %v2760, %v2759
        %v2795 = vpack.c.bf16 %v2762, %v2761
        %v2796 = vpack.c.bf16 %v2764, %v2763
        %v2829 = vunpack.c.l.b16 %v2765
        %v2830 = vunpack.c.h.b16 %v2765
        %v2831 = vunpack.c.l.b16 %v2766
        %v2832 = vunpack.c.h.b16 %v2766
        %v2833 = vunpack.c.l.b16 %v2767
        %v2834 = vunpack.c.h.b16 %v2767
        %v2835 = vunpack.c.l.b16 %v2768
        %v2836 = vunpack.c.h.b16 %v2768
        %v2837 = vunpack.c.l.b16 %v2769
        %v2838 = vunpack.c.h.b16 %v2769
        %v2839 = vunpack.c.l.b16 %v2770
        %v2840 = vunpack.c.h.b16 %v2770
        %v2841 = vunpack.c.l.b16 %v2771
        %v2842 = vunpack.c.h.b16 %v2771
        %v2843 = vunpack.c.l.b16 %v2772
        %v2844 = vunpack.c.h.b16 %v2772
        %v2845 = vunpack.c.l.b16 %v2773
        %v2846 = vunpack.c.h.b16 %v2773
        %v2847 = vunpack.c.l.b16 %v2774
        %v2848 = vunpack.c.h.b16 %v2774
        %v2849 = vunpack.c.l.b16 %v2775
        %v2850 = vunpack.c.h.b16 %v2775
        %v2851 = vunpack.c.l.b16 %v2776
        %v2852 = vunpack.c.h.b16 %v2776
        %v2853 = vunpack.c.l.b16 %v2777
        %v2854 = vunpack.c.h.b16 %v2777
        %v2855 = vunpack.c.l.b16 %v2778
        %v2856 = vunpack.c.h.b16 %v2778
        %v2857 = vunpack.c.l.b16 %v2779
        %v2858 = vunpack.c.h.b16 %v2779
        %v2859 = vunpack.c.l.b16 %v2780
        %v2860 = vunpack.c.h.b16 %v2780
        %v2861 = vunpack.c.l.b16 %v2781
        %v2862 = vunpack.c.h.b16 %v2781
        %v2863 = vunpack.c.l.b16 %v2782
        %v2864 = vunpack.c.h.b16 %v2782
        %v2865 = vunpack.c.l.b16 %v2783
        %v2866 = vunpack.c.h.b16 %v2783
        %v2867 = vunpack.c.l.b16 %v2784
        %v2868 = vunpack.c.h.b16 %v2784
        %v2869 = vunpack.c.l.b16 %v2785
        %v2870 = vunpack.c.h.b16 %v2785
        %v2871 = vunpack.c.l.b16 %v2786
        %v2872 = vunpack.c.h.b16 %v2786
        %v2873 = vunpack.c.l.b16 %v2787
        %v2874 = vunpack.c.h.b16 %v2787
        %v2875 = vunpack.c.l.b16 %v2788
        %v2876 = vunpack.c.h.b16 %v2788
        %v2877 = vunpack.c.l.b16 %v2789
        %v2878 = vunpack.c.h.b16 %v2789
        %v2879 = vunpack.c.l.b16 %v2790
        %v2880 = vunpack.c.h.b16 %v2790
        %v2881 = vunpack.c.l.b16 %v2791
        %v2882 = vunpack.c.h.b16 %v2791
        %v2883 = vunpack.c.l.b16 %v2792
        %v2884 = vunpack.c.h.b16 %v2792
        %v2885 = vunpack.c.l.b16 %v2793
        %v2886 = vunpack.c.h.b16 %v2793
        %v2887 = vunpack.c.l.b16 %v2794
        %v2888 = vunpack.c.h.b16 %v2794
        %v2889 = vunpack.c.l.b16 %v2795
        %v2890 = vunpack.c.h.b16 %v2795
        %v2891 = vunpack.c.l.b16 %v2796
        %v2892 = vunpack.c.h.b16 %v2796
        %v2893 = vpack.c.b16 %v2829, %v2829
        %v2894 = vpack.c.b16 %v2830, %v2830
        %v2895 = vpack.c.b16 %v2831, %v2831
        %v2896 = vpack.c.b16 %v2832, %v2832
        %v2897 = vpack.c.b16 %v2833, %v2833
        %v2898 = vpack.c.b16 %v2834, %v2834
        %v2899 = vpack.c.b16 %v2835, %v2835
        %v2900 = vpack.c.b16 %v2836, %v2836
        %v2901 = vpack.c.b16 %v2837, %v2837
        %v2902 = vpack.c.b16 %v2838, %v2838
        %v2903 = vpack.c.b16 %v2839, %v2839
        %v2904 = vpack.c.b16 %v2840, %v2840
        %v2905 = vpack.c.b16 %v2841, %v2841
        %v2906 = vpack.c.b16 %v2842, %v2842
        %v2907 = vpack.c.b16 %v2843, %v2843
        %v2908 = vpack.c.b16 %v2844, %v2844
        %v2909 = vpack.c.b16 %v2845, %v2845
        %v2910 = vpack.c.b16 %v2846, %v2846
        %v2911 = vpack.c.b16 %v2847, %v2847
        %v2912 = vpack.c.b16 %v2848, %v2848
        %v2913 = vpack.c.b16 %v2849, %v2849
        %v2914 = vpack.c.b16 %v2850, %v2850
        %v2915 = vpack.c.b16 %v2851, %v2851
        %v2916 = vpack.c.b16 %v2852, %v2852
        %v2917 = vpack.c.b16 %v2853, %v2853
        %v2918 = vpack.c.b16 %v2854, %v2854
        %v2919 = vpack.c.b16 %v2855, %v2855
        %v2920 = vpack.c.b16 %v2856, %v2856
        %v2921 = vpack.c.b16 %v2857, %v2857
        %v2922 = vpack.c.b16 %v2858, %v2858
        %v2923 = vpack.c.b16 %v2859, %v2859
        %v2924 = vpack.c.b16 %v2860, %v2860
        %v2925 = vpack.c.b16 %v2861, %v2861
        %v2926 = vpack.c.b16 %v2862, %v2862
        %v2927 = vpack.c.b16 %v2863, %v2863
        %v2928 = vpack.c.b16 %v2864, %v2864
        %v2929 = vpack.c.b16 %v2865, %v2865
        %v2930 = vpack.c.b16 %v2866, %v2866
        %v2931 = vpack.c.b16 %v2867, %v2867
        %v2932 = vpack.c.b16 %v2868, %v2868
        %v2933 = vpack.c.b16 %v2869, %v2869
        %v2934 = vpack.c.b16 %v2870, %v2870
        %v2935 = vpack.c.b16 %v2871, %v2871
        %v2936 = vpack.c.b16 %v2872, %v2872
        %v2937 = vpack.c.b16 %v2873, %v2873
        %v2938 = vpack.c.b16 %v2874, %v2874
        %v2939 = vpack.c.b16 %v2875, %v2875
        %v2940 = vpack.c.b16 %v2876, %v2876
        %v2941 = vpack.c.b16 %v2877, %v2877
        %v2942 = vpack.c.b16 %v2878, %v2878
        %v2943 = vpack.c.b16 %v2879, %v2879
        %v2944 = vpack.c.b16 %v2880, %v2880
        %v2945 = vpack.c.b16 %v2881, %v2881
        %v2946 = vpack.c.b16 %v2882, %v2882
        %v2947 = vpack.c.b16 %v2883, %v2883
        %v2948 = vpack.c.b16 %v2884, %v2884
        %v2949 = vpack.c.b16 %v2885, %v2885
        %v2950 = vpack.c.b16 %v2886, %v2886
        %v2951 = vpack.c.b16 %v2887, %v2887
        %v2952 = vpack.c.b16 %v2888, %v2888
        %v2953 = vpack.c.b16 %v2889, %v2889
        %v2954 = vpack.c.b16 %v2890, %v2890
        %v2955 = vpack.c.b16 %v2891, %v2891
        %v2956 = vpack.c.b16 %v2892, %v2892
        %3021 = vst [vmem:[%s515] sm:$0xf] %v2893
        %3022 = vst [vmem:[%s515 + $0x4] sm:$0xf] %v2894
        %3023 = vst [vmem:[%s515 + $0x8] sm:$0xf] %v2895
        %3024 = vst [vmem:[%s515 + $0xc] sm:$0xf] %v2896
        %3025 = vst [vmem:[%s515 + $0x10] sm:$0xf] %v2897
        %3026 = vst [vmem:[%s515 + $0x14] sm:$0xf] %v2898
        %3027 = vst [vmem:[%s515 + $0x18] sm:$0xf] %v2899
        %3028 = vst [vmem:[%s515 + $0x1c] sm:$0xf] %v2900
        %3029 = vst [vmem:[%s515 + $0x20] sm:$0xf] %v2901
        %3030 = vst [vmem:[%s515 + $0x24] sm:$0xf] %v2902
        %3031 = vst [vmem:[%s515 + $0x28] sm:$0xf] %v2903
        %3032 = vst [vmem:[%s515 + $0x2c] sm:$0xf] %v2904
        %3033 = vst [vmem:[%s515 + $0x30] sm:$0xf] %v2905
        %3034 = vst [vmem:[%s515 + $0x34] sm:$0xf] %v2906
        %3035 = vst [vmem:[%s515 + $0x38] sm:$0xf] %v2907
        %3036 = vst [vmem:[%s515 + $0x3c] sm:$0xf] %v2908
        %3037 = vst [vmem:[%s515 + $0x40] sm:$0xf] %v2909
        %3038 = vst [vmem:[%s515 + $0x44] sm:$0xf] %v2910
        %3039 = vst [vmem:[%s515 + $0x48] sm:$0xf] %v2911
        %3040 = vst [vmem:[%s515 + $0x4c] sm:$0xf] %v2912
        %3041 = vst [vmem:[%s515 + $0x50] sm:$0xf] %v2913
        %3042 = vst [vmem:[%s515 + $0x54] sm:$0xf] %v2914
        %3043 = vst [vmem:[%s515 + $0x58] sm:$0xf] %v2915
        %3044 = vst [vmem:[%s515 + $0x5c] sm:$0xf] %v2916
        %3045 = vst [vmem:[%s515 + $0x60] sm:$0xf] %v2917
        %3046 = vst [vmem:[%s515 + $0x64] sm:$0xf] %v2918
        %3047 = vst [vmem:[%s515 + $0x68] sm:$0xf] %v2919
        %3048 = vst [vmem:[%s515 + $0x6c] sm:$0xf] %v2920
        %3049 = vst [vmem:[%s515 + $0x70] sm:$0xf] %v2921
        %3050 = vst [vmem:[%s515 + $0x74] sm:$0xf] %v2922
        %3051 = vst [vmem:[%s515 + $0x78] sm:$0xf] %v2923
        %3052 = vst [vmem:[%s515 + $0x7c] sm:$0xf] %v2924
        %3053 = vst [vmem:[%s515 + $0x80] sm:$0xf] %v2925
        %3054 = vst [vmem:[%s515 + $0x84] sm:$0xf] %v2926
        %3055 = vst [vmem:[%s515 + $0x88] sm:$0xf] %v2927
        %3056 = vst [vmem:[%s515 + $0x8c] sm:$0xf] %v2928
        %3057 = vst [vmem:[%s515 + $0x90] sm:$0xf] %v2929
        %3058 = vst [vmem:[%s515 + $0x94] sm:$0xf] %v2930
        %3059 = vst [vmem:[%s515 + $0x98] sm:$0xf] %v2931
        %3060 = vst [vmem:[%s515 + $0x9c] sm:$0xf] %v2932
        %3061 = vst [vmem:[%s515 + $0xa0] sm:$0xf] %v2933
        %3062 = vst [vmem:[%s515 + $0xa4] sm:$0xf] %v2934
        %3063 = vst [vmem:[%s515 + $0xa8] sm:$0xf] %v2935
        %3064 = vst [vmem:[%s515 + $0xac] sm:$0xf] %v2936
        %3065 = vst [vmem:[%s515 + $0xb0] sm:$0xf] %v2937
        %3066 = vst [vmem:[%s515 + $0xb4] sm:$0xf] %v2938
        %3067 = vst [vmem:[%s515 + $0xb8] sm:$0xf] %v2939
        %3068 = vst [vmem:[%s515 + $0xbc] sm:$0xf] %v2940
        %3069 = vst [vmem:[%s515 + $0xc0] sm:$0xf] %v2941
        %3070 = vst [vmem:[%s515 + $0xc4] sm:$0xf] %v2942
        %3071 = vst [vmem:[%s515 + $0xc8] sm:$0xf] %v2943
        %3072 = vst [vmem:[%s515 + $0xcc] sm:$0xf] %v2944
        %3073 = vst [vmem:[%s515 + $0xd0] sm:$0xf] %v2945
        %3074 = vst [vmem:[%s515 + $0xd4] sm:$0xf] %v2946
        %3075 = vst [vmem:[%s515 + $0xd8] sm:$0xf] %v2947
        %3076 = vst [vmem:[%s515 + $0xdc] sm:$0xf] %v2948
        %3077 = vst [vmem:[%s515 + $0xe0] sm:$0xf] %v2949
        %3078 = vst [vmem:[%s515 + $0xe4] sm:$0xf] %v2950
        %3079 = vst [vmem:[%s515 + $0xe8] sm:$0xf] %v2951
        %3080 = vst [vmem:[%s515 + $0xec] sm:$0xf] %v2952
        %3081 = vst [vmem:[%s515 + $0xf0] sm:$0xf] %v2953
        %3082 = vst [vmem:[%s515 + $0xf4] sm:$0xf] %v2954
        %3083 = vst [vmem:[%s515 + $0xf8] sm:$0xf] %v2955
        %3084 = vst [vmem:[%s515 + $0xfc] sm:$0xf] %v2956
        %v3085 = vld [vmem:[#allocation3] sm:$0xff]
        %v3086 = vld [vmem:[#allocation3 + $0x8] sm:$0xff]
        %v3087 = vld [vmem:[#allocation3 + $0x10] sm:$0xff]
        %v3088 = vld [vmem:[#allocation3 + $0x18] sm:$0xff]
        %v3089 = vld [vmem:[#allocation3 + $0x20] sm:$0xff]
        %v3090 = vld [vmem:[#allocation3 + $0x28] sm:$0xff]
        %v3091 = vld [vmem:[#allocation3 + $0x30] sm:$0xff]
        %v3092 = vld [vmem:[#allocation3 + $0x38] sm:$0xff]
        %v3093 = vld [vmem:[#allocation3 + $0x40] sm:$0xff]
        %v3094 = vld [vmem:[#allocation3 + $0x48] sm:$0xff]
        %v3095 = vld [vmem:[#allocation3 + $0x50] sm:$0xff]
        %v3096 = vld [vmem:[#allocation3 + $0x58] sm:$0xff]
        %v3097 = vld [vmem:[#allocation3 + $0x60] sm:$0xff]
        %v3098 = vld [vmem:[#allocation3 + $0x68] sm:$0xff]
        %v3099 = vld [vmem:[#allocation3 + $0x70] sm:$0xff]
        %v3100 = vld [vmem:[#allocation3 + $0x78] sm:$0xff]
        %v3101 = vld [vmem:[#allocation3 + $0x80] sm:$0xff]
        %v3102 = vld [vmem:[#allocation3 + $0x88] sm:$0xff]
        %v3103 = vld [vmem:[#allocation3 + $0x90] sm:$0xff]
        %v3104 = vld [vmem:[#allocation3 + $0x98] sm:$0xff]
        %v3105 = vld [vmem:[#allocation3 + $0xa0] sm:$0xff]
        %v3106 = vld [vmem:[#allocation3 + $0xa8] sm:$0xff]
        %v3107 = vld [vmem:[#allocation3 + $0xb0] sm:$0xff]
        %v3108 = vld [vmem:[#allocation3 + $0xb8] sm:$0xff]
        %v3109 = vld [vmem:[#allocation3 + $0xc0] sm:$0xff]
        %v3110 = vld [vmem:[#allocation3 + $0xc8] sm:$0xff]
        %v3111 = vld [vmem:[#allocation3 + $0xd0] sm:$0xff]
        %v3112 = vld [vmem:[#allocation3 + $0xd8] sm:$0xff]
        %v3113 = vld [vmem:[#allocation3 + $0xe0] sm:$0xff]
        %v3114 = vld [vmem:[#allocation3 + $0xe8] sm:$0xff]
        %v3115 = vld [vmem:[#allocation3 + $0xf0] sm:$0xff]
        %v3116 = vld [vmem:[#allocation3 + $0xf8] sm:$0xff]
        %3117 = vmatprep.subr.bf16.mxu0 0
        %3118 = vmatpush1.bf16.msra.mxu0 %v3085
        %3119 = vmatprep.subr.bf16.mxu0 0
        %3120 = vmatpush1.bf16.msra.mxu0 %v3086
        %3121 = vmatprep.subr.bf16.mxu0 0
        %3122 = vmatpush1.bf16.msra.mxu0 %v3087
        %3123 = vmatprep.subr.bf16.mxu0 0
        %3124 = vmatpush1.bf16.msra.mxu0 %v3088
        %3125 = vmatprep.subr.bf16.mxu0 0
        %3126 = vmatpush1.bf16.msra.mxu0 %v3089
        %3127 = vmatprep.subr.bf16.mxu0 0
        %3128 = vmatpush1.bf16.msra.mxu0 %v3090
        %3129 = vmatprep.subr.bf16.mxu0 0
        %3130 = vmatpush1.bf16.msra.mxu0 %v3091
        %3131 = vmatprep.subr.bf16.mxu0 0
        %3132 = vmatpush1.bf16.msra.mxu0 %v3092
        %3133 = vmatprep.subr.bf16.mxu0 0
        %3134 = vmatpush1.bf16.msra.mxu0 0
        %3135 = vmatprep.subr.bf16.mxu0 0
        %3136 = vmatpush1.bf16.msra.mxu0 0
        %3137 = vmatprep.subr.bf16.mxu0 0
        %3138 = vmatpush1.bf16.msra.mxu0 0
        %3139 = vmatprep.subr.bf16.mxu0 0
        %3140 = vmatpush1.bf16.msra.mxu0 0
        %3141 = vmatprep.subr.bf16.mxu0 0
        %3142 = vmatpush1.bf16.msra.mxu0 0
        %3143 = vmatprep.subr.bf16.mxu0 0
        %3144 = vmatpush1.bf16.msra.mxu0 0
        %3145 = vmatprep.subr.bf16.mxu0 0
        %3146 = vmatpush1.bf16.msra.mxu0 0
        %3147 = vmatprep.subr.bf16.mxu0 0
        %3148 = vmatpush1.bf16.msra.mxu0 0
        %3149 = vmatprep.mubr.bf16.mxu0 0
        %3150 = vmatmul.mubr.bf16.gmra.mrb[0].mxu0 %v2765
        %v3151 = vpop.f32.mrb[0].mxu0
        %v3152 = vadd.f32 0.0, %v3151
        %v3153 = vpop.f32.mrb[0].mxu0
        %v3154 = vpop.f32.mrb[0].mxu0
        %v3155 = vadd.f32 0.0, %v3154
        %v3156 = vpop.f32.mrb[0].mxu0
        %3157 = vmatprep.mubr.bf16.mxu0 0
        %3158 = vmatmul.mubr.bf16.gmra.mrb[0].mxu0 %v2766
        %v3159 = vpop.f32.mrb[0].mxu0
        %v3160 = vadd.f32 0.0, %v3159
        %v3161 = vpop.f32.mrb[0].mxu0
        %v3162 = vpop.f32.mrb[0].mxu0
        %v3163 = vadd.f32 0.0, %v3162
        %v3164 = vpop.f32.mrb[0].mxu0
        %3165 = vmatprep.mubr.bf16.mxu0 0
        %3166 = vmatmul.mubr.bf16.gmra.mrb[0].mxu0 %v2767
        %v3167 = vpop.f32.mrb[0].mxu0
        %v3168 = vadd.f32 0.0, %v3167
        %v3169 = vpop.f32.mrb[0].mxu0
        %v3170 = vpop.f32.mrb[0].mxu0
        %v3171 = vadd.f32 0.0, %v3170
        %v3172 = vpop.f32.mrb[0].mxu0
        %3173 = vmatprep.mubr.bf16.mxu0 0
        %3174 = vmatmul.mubr.bf16.gmra.mrb[0].mxu0 %v2768
        %v3175 = vpop.f32.mrb[0].mxu0
        %v3176 = vadd.f32 0.0, %v3175
        %v3177 = vpop.f32.mrb[0].mxu0
        %v3178 = vpop.f32.mrb[0].mxu0
        %v3179 = vadd.f32 0.0, %v3178
        %v3180 = vpop.f32.mrb[0].mxu0
        %3181 = vmatprep.mubr.bf16.mxu0 0
        %3182 = vmatmul.mubr.bf16.gmra.mrb[0].mxu0 %v2769
        %v3183 = vpop.f32.mrb[0].mxu0
        %v3184 = vadd.f32 0.0, %v3183
        %v3185 = vpop.f32.mrb[0].mxu0
        %v3186 = vpop.f32.mrb[0].mxu0
        %v3187 = vadd.f32 0.0, %v3186
        %v3188 = vpop.f32.mrb[0].mxu0
        %3189 = vmatprep.mubr.bf16.mxu0 0
        %3190 = vmatmul.mubr.bf16.gmra.mrb[0].mxu0 %v2770
        %v3191 = vpop.f32.mrb[0].mxu0
        %v3192 = vadd.f32 0.0, %v3191
        %v3193 = vpop.f32.mrb[0].mxu0
        %v3194 = vpop.f32.mrb[0].mxu0
        %v3195 = vadd.f32 0.0, %v3194
        %v3196 = vpop.f32.mrb[0].mxu0
        %3197 = vmatprep.mubr.bf16.mxu0 0
        %3198 = vmatmul.mubr.bf16.gmra.mrb[0].mxu0 %v2771
        %v3199 = vpop.f32.mrb[0].mxu0
        %v3200 = vadd.f32 0.0, %v3199
        %v3201 = vpop.f32.mrb[0].mxu0
        %v3202 = vpop.f32.mrb[0].mxu0
        %v3203 = vadd.f32 0.0, %v3202
        %v3204 = vpop.f32.mrb[0].mxu0
        %3205 = vmatprep.mubr.bf16.mxu0 0
        %3206 = vmatmul.mubr.bf16.gmra.mrb[0].mxu0 %v2772
        %v3207 = vpop.f32.mrb[0].mxu0
        %v3208 = vadd.f32 0.0, %v3207
        %v3209 = vpop.f32.mrb[0].mxu0
        %v3210 = vpop.f32.mrb[0].mxu0
        %v3211 = vadd.f32 0.0, %v3210
        %v3212 = vpop.f32.mrb[0].mxu0
        %3213 = vdwg.mxu0
        %3214 = vmatprep.subr.bf16.mxu0 0
        %3215 = vmatpush1.bf16.msra.mxu0 %v3093
        %3216 = vmatprep.subr.bf16.mxu0 0
        %3217 = vmatpush1.bf16.msra.mxu0 %v3094
        %3218 = vmatprep.subr.bf16.mxu0 0
        %3219 = vmatpush1.bf16.msra.mxu0 %v3095
        %3220 = vmatprep.subr.bf16.mxu0 0
        %3221 = vmatpush1.bf16.msra.mxu0 %v3096
        %3222 = vmatprep.subr.bf16.mxu0 0
        %3223 = vmatpush1.bf16.msra.mxu0 %v3097
        %3224 = vmatprep.subr.bf16.mxu0 0
        %3225 = vmatpush1.bf16.msra.mxu0 %v3098
        %3226 = vmatprep.subr.bf16.mxu0 0
        %3227 = vmatpush1.bf16.msra.mxu0 %v3099
        %3228 = vmatprep.subr.bf16.mxu0 0
        %3229 = vmatpush1.bf16.msra.mxu0 %v3100
        %3230 = vmatprep.subr.bf16.mxu0 0
        %3231 = vmatpush1.bf16.msra.mxu0 0
        %3232 = vmatprep.subr.bf16.mxu0 0
        %3233 = vmatpush1.bf16.msra.mxu0 0
        %3234 = vmatprep.subr.bf16.mxu0 0
        %3235 = vmatpush1.bf16.msra.mxu0 0
        %3236 = vmatprep.subr.bf16.mxu0 0
        %3237 = vmatpush1.bf16.msra.mxu0 0
        %3238 = vmatprep.subr.bf16.mxu0 0
        %3239 = vmatpush1.bf16.msra.mxu0 0
        %3240 = vmatprep.subr.bf16.mxu0 0
        %3241 = vmatpush1.bf16.msra.mxu0 0
        %3242 = vmatprep.subr.bf16.mxu0 0
        %3243 = vmatpush1.bf16.msra.mxu0 0
        %3244 = vmatprep.subr.bf16.mxu0 0
        %3245 = vmatpush1.bf16.msra.mxu0 0
        %3246 = vmatprep.mubr.bf16.mxu0 0
        %3247 = vmatmul.mubr.bf16.gmra.mrb[0].mxu0 %v2773
        %v3248 = vpop.f32.mrb[0].mxu0
        %v3249 = vadd.f32 0.0, %v3248
        %v3250 = vpop.f32.mrb[0].mxu0
        %v3251 = vpop.f32.mrb[0].mxu0
        %v3252 = vadd.f32 0.0, %v3251
        %v3253 = vpop.f32.mrb[0].mxu0
        %3254 = vmatprep.mubr.bf16.mxu0 0
        %3255 = vmatmul.mubr.bf16.gmra.mrb[0].mxu0 %v2774
        %v3256 = vpop.f32.mrb[0].mxu0
        %v3257 = vadd.f32 0.0, %v3256
        %v3258 = vpop.f32.mrb[0].mxu0
        %v3259 = vpop.f32.mrb[0].mxu0
        %v3260 = vadd.f32 0.0, %v3259
        %v3261 = vpop.f32.mrb[0].mxu0
        %3262 = vmatprep.mubr.bf16.mxu0 0
        %3263 = vmatmul.mubr.bf16.gmra.mrb[0].mxu0 %v2775
        %v3264 = vpop.f32.mrb[0].mxu0
        %v3265 = vadd.f32 0.0, %v3264
        %v3266 = vpop.f32.mrb[0].mxu0
        %v3267 = vpop.f32.mrb[0].mxu0
        %v3268 = vadd.f32 0.0, %v3267
        %v3269 = vpop.f32.mrb[0].mxu0
        %3270 = vmatprep.mubr.bf16.mxu0 0
        %3271 = vmatmul.mubr.bf16.gmra.mrb[0].mxu0 %v2776
        %v3272 = vpop.f32.mrb[0].mxu0
        %v3273 = vadd.f32 0.0, %v3272
        %v3274 = vpop.f32.mrb[0].mxu0
        %v3275 = vpop.f32.mrb[0].mxu0
        %v3276 = vadd.f32 0.0, %v3275
        %v3277 = vpop.f32.mrb[0].mxu0
        %3278 = vmatprep.mubr.bf16.mxu0 0
        %3279 = vmatmul.mubr.bf16.gmra.mrb[0].mxu0 %v2777
        %v3280 = vpop.f32.mrb[0].mxu0
        %v3281 = vadd.f32 0.0, %v3280
        %v3282 = vpop.f32.mrb[0].mxu0
        %v3283 = vpop.f32.mrb[0].mxu0
        %v3284 = vadd.f32 0.0, %v3283
        %v3285 = vpop.f32.mrb[0].mxu0
        %3286 = vmatprep.mubr.bf16.mxu0 0
        %3287 = vmatmul.mubr.bf16.gmra.mrb[0].mxu0 %v2778
        %v3288 = vpop.f32.mrb[0].mxu0
        %v3289 = vadd.f32 0.0, %v3288
        %v3290 = vpop.f32.mrb[0].mxu0
        %v3291 = vpop.f32.mrb[0].mxu0
        %v3292 = vadd.f32 0.0, %v3291
        %v3293 = vpop.f32.mrb[0].mxu0
        %3294 = vmatprep.mubr.bf16.mxu0 0
        %3295 = vmatmul.mubr.bf16.gmra.mrb[0].mxu0 %v2779
        %v3296 = vpop.f32.mrb[0].mxu0
        %v3297 = vadd.f32 0.0, %v3296
        %v3298 = vpop.f32.mrb[0].mxu0
        %v3299 = vpop.f32.mrb[0].mxu0
        %v3300 = vadd.f32 0.0, %v3299
        %v3301 = vpop.f32.mrb[0].mxu0
        %3302 = vmatprep.mubr.bf16.mxu0 0
        %3303 = vmatmul.mubr.bf16.gmra.mrb[0].mxu0 %v2780
        %v3304 = vpop.f32.mrb[0].mxu0
        %v3305 = vadd.f32 0.0, %v3304
        %v3306 = vpop.f32.mrb[0].mxu0
        %v3307 = vpop.f32.mrb[0].mxu0
        %v3308 = vadd.f32 0.0, %v3307
        %v3309 = vpop.f32.mrb[0].mxu0
        %3310 = vdwg.mxu0
        %3311 = vmatprep.subr.bf16.mxu0 0
        %3312 = vmatpush1.bf16.msra.mxu0 %v3101
        %3313 = vmatprep.subr.bf16.mxu0 0
        %3314 = vmatpush1.bf16.msra.mxu0 %v3102
        %3315 = vmatprep.subr.bf16.mxu0 0
        %3316 = vmatpush1.bf16.msra.mxu0 %v3103
        %3317 = vmatprep.subr.bf16.mxu0 0
        %3318 = vmatpush1.bf16.msra.mxu0 %v3104
        %3319 = vmatprep.subr.bf16.mxu0 0
        %3320 = vmatpush1.bf16.msra.mxu0 %v3105
        %3321 = vmatprep.subr.bf16.mxu0 0
        %3322 = vmatpush1.bf16.msra.mxu0 %v3106
        %3323 = vmatprep.subr.bf16.mxu0 0
        %3324 = vmatpush1.bf16.msra.mxu0 %v3107
        %3325 = vmatprep.subr.bf16.mxu0 0
        %3326 = vmatpush1.bf16.msra.mxu0 %v3108
        %3327 = vmatprep.subr.bf16.mxu0 0
        %3328 = vmatpush1.bf16.msra.mxu0 0
        %3329 = vmatprep.subr.bf16.mxu0 0
        %3330 = vmatpush1.bf16.msra.mxu0 0
        %3331 = vmatprep.subr.bf16.mxu0 0
        %3332 = vmatpush1.bf16.msra.mxu0 0
        %3333 = vmatprep.subr.bf16.mxu0 0
        %3334 = vmatpush1.bf16.msra.mxu0 0
        %3335 = vmatprep.subr.bf16.mxu0 0
        %3336 = vmatpush1.bf16.msra.mxu0 0
        %3337 = vmatprep.subr.bf16.mxu0 0
        %3338 = vmatpush1.bf16.msra.mxu0 0
        %3339 = vmatprep.subr.bf16.mxu0 0
        %3340 = vmatpush1.bf16.msra.mxu0 0
        %3341 = vmatprep.subr.bf16.mxu0 0
        %3342 = vmatpush1.bf16.msra.mxu0 0
        %3343 = vmatprep.mubr.bf16.mxu0 0
        %3344 = vmatmul.mubr.bf16.gmra.mrb[0].mxu0 %v2781
        %v3345 = vpop.f32.mrb[0].mxu0
        %v3346 = vadd.f32 0.0, %v3345
        %v3347 = vpop.f32.mrb[0].mxu0
        %v3348 = vpop.f32.mrb[0].mxu0
        %v3349 = vadd.f32 0.0, %v3348
        %v3350 = vpop.f32.mrb[0].mxu0
        %3351 = vmatprep.mubr.bf16.mxu0 0
        %3352 = vmatmul.mubr.bf16.gmra.mrb[0].mxu0 %v2782
        %v3353 = vpop.f32.mrb[0].mxu0
        %v3354 = vadd.f32 0.0, %v3353
        %v3355 = vpop.f32.mrb[0].mxu0
        %v3356 = vpop.f32.mrb[0].mxu0
        %v3357 = vadd.f32 0.0, %v3356
        %v3358 = vpop.f32.mrb[0].mxu0
        %3359 = vmatprep.mubr.bf16.mxu0 0
        %3360 = vmatmul.mubr.bf16.gmra.mrb[0].mxu0 %v2783
        %v3361 = vpop.f32.mrb[0].mxu0
        %v3362 = vadd.f32 0.0, %v3361
        %v3363 = vpop.f32.mrb[0].mxu0
        %v3364 = vpop.f32.mrb[0].mxu0
        %v3365 = vadd.f32 0.0, %v3364
        %v3366 = vpop.f32.mrb[0].mxu0
        %3367 = vmatprep.mubr.bf16.mxu0 0
        %3368 = vmatmul.mubr.bf16.gmra.mrb[0].mxu0 %v2784
        %v3369 = vpop.f32.mrb[0].mxu0
        %v3370 = vadd.f32 0.0, %v3369
        %v3371 = vpop.f32.mrb[0].mxu0
        %v3372 = vpop.f32.mrb[0].mxu0
        %v3373 = vadd.f32 0.0, %v3372
        %v3374 = vpop.f32.mrb[0].mxu0
        %3375 = vmatprep.mubr.bf16.mxu0 0
        %3376 = vmatmul.mubr.bf16.gmra.mrb[0].mxu0 %v2785
        %v3377 = vpop.f32.mrb[0].mxu0
        %v3378 = vadd.f32 0.0, %v3377
        %v3379 = vpop.f32.mrb[0].mxu0
        %v3380 = vpop.f32.mrb[0].mxu0
        %v3381 = vadd.f32 0.0, %v3380
        %v3382 = vpop.f32.mrb[0].mxu0
        %3383 = vmatprep.mubr.bf16.mxu0 0
        %3384 = vmatmul.mubr.bf16.gmra.mrb[0].mxu0 %v2786
        %v3385 = vpop.f32.mrb[0].mxu0
        %v3386 = vadd.f32 0.0, %v3385
        %v3387 = vpop.f32.mrb[0].mxu0
        %v3388 = vpop.f32.mrb[0].mxu0
        %v3389 = vadd.f32 0.0, %v3388
        %v3390 = vpop.f32.mrb[0].mxu0
        %3391 = vmatprep.mubr.bf16.mxu0 0
        %3392 = vmatmul.mubr.bf16.gmra.mrb[0].mxu0 %v2787
        %v3393 = vpop.f32.mrb[0].mxu0
        %v3394 = vadd.f32 0.0, %v3393
        %v3395 = vpop.f32.mrb[0].mxu0
        %v3396 = vpop.f32.mrb[0].mxu0
        %v3397 = vadd.f32 0.0, %v3396
        %v3398 = vpop.f32.mrb[0].mxu0
        %3399 = vmatprep.mubr.bf16.mxu0 0
        %3400 = vmatmul.mubr.bf16.gmra.mrb[0].mxu0 %v2788
        %v3401 = vpop.f32.mrb[0].mxu0
        %v3402 = vadd.f32 0.0, %v3401
        %v3403 = vpop.f32.mrb[0].mxu0
        %v3404 = vpop.f32.mrb[0].mxu0
        %v3405 = vadd.f32 0.0, %v3404
        %v3406 = vpop.f32.mrb[0].mxu0
        %3407 = vdwg.mxu0
        %3408 = vmatprep.subr.bf16.mxu0 0
        %3409 = vmatpush1.bf16.msra.mxu0 %v3109
        %3410 = vmatprep.subr.bf16.mxu0 0
        %3411 = vmatpush1.bf16.msra.mxu0 %v3110
        %3412 = vmatprep.subr.bf16.mxu0 0
        %3413 = vmatpush1.bf16.msra.mxu0 %v3111
        %3414 = vmatprep.subr.bf16.mxu0 0
        %3415 = vmatpush1.bf16.msra.mxu0 %v3112
        %3416 = vmatprep.subr.bf16.mxu0 0
        %3417 = vmatpush1.bf16.msra.mxu0 %v3113
        %3418 = vmatprep.subr.bf16.mxu0 0
        %3419 = vmatpush1.bf16.msra.mxu0 %v3114
        %3420 = vmatprep.subr.bf16.mxu0 0
        %3421 = vmatpush1.bf16.msra.mxu0 %v3115
        %3422 = vmatprep.subr.bf16.mxu0 0
        %3423 = vmatpush1.bf16.msra.mxu0 %v3116
        %3424 = vmatprep.subr.bf16.mxu0 0
        %3425 = vmatpush1.bf16.msra.mxu0 0
        %3426 = vmatprep.subr.bf16.mxu0 0
        %3427 = vmatpush1.bf16.msra.mxu0 0
        %3428 = vmatprep.subr.bf16.mxu0 0
        %3429 = vmatpush1.bf16.msra.mxu0 0
        %3430 = vmatprep.subr.bf16.mxu0 0
        %3431 = vmatpush1.bf16.msra.mxu0 0
        %3432 = vmatprep.subr.bf16.mxu0 0
        %3433 = vmatpush1.bf16.msra.mxu0 0
        %3434 = vmatprep.subr.bf16.mxu0 0
        %3435 = vmatpush1.bf16.msra.mxu0 0
        %3436 = vmatprep.subr.bf16.mxu0 0
        %3437 = vmatpush1.bf16.msra.mxu0 0
        %3438 = vmatprep.subr.bf16.mxu0 0
        %3439 = vmatpush1.bf16.msra.mxu0 0
        %3440 = vmatprep.mubr.bf16.mxu0 0
        %3441 = vmatmul.mubr.bf16.gmra.mrb[0].mxu0 %v2789
        %v3442 = vpop.f32.mrb[0].mxu0
        %v3443 = vadd.f32 0.0, %v3442
        %v3444 = vpop.f32.mrb[0].mxu0
        %v3445 = vpop.f32.mrb[0].mxu0
        %v3446 = vadd.f32 0.0, %v3445
        %v3447 = vpop.f32.mrb[0].mxu0
        %3448 = vmatprep.mubr.bf16.mxu0 0
        %3449 = vmatmul.mubr.bf16.gmra.mrb[0].mxu0 %v2790
        %v3450 = vpop.f32.mrb[0].mxu0
        %v3451 = vadd.f32 0.0, %v3450
        %v3452 = vpop.f32.mrb[0].mxu0
        %v3453 = vpop.f32.mrb[0].mxu0
        %v3454 = vadd.f32 0.0, %v3453
        %v3455 = vpop.f32.mrb[0].mxu0
        %3456 = vmatprep.mubr.bf16.mxu0 0
        %3457 = vmatmul.mubr.bf16.gmra.mrb[0].mxu0 %v2791
        %v3458 = vpop.f32.mrb[0].mxu0
        %v3459 = vadd.f32 0.0, %v3458
        %v3460 = vpop.f32.mrb[0].mxu0
        %v3461 = vpop.f32.mrb[0].mxu0
        %v3462 = vadd.f32 0.0, %v3461
        %v3463 = vpop.f32.mrb[0].mxu0
        %3464 = vmatprep.mubr.bf16.mxu0 0
        %3465 = vmatmul.mubr.bf16.gmra.mrb[0].mxu0 %v2792
        %v3466 = vpop.f32.mrb[0].mxu0
        %v3467 = vadd.f32 0.0, %v3466
        %v3468 = vpop.f32.mrb[0].mxu0
        %v3469 = vpop.f32.mrb[0].mxu0
        %v3470 = vadd.f32 0.0, %v3469
        %v3471 = vpop.f32.mrb[0].mxu0
        %3472 = vmatprep.mubr.bf16.mxu0 0
        %3473 = vmatmul.mubr.bf16.gmra.mrb[0].mxu0 %v2793
        %v3474 = vpop.f32.mrb[0].mxu0
        %v3475 = vadd.f32 0.0, %v3474
        %v3476 = vpop.f32.mrb[0].mxu0
        %v3477 = vpop.f32.mrb[0].mxu0
        %v3478 = vadd.f32 0.0, %v3477
        %v3479 = vpop.f32.mrb[0].mxu0
        %3480 = vmatprep.mubr.bf16.mxu0 0
        %3481 = vmatmul.mubr.bf16.gmra.mrb[0].mxu0 %v2794
        %v3482 = vpop.f32.mrb[0].mxu0
        %v3483 = vadd.f32 0.0, %v3482
        %v3484 = vpop.f32.mrb[0].mxu0
        %v3485 = vpop.f32.mrb[0].mxu0
        %v3486 = vadd.f32 0.0, %v3485
        %v3487 = vpop.f32.mrb[0].mxu0
        %3488 = vmatprep.mubr.bf16.mxu0 0
        %3489 = vmatmul.mubr.bf16.gmra.mrb[0].mxu0 %v2795
        %v3490 = vpop.f32.mrb[0].mxu0
        %v3491 = vadd.f32 0.0, %v3490
        %v3492 = vpop.f32.mrb[0].mxu0
        %v3493 = vpop.f32.mrb[0].mxu0
        %v3494 = vadd.f32 0.0, %v3493
        %v3495 = vpop.f32.mrb[0].mxu0
        %3496 = vmatprep.mubr.bf16.mxu0 0
        %3497 = vmatmul.mubr.bf16.gmra.mrb[0].mxu0 %v2796
        %v3498 = vpop.f32.mrb[0].mxu0
        %v3499 = vadd.f32 0.0, %v3498
        %v3500 = vpop.f32.mrb[0].mxu0
        %v3501 = vpop.f32.mrb[0].mxu0
        %v3502 = vadd.f32 0.0, %v3501
        %v3503 = vpop.f32.mrb[0].mxu0
        %3504 = vdwg.mxu0
        %v3505 = vpack.c.bf16 %v3155, %v3152
        %v3506 = vpack.c.bf16 %v3163, %v3160
        %v3507 = vpack.c.bf16 %v3171, %v3168
        %v3508 = vpack.c.bf16 %v3179, %v3176
        %v3509 = vpack.c.bf16 %v3187, %v3184
        %v3510 = vpack.c.bf16 %v3195, %v3192
        %v3511 = vpack.c.bf16 %v3203, %v3200
        %v3512 = vpack.c.bf16 %v3211, %v3208
        %3513 = vst.msk [vmem:[#allocation5] sm:$0xff] %vm1296, %v3505
        %3514 = vst.msk [vmem:[#allocation5 + $0x8] sm:$0xff] %vm1296, %v3506
        %3515 = vst.msk [vmem:[#allocation5 + $0x10] sm:$0xff] %vm1296, %v3507
        %3516 = vst.msk [vmem:[#allocation5 + $0x18] sm:$0xff] %vm1296, %v3508
        %3517 = vst.msk [vmem:[#allocation5 + $0x20] sm:$0xff] %vm1296, %v3509
        %3518 = vst.msk [vmem:[#allocation5 + $0x28] sm:$0xff] %vm1296, %v3510
        %3519 = vst.msk [vmem:[#allocation5 + $0x30] sm:$0xff] %vm1296, %v3511
        %3520 = vst.msk [vmem:[#allocation5 + $0x38] sm:$0xff] %vm1296, %v3512
        %v3521 = vpack.c.bf16 %v3252, %v3249
        %v3522 = vpack.c.bf16 %v3260, %v3257
        %v3523 = vpack.c.bf16 %v3268, %v3265
        %v3524 = vpack.c.bf16 %v3276, %v3273
        %v3525 = vpack.c.bf16 %v3284, %v3281
        %v3526 = vpack.c.bf16 %v3292, %v3289
        %v3527 = vpack.c.bf16 %v3300, %v3297
        %v3528 = vpack.c.bf16 %v3308, %v3305
        %3537 = vrot.lane.b32.xlu0 %v3521, 8
        %v3538 = vpop.permute.xlu0 %3537
        %3539 = vrot.lane.b32.xlu0 %v3522, 8
        %v3540 = vpop.permute.xlu0 %3539
        %3541 = vrot.lane.b32.xlu0 %v3523, 8
        %v3542 = vpop.permute.xlu0 %3541
        %3543 = vrot.lane.b32.xlu0 %v3524, 8
        %v3544 = vpop.permute.xlu0 %3543
        %3545 = vrot.lane.b32.xlu0 %v3525, 8
        %v3546 = vpop.permute.xlu0 %3545
        %3547 = vrot.lane.b32.xlu0 %v3526, 8
        %v3548 = vpop.permute.xlu0 %3547
        %3549 = vrot.lane.b32.xlu0 %v3527, 8
        %v3550 = vpop.permute.xlu0 %3549
        %3551 = vrot.lane.b32.xlu0 %v3528, 8
        %v3552 = vpop.permute.xlu0 %3551
        %vm3561 = vcmask 130112
        %3562 = vst.msk [vmem:[#allocation5] sm:$0xff] %vm3561, %v3538
        %3563 = vst.msk [vmem:[#allocation5 + $0x8] sm:$0xff] %vm3561, %v3540
        %3564 = vst.msk [vmem:[#allocation5 + $0x10] sm:$0xff] %vm3561, %v3542
        %3565 = vst.msk [vmem:[#allocation5 + $0x18] sm:$0xff] %vm3561, %v3544
        %3566 = vst.msk [vmem:[#allocation5 + $0x20] sm:$0xff] %vm3561, %v3546
        %3567 = vst.msk [vmem:[#allocation5 + $0x28] sm:$0xff] %vm3561, %v3548
        %3568 = vst.msk [vmem:[#allocation5 + $0x30] sm:$0xff] %vm3561, %v3550
        %3569 = vst.msk [vmem:[#allocation5 + $0x38] sm:$0xff] %vm3561, %v3552
        %v3570 = vpack.c.bf16 %v3349, %v3346
        %v3571 = vpack.c.bf16 %v3357, %v3354
        %v3572 = vpack.c.bf16 %v3365, %v3362
        %v3573 = vpack.c.bf16 %v3373, %v3370
        %v3574 = vpack.c.bf16 %v3381, %v3378
        %v3575 = vpack.c.bf16 %v3389, %v3386
        %v3576 = vpack.c.bf16 %v3397, %v3394
        %v3577 = vpack.c.bf16 %v3405, %v3402
        %3586 = vrot.lane.b32.xlu0 %v3570, 16
        %v3587 = vpop.permute.xlu0 %3586
        %3588 = vrot.lane.b32.xlu0 %v3571, 16
        %v3589 = vpop.permute.xlu0 %3588
        %3590 = vrot.lane.b32.xlu0 %v3572, 16
        %v3591 = vpop.permute.xlu0 %3590
        %3592 = vrot.lane.b32.xlu0 %v3573, 16
        %v3593 = vpop.permute.xlu0 %3592
        %3594 = vrot.lane.b32.xlu0 %v3574, 16
        %v3595 = vpop.permute.xlu0 %3594
        %3596 = vrot.lane.b32.xlu0 %v3575, 16
        %v3597 = vpop.permute.xlu0 %3596
        %3598 = vrot.lane.b32.xlu0 %v3576, 16
        %v3599 = vpop.permute.xlu0 %3598
        %3600 = vrot.lane.b32.xlu0 %v3577, 16
        %v3601 = vpop.permute.xlu0 %3600
        %vm3610 = vcmask 195712
        %3611 = vst.msk [vmem:[#allocation5] sm:$0xff] %vm3610, %v3587
        %3612 = vst.msk [vmem:[#allocation5 + $0x8] sm:$0xff] %vm3610, %v3589
        %3613 = vst.msk [vmem:[#allocation5 + $0x10] sm:$0xff] %vm3610, %v3591
        %3614 = vst.msk [vmem:[#allocation5 + $0x18] sm:$0xff] %vm3610, %v3593
        %3615 = vst.msk [vmem:[#allocation5 + $0x20] sm:$0xff] %vm3610, %v3595
        %3616 = vst.msk [vmem:[#allocation5 + $0x28] sm:$0xff] %vm3610, %v3597
        %3617 = vst.msk [vmem:[#allocation5 + $0x30] sm:$0xff] %vm3610, %v3599
        %3618 = vst.msk [vmem:[#allocation5 + $0x38] sm:$0xff] %vm3610, %v3601
        %v3619 = vpack.c.bf16 %v3446, %v3443
        %v3620 = vpack.c.bf16 %v3454, %v3451
        %v3621 = vpack.c.bf16 %v3462, %v3459
        %v3622 = vpack.c.bf16 %v3470, %v3467
        %v3623 = vpack.c.bf16 %v3478, %v3475
        %v3624 = vpack.c.bf16 %v3486, %v3483
        %v3625 = vpack.c.bf16 %v3494, %v3491
        %v3626 = vpack.c.bf16 %v3502, %v3499
        %3635 = vrot.lane.b32.xlu0 %v3619, 24
        %v3636 = vpop.permute.xlu0 %3635
        %3637 = vrot.lane.b32.xlu0 %v3620, 24
        %v3638 = vpop.permute.xlu0 %3637
        %3639 = vrot.lane.b32.xlu0 %v3621, 24
        %v3640 = vpop.permute.xlu0 %3639
        %3641 = vrot.lane.b32.xlu0 %v3622, 24
        %v3642 = vpop.permute.xlu0 %3641
        %3643 = vrot.lane.b32.xlu0 %v3623, 24
        %v3644 = vpop.permute.xlu0 %3643
        %3645 = vrot.lane.b32.xlu0 %v3624, 24
        %v3646 = vpop.permute.xlu0 %3645
        %3647 = vrot.lane.b32.xlu0 %v3625, 24
        %v3648 = vpop.permute.xlu0 %3647
        %3649 = vrot.lane.b32.xlu0 %v3626, 24
        %v3650 = vpop.permute.xlu0 %3649
        %vm3659 = vcmask 261312
        %3660 = vst.msk [vmem:[#allocation5] sm:$0xff] %vm3659, %v3636
        %3661 = vst.msk [vmem:[#allocation5 + $0x8] sm:$0xff] %vm3659, %v3638
        %3662 = vst.msk [vmem:[#allocation5 + $0x10] sm:$0xff] %vm3659, %v3640
        %3663 = vst.msk [vmem:[#allocation5 + $0x18] sm:$0xff] %vm3659, %v3642
        %3664 = vst.msk [vmem:[#allocation5 + $0x20] sm:$0xff] %vm3659, %v3644
        %3665 = vst.msk [vmem:[#allocation5 + $0x28] sm:$0xff] %vm3659, %v3646
        %3666 = vst.msk [vmem:[#allocation5 + $0x30] sm:$0xff] %vm3659, %v3648
        %3667 = vst.msk [vmem:[#allocation5 + $0x38] sm:$0xff] %vm3659, %v3650
        %v3668 = vld [vmem:[#allocation5] sm:$0xff]
        %v3669 = vld [vmem:[#allocation5 + $0x8] sm:$0xff]
        %v3670 = vld [vmem:[#allocation5 + $0x10] sm:$0xff]
        %v3671 = vld [vmem:[#allocation5 + $0x18] sm:$0xff]
        %v3672 = vld [vmem:[#allocation5 + $0x20] sm:$0xff]
        %v3673 = vld [vmem:[#allocation5 + $0x28] sm:$0xff]
        %v3674 = vld [vmem:[#allocation5 + $0x30] sm:$0xff]
        %v3675 = vld [vmem:[#allocation5 + $0x38] sm:$0xff]
        %v3676 = vld [vmem:[%s5] sm:$0xf]
        %v3677 = vld [vmem:[%s5 + $0x4] sm:$0xf]
        %v3678 = vld [vmem:[%s5 + $0x8] sm:$0xf]
        %v3679 = vld [vmem:[%s5 + $0xc] sm:$0xf]
        %v3684 = vunpack.c.l.b16 %v3676
        %v3685 = vunpack.c.l.b16 %v3677
        %v3686 = vunpack.c.l.b16 %v3678
        %v3687 = vunpack.c.l.b16 %v3679
        %v3688 = vpack.c.b16 %v3685, %v3684
        %v3689 = vpack.c.b16 %v3687, %v3686
        %v3693 = vsel %vm1166, %v3668, 0
        %v3696 = vsel %vm1166, %v3669, 0
        %v3699 = vsel %vm1166, %v3670, 0
        %v3702 = vsel %vm1166, %v3671, 0
        %v3705 = vsel %vm1166, %v3672, 0
        %v3708 = vsel %vm1166, %v3673, 0
        %v3711 = vsel %vm1166, %v3674, 0
        %v3714 = vsel %vm1166, %v3675, 0
        %3716 = vmatprep.subr.bf16.mxu0 0
        %3717 = vmatpush1.bf16.msra.mxu0 %v3688
        %3718 = vmatprep.subr.bf16.mxu0 0
        %3719 = vmatpush1.bf16.msra.mxu0 %v3689
        %3720 = vmatprep.subr.bf16.mxu0 0
        %3721 = vmatpush1.bf16.msra.mxu0 0
        %3722 = vmatprep.subr.bf16.mxu0 0
        %3723 = vmatpush1.bf16.msra.mxu0 0
        %3724 = vmatprep.subr.bf16.mxu0 0
        %3725 = vmatpush1.bf16.msra.mxu0 0
        %3726 = vmatprep.subr.bf16.mxu0 0
        %3727 = vmatpush1.bf16.msra.mxu0 0
        %3728 = vmatprep.subr.bf16.mxu0 0
        %3729 = vmatpush1.bf16.msra.mxu0 0
        %3730 = vmatprep.subr.bf16.mxu0 0
        %3731 = vmatpush1.bf16.msra.mxu0 0
        %3732 = vmatprep.subr.bf16.mxu0 0
        %3733 = vmatpush1.bf16.msra.mxu0 0
        %3734 = vmatprep.subr.bf16.mxu0 0
        %3735 = vmatpush1.bf16.msra.mxu0 0
        %3736 = vmatprep.subr.bf16.mxu0 0
        %3737 = vmatpush1.bf16.msra.mxu0 0
        %3738 = vmatprep.subr.bf16.mxu0 0
        %3739 = vmatpush1.bf16.msra.mxu0 0
        %3740 = vmatprep.subr.bf16.mxu0 0
        %3741 = vmatpush1.bf16.msra.mxu0 0
        %3742 = vmatprep.subr.bf16.mxu0 0
        %3743 = vmatpush1.bf16.msra.mxu0 0
        %3744 = vmatprep.subr.bf16.mxu0 0
        %3745 = vmatpush1.bf16.msra.mxu0 0
        %3746 = vmatprep.subr.bf16.mxu0 0
        %3747 = vmatpush1.bf16.msra.mxu0 0
        %3748 = vmatprep.mubr.bf16.mxu0 0
        %3749 = vmatmul.mubr.bf16.gmra.mrb[0].mxu0 %v3693
        %v3750 = vpop.f32.mrb[0].mxu0
        %v3751 = vadd.f32 %v1126, %v3750
        %v3752 = vpop.f32.mrb[0].mxu0
        %v3753 = vpop.f32.mrb[0].mxu0
        %v3754 = vadd.f32 %v1127, %v3753
        %v3755 = vpop.f32.mrb[0].mxu0
        %3756 = vmatprep.mubr.bf16.mxu0 0
        %3757 = vmatmul.mubr.bf16.gmra.mrb[0].mxu0 %v3696
        %v3758 = vpop.f32.mrb[0].mxu0
        %v3759 = vadd.f32 %v1128, %v3758
        %v3760 = vpop.f32.mrb[0].mxu0
        %v3761 = vpop.f32.mrb[0].mxu0
        %v3762 = vadd.f32 %v1129, %v3761
        %v3763 = vpop.f32.mrb[0].mxu0
        %3764 = vmatprep.mubr.bf16.mxu0 0
        %3765 = vmatmul.mubr.bf16.gmra.mrb[0].mxu0 %v3699
        %v3766 = vpop.f32.mrb[0].mxu0
        %v3767 = vadd.f32 %v1130, %v3766
        %v3768 = vpop.f32.mrb[0].mxu0
        %v3769 = vpop.f32.mrb[0].mxu0
        %v3770 = vadd.f32 %v1131, %v3769
        %v3771 = vpop.f32.mrb[0].mxu0
        %3772 = vmatprep.mubr.bf16.mxu0 0
        %3773 = vmatmul.mubr.bf16.gmra.mrb[0].mxu0 %v3702
        %v3774 = vpop.f32.mrb[0].mxu0
        %v3775 = vadd.f32 %v1132, %v3774
        %v3776 = vpop.f32.mrb[0].mxu0
        %v3777 = vpop.f32.mrb[0].mxu0
        %v3778 = vadd.f32 %v1133, %v3777
        %v3779 = vpop.f32.mrb[0].mxu0
        %3780 = vmatprep.mubr.bf16.mxu0 0
        %3781 = vmatmul.mubr.bf16.gmra.mrb[0].mxu0 %v3705
        %v3782 = vpop.f32.mrb[0].mxu0
        %v3783 = vadd.f32 %v1134, %v3782
        %v3784 = vpop.f32.mrb[0].mxu0
        %v3785 = vpop.f32.mrb[0].mxu0
        %v3786 = vadd.f32 %v1135, %v3785
        %v3787 = vpop.f32.mrb[0].mxu0
        %3788 = vmatprep.mubr.bf16.mxu0 0
        %3789 = vmatmul.mubr.bf16.gmra.mrb[0].mxu0 %v3708
        %v3790 = vpop.f32.mrb[0].mxu0
        %v3791 = vadd.f32 %v1136, %v3790
        %v3792 = vpop.f32.mrb[0].mxu0
        %v3793 = vpop.f32.mrb[0].mxu0
        %v3794 = vadd.f32 %v1137, %v3793
        %v3795 = vpop.f32.mrb[0].mxu0
        %3796 = vmatprep.mubr.bf16.mxu0 0
        %3797 = vmatmul.mubr.bf16.gmra.mrb[0].mxu0 %v3711
        %v3798 = vpop.f32.mrb[0].mxu0
        %v3799 = vadd.f32 %v1138, %v3798
        %v3800 = vpop.f32.mrb[0].mxu0
        %v3801 = vpop.f32.mrb[0].mxu0
        %v3802 = vadd.f32 %v1139, %v3801
        %v3803 = vpop.f32.mrb[0].mxu0
        %3804 = vmatprep.mubr.bf16.mxu0 0
        %3805 = vmatmul.mubr.bf16.gmra.mrb[0].mxu0 %v3714
        %v3806 = vpop.f32.mrb[0].mxu0
        %v3807 = vadd.f32 %v1140, %v3806
        %v3808 = vpop.f32.mrb[0].mxu0
        %v3809 = vpop.f32.mrb[0].mxu0
        %v3810 = vadd.f32 %v1141, %v3809
        %v3811 = vpop.f32.mrb[0].mxu0
        %3812 = vdwg.mxu0
        %v3813 = vsel %vm1166, %v3751, 0.0
        %3814 = vadd.xlane.f32.xlu0 %v3813
        %v3815 = vpop.xlane.xlu0 %3814
        %v3816 = vsel %vm1166, %v3754, 0.0
        %3817 = vadd.xlane.f32.xlu0 %v3816
        %v3818 = vpop.xlane.xlu0 %3817
        %v3819 = vsel %vm1166, %v3759, 0.0
        %3820 = vadd.xlane.f32.xlu0 %v3819
        %v3821 = vpop.xlane.xlu0 %3820
        %v3822 = vsel %vm1166, %v3762, 0.0
        %3823 = vadd.xlane.f32.xlu0 %v3822
        %v3824 = vpop.xlane.xlu0 %3823
        %v3825 = vsel %vm1166, %v3767, 0.0
        %3826 = vadd.xlane.f32.xlu0 %v3825
        %v3827 = vpop.xlane.xlu0 %3826
        %v3828 = vsel %vm1166, %v3770, 0.0
        %3829 = vadd.xlane.f32.xlu0 %v3828
        %v3830 = vpop.xlane.xlu0 %3829
        %v3831 = vsel %vm1166, %v3775, 0.0
        %3832 = vadd.xlane.f32.xlu0 %v3831
        %v3833 = vpop.xlane.xlu0 %3832
        %v3834 = vsel %vm1166, %v3778, 0.0
        %3835 = vadd.xlane.f32.xlu0 %v3834
        %v3836 = vpop.xlane.xlu0 %3835
        %v3837 = vsel %vm1166, %v3783, 0.0
        %3838 = vadd.xlane.f32.xlu0 %v3837
        %v3839 = vpop.xlane.xlu0 %3838
        %v3840 = vsel %vm1166, %v3786, 0.0
        %3841 = vadd.xlane.f32.xlu0 %v3840
        %v3842 = vpop.xlane.xlu0 %3841
        %v3843 = vsel %vm1166, %v3791, 0.0
        %3844 = vadd.xlane.f32.xlu0 %v3843
        %v3845 = vpop.xlane.xlu0 %3844
        %v3846 = vsel %vm1166, %v3794, 0.0
        %3847 = vadd.xlane.f32.xlu0 %v3846
        %v3848 = vpop.xlane.xlu0 %3847
        %v3849 = vsel %vm1166, %v3799, 0.0
        %3850 = vadd.xlane.f32.xlu0 %v3849
        %v3851 = vpop.xlane.xlu0 %3850
        %v3852 = vsel %vm1166, %v3802, 0.0
        %3853 = vadd.xlane.f32.xlu0 %v3852
        %v3854 = vpop.xlane.xlu0 %3853
        %v3855 = vsel %vm1166, %v3807, 0.0
        %3856 = vadd.xlane.f32.xlu0 %v3855
        %v3857 = vpop.xlane.xlu0 %3856
        %v3858 = vsel %vm1166, %v3810, 0.0
        %3859 = vadd.xlane.f32.xlu0 %v3858
        %v3860 = vpop.xlane.xlu0 %3859
        %v3861 = vrcp.pop 32.0
        %v3862 = vmul.f32 %v3815, %v3861
        %v3863 = vmul.f32 %v3818, %v3861
        %v3864 = vmul.f32 %v3821, %v3861
        %v3865 = vmul.f32 %v3824, %v3861
        %v3866 = vmul.f32 %v3827, %v3861
        %v3867 = vmul.f32 %v3830, %v3861
        %v3868 = vmul.f32 %v3833, %v3861
        %v3869 = vmul.f32 %v3836, %v3861
        %v3870 = vmul.f32 %v3839, %v3861
        %v3871 = vmul.f32 %v3842, %v3861
        %v3872 = vmul.f32 %v3845, %v3861
        %v3873 = vmul.f32 %v3848, %v3861
        %v3874 = vmul.f32 %v3851, %v3861
        %v3875 = vmul.f32 %v3854, %v3861
        %v3876 = vmul.f32 %v3857, %v3861
        %v3877 = vmul.f32 %v3860, %v3861
        %v3878 = vsub.f32 %v3751, %v3862
        %v3879 = vsub.f32 %v3754, %v3863
        %v3880 = vsub.f32 %v3759, %v3864
        %v3881 = vsub.f32 %v3762, %v3865
        %v3882 = vsub.f32 %v3767, %v3866
        %v3883 = vsub.f32 %v3770, %v3867
        %v3884 = vsub.f32 %v3775, %v3868
        %v3885 = vsub.f32 %v3778, %v3869
        %v3886 = vsub.f32 %v3783, %v3870
        %v3887 = vsub.f32 %v3786, %v3871
        %v3888 = vsub.f32 %v3791, %v3872
        %v3889 = vsub.f32 %v3794, %v3873
        %v3890 = vsub.f32 %v3799, %v3874
        %v3891 = vsub.f32 %v3802, %v3875
        %v3892 = vsub.f32 %v3807, %v3876
        %v3893 = vsub.f32 %v3810, %v3877
        %v3894 = vmul.f32 %v3878, %v3878
        %v3895 = vmul.f32 %v3879, %v3879
        %v3896 = vmul.f32 %v3880, %v3880
        %v3897 = vmul.f32 %v3881, %v3881
        %v3898 = vmul.f32 %v3882, %v3882
        %v3899 = vmul.f32 %v3883, %v3883
        %v3900 = vmul.f32 %v3884, %v3884
        %v3901 = vmul.f32 %v3885, %v3885
        %v3902 = vmul.f32 %v3886, %v3886
        %v3903 = vmul.f32 %v3887, %v3887
        %v3904 = vmul.f32 %v3888, %v3888
        %v3905 = vmul.f32 %v3889, %v3889
        %v3906 = vmul.f32 %v3890, %v3890
        %v3907 = vmul.f32 %v3891, %v3891
        %v3908 = vmul.f32 %v3892, %v3892
        %v3909 = vmul.f32 %v3893, %v3893
        %v3910 = vsel %vm1166, %v3894, 0.0
        %3911 = vadd.xlane.f32.xlu0 %v3910
        %v3912 = vpop.xlane.xlu0 %3911
        %v3913 = vsel %vm1166, %v3895, 0.0
        %3914 = vadd.xlane.f32.xlu0 %v3913
        %v3915 = vpop.xlane.xlu0 %3914
        %v3916 = vsel %vm1166, %v3896, 0.0
        %3917 = vadd.xlane.f32.xlu0 %v3916
        %v3918 = vpop.xlane.xlu0 %3917
        %v3919 = vsel %vm1166, %v3897, 0.0
        %3920 = vadd.xlane.f32.xlu0 %v3919
        %v3921 = vpop.xlane.xlu0 %3920
        %v3922 = vsel %vm1166, %v3898, 0.0
        %3923 = vadd.xlane.f32.xlu0 %v3922
        %v3924 = vpop.xlane.xlu0 %3923
        %v3925 = vsel %vm1166, %v3899, 0.0
        %3926 = vadd.xlane.f32.xlu0 %v3925
        %v3927 = vpop.xlane.xlu0 %3926
        %v3928 = vsel %vm1166, %v3900, 0.0
        %3929 = vadd.xlane.f32.xlu0 %v3928
        %v3930 = vpop.xlane.xlu0 %3929
        %v3931 = vsel %vm1166, %v3901, 0.0
        %3932 = vadd.xlane.f32.xlu0 %v3931
        %v3933 = vpop.xlane.xlu0 %3932
        %v3934 = vsel %vm1166, %v3902, 0.0
        %3935 = vadd.xlane.f32.xlu0 %v3934
        %v3936 = vpop.xlane.xlu0 %3935
        %v3937 = vsel %vm1166, %v3903, 0.0
        %3938 = vadd.xlane.f32.xlu0 %v3937
        %v3939 = vpop.xlane.xlu0 %3938
        %v3940 = vsel %vm1166, %v3904, 0.0
        %3941 = vadd.xlane.f32.xlu0 %v3940
        %v3942 = vpop.xlane.xlu0 %3941
        %v3943 = vsel %vm1166, %v3905, 0.0
        %3944 = vadd.xlane.f32.xlu0 %v3943
        %v3945 = vpop.xlane.xlu0 %3944
        %v3946 = vsel %vm1166, %v3906, 0.0
        %3947 = vadd.xlane.f32.xlu0 %v3946
        %v3948 = vpop.xlane.xlu0 %3947
        %v3949 = vsel %vm1166, %v3907, 0.0
        %3950 = vadd.xlane.f32.xlu0 %v3949
        %v3951 = vpop.xlane.xlu0 %3950
        %v3952 = vsel %vm1166, %v3908, 0.0
        %3953 = vadd.xlane.f32.xlu0 %v3952
        %v3954 = vpop.xlane.xlu0 %3953
        %v3955 = vsel %vm1166, %v3909, 0.0
        %3956 = vadd.xlane.f32.xlu0 %v3955
        %v3957 = vpop.xlane.xlu0 %3956
        %v3958 = vmul.f32 %v3912, %v3861
        %v3959 = vmul.f32 %v3915, %v3861
        %v3960 = vmul.f32 %v3918, %v3861
        %v3961 = vmul.f32 %v3921, %v3861
        %v3962 = vmul.f32 %v3924, %v3861
        %v3963 = vmul.f32 %v3927, %v3861
        %v3964 = vmul.f32 %v3930, %v3861
        %v3965 = vmul.f32 %v3933, %v3861
        %v3966 = vmul.f32 %v3936, %v3861
        %v3967 = vmul.f32 %v3939, %v3861
        %v3968 = vmul.f32 %v3942, %v3861
        %v3969 = vmul.f32 %v3945, %v3861
        %v3970 = vmul.f32 %v3948, %v3861
        %v3971 = vmul.f32 %v3951, %v3861
        %v3972 = vmul.f32 %v3954, %v3861
        %v3973 = vmul.f32 %v3957, %v3861
        %v3974 = vadd.f32 %v3958, 1e-05
        %v3975 = vadd.f32 %v3959, 1e-05
        %v3976 = vadd.f32 %v3960, 1e-05
        %v3977 = vadd.f32 %v3961, 1e-05
        %v3978 = vadd.f32 %v3962, 1e-05
        %v3979 = vadd.f32 %v3963, 1e-05
        %v3980 = vadd.f32 %v3964, 1e-05
        %v3981 = vadd.f32 %v3965, 1e-05
        %v3982 = vadd.f32 %v3966, 1e-05
        %v3983 = vadd.f32 %v3967, 1e-05
        %v3984 = vadd.f32 %v3968, 1e-05
        %v3985 = vadd.f32 %v3969, 1e-05
        %v3986 = vadd.f32 %v3970, 1e-05
        %v3987 = vadd.f32 %v3971, 1e-05
        %v3988 = vadd.f32 %v3972, 1e-05
        %v3989 = vadd.f32 %v3973, 1e-05
        %v3990 = vrsqrt.pop %v3974
        %v3991 = vrsqrt.pop %v3975
        %v3992 = vrsqrt.pop %v3976
        %v3993 = vrsqrt.pop %v3977
        %v3994 = vrsqrt.pop %v3978
        %v3995 = vrsqrt.pop %v3979
        %v3996 = vrsqrt.pop %v3980
        %v3997 = vrsqrt.pop %v3981
        %v3998 = vrsqrt.pop %v3982
        %v3999 = vrsqrt.pop %v3983
        %v4000 = vrsqrt.pop %v3984
        %v4001 = vrsqrt.pop %v3985
        %v4002 = vrsqrt.pop %v3986
        %v4003 = vrsqrt.pop %v3987
        %v4004 = vrsqrt.pop %v3988
        %v4005 = vrsqrt.pop %v3989
        %v4006 = vmul.f32 %v3878, %v3990
        %v4007 = vmul.f32 %v3879, %v3991
        %v4008 = vmul.f32 %v3880, %v3992
        %v4009 = vmul.f32 %v3881, %v3993
        %v4010 = vmul.f32 %v3882, %v3994
        %v4011 = vmul.f32 %v3883, %v3995
        %v4012 = vmul.f32 %v3884, %v3996
        %v4013 = vmul.f32 %v3885, %v3997
        %v4014 = vmul.f32 %v3886, %v3998
        %v4015 = vmul.f32 %v3887, %v3999
        %v4016 = vmul.f32 %v3888, %v4000
        %v4017 = vmul.f32 %v3889, %v4001
        %v4018 = vmul.f32 %v3890, %v4002
        %v4019 = vmul.f32 %v3891, %v4003
        %v4020 = vmul.f32 %v3892, %v4004
        %v4021 = vmul.f32 %v3893, %v4005
        %v4022 = vld [vmem:[%s6] sm:$0x1]
        %v4024 = vlaneseq
        %v4025 = vshrl.u32 %v4024, 7
        %v4026 = vsub.s32 0, %v4025
        %v4027 = vrot.slane %v4022, %v4026
        %v4029 = vmul.f32 %v4006, %v4027
        %v4030 = vmul.f32 %v4007, %v4027
        %v4031 = vmul.f32 %v4008, %v4027
        %v4032 = vmul.f32 %v4009, %v4027
        %v4033 = vmul.f32 %v4010, %v4027
        %v4034 = vmul.f32 %v4011, %v4027
        %v4035 = vmul.f32 %v4012, %v4027
        %v4036 = vmul.f32 %v4013, %v4027
        %v4037 = vmul.f32 %v4014, %v4027
        %v4038 = vmul.f32 %v4015, %v4027
        %v4039 = vmul.f32 %v4016, %v4027
        %v4040 = vmul.f32 %v4017, %v4027
        %v4041 = vmul.f32 %v4018, %v4027
        %v4042 = vmul.f32 %v4019, %v4027
        %v4043 = vmul.f32 %v4020, %v4027
        %v4044 = vmul.f32 %v4021, %v4027
        %v4045 = vld [vmem:[%s7] sm:$0x1]
        %v4047 = vlaneseq
        %v4048 = vshrl.u32 %v4047, 7
        %v4049 = vsub.s32 0, %v4048
        %v4050 = vrot.slane %v4045, %v4049
        %v4052 = vadd.f32 %v4029, %v4050
        %v4053 = vadd.f32 %v4030, %v4050
        %v4054 = vadd.f32 %v4031, %v4050
        %v4055 = vadd.f32 %v4032, %v4050
        %v4056 = vadd.f32 %v4033, %v4050
        %v4057 = vadd.f32 %v4034, %v4050
        %v4058 = vadd.f32 %v4035, %v4050
        %v4059 = vadd.f32 %v4036, %v4050
        %v4060 = vadd.f32 %v4037, %v4050
        %v4061 = vadd.f32 %v4038, %v4050
        %v4062 = vadd.f32 %v4039, %v4050
        %v4063 = vadd.f32 %v4040, %v4050
        %v4064 = vadd.f32 %v4041, %v4050
        %v4065 = vadd.f32 %v4042, %v4050
        %v4066 = vadd.f32 %v4043, %v4050
        %v4067 = vadd.f32 %v4044, %v4050
        %v4068 = vpack.c.bf16 %v4053, %v4052
        %v4069 = vpack.c.bf16 %v4055, %v4054
        %v4070 = vpack.c.bf16 %v4057, %v4056
        %v4071 = vpack.c.bf16 %v4059, %v4058
        %v4072 = vpack.c.bf16 %v4061, %v4060
        %v4073 = vpack.c.bf16 %v4063, %v4062
        %v4074 = vpack.c.bf16 %v4065, %v4064
        %v4075 = vpack.c.bf16 %v4067, %v4066
        %v4076 = vld [vmem:[%s8] sm:$0xf]
        %v4077 = vld [vmem:[%s8 + $0x4] sm:$0xf]
        %v4078 = vld [vmem:[%s8 + $0x8] sm:$0xf]
        %v4079 = vld [vmem:[%s8 + $0xc] sm:$0xf]
        %v4080 = vld [vmem:[%s9] sm:$0x1]
        %v4082 = vlaneseq
        %v4083 = vshrl.u32 %v4082, 7
        %v4084 = vsub.s32 0, %v4083
        %v4085 = vrot.slane %v4080, %v4084
        %v4091 = vunpack.c.l.b16 %v4076
        %v4092 = vunpack.c.l.b16 %v4077
        %v4093 = vunpack.c.l.b16 %v4078
        %v4094 = vunpack.c.l.b16 %v4079
        %v4095 = vpack.c.b16 %v4092, %v4091
        %v4096 = vpack.c.b16 %v4094, %v4093
        %v4100 = vsel %vm1166, %v4068, 0
        %v4103 = vsel %vm1166, %v4069, 0
        %v4106 = vsel %vm1166, %v4070, 0
        %v4109 = vsel %vm1166, %v4071, 0
        %v4112 = vsel %vm1166, %v4072, 0
        %v4115 = vsel %vm1166, %v4073, 0
        %v4118 = vsel %vm1166, %v4074, 0
        %v4121 = vsel %vm1166, %v4075, 0
        %4123 = vmatprep.subr.bf16.mxu0 0
        %4124 = vmatpush1.bf16.msra.mxu0 %v4095
        %4125 = vmatprep.subr.bf16.mxu0 0
        %4126 = vmatpush1.bf16.msra.mxu0 %v4096
        %4127 = vmatprep.subr.bf16.mxu0 0
        %4128 = vmatpush1.bf16.msra.mxu0 0
        %4129 = vmatprep.subr.bf16.mxu0 0
        %4130 = vmatpush1.bf16.msra.mxu0 0
        %4131 = vmatprep.subr.bf16.mxu0 0
        %4132 = vmatpush1.bf16.msra.mxu0 0
        %4133 = vmatprep.subr.bf16.mxu0 0
        %4134 = vmatpush1.bf16.msra.mxu0 0
        %4135 = vmatprep.subr.bf16.mxu0 0
        %4136 = vmatpush1.bf16.msra.mxu0 0
        %4137 = vmatprep.subr.bf16.mxu0 0
        %4138 = vmatpush1.bf16.msra.mxu0 0
        %4139 = vmatprep.subr.bf16.mxu0 0
        %4140 = vmatpush1.bf16.msra.mxu0 0
        %4141 = vmatprep.subr.bf16.mxu0 0
        %4142 = vmatpush1.bf16.msra.mxu0 0
        %4143 = vmatprep.subr.bf16.mxu0 0
        %4144 = vmatpush1.bf16.msra.mxu0 0
        %4145 = vmatprep.subr.bf16.mxu0 0
        %4146 = vmatpush1.bf16.msra.mxu0 0
        %4147 = vmatprep.subr.bf16.mxu0 0
        %4148 = vmatpush1.bf16.msra.mxu0 0
        %4149 = vmatprep.subr.bf16.mxu0 0
        %4150 = vmatpush1.bf16.msra.mxu0 0
        %4151 = vmatprep.subr.bf16.mxu0 0
        %4152 = vmatpush1.bf16.msra.mxu0 0
        %4153 = vmatprep.subr.bf16.mxu0 0
        %4154 = vmatpush1.bf16.msra.mxu0 0
        %4155 = vmatprep.mubr.bf16.mxu0 0
        %4156 = vmatmul.mubr.bf16.gmra.mrb[0].mxu0 %v4100
        %v4157 = vpop.f32.mrb[0].mxu0
        %v4158 = vadd.f32 %v4085, %v4157
        %v4159 = vpop.f32.mrb[0].mxu0
        %v4160 = vpop.f32.mrb[0].mxu0
        %v4161 = vadd.f32 %v4085, %v4160
        %v4162 = vpop.f32.mrb[0].mxu0
        %4163 = vmatprep.mubr.bf16.mxu0 0
        %4164 = vmatmul.mubr.bf16.gmra.mrb[0].mxu0 %v4103
        %v4165 = vpop.f32.mrb[0].mxu0
        %v4166 = vadd.f32 %v4085, %v4165
        %v4167 = vpop.f32.mrb[0].mxu0
        %v4168 = vpop.f32.mrb[0].mxu0
        %v4169 = vadd.f32 %v4085, %v4168
        %v4170 = vpop.f32.mrb[0].mxu0
        %4171 = vmatprep.mubr.bf16.mxu0 0
        %4172 = vmatmul.mubr.bf16.gmra.mrb[0].mxu0 %v4106
        %v4173 = vpop.f32.mrb[0].mxu0
        %v4174 = vadd.f32 %v4085, %v4173
        %v4175 = vpop.f32.mrb[0].mxu0
        %v4176 = vpop.f32.mrb[0].mxu0
        %v4177 = vadd.f32 %v4085, %v4176
        %v4178 = vpop.f32.mrb[0].mxu0
        %4179 = vmatprep.mubr.bf16.mxu0 0
        %4180 = vmatmul.mubr.bf16.gmra.mrb[0].mxu0 %v4109
        %v4181 = vpop.f32.mrb[0].mxu0
        %v4182 = vadd.f32 %v4085, %v4181
        %v4183 = vpop.f32.mrb[0].mxu0
        %v4184 = vpop.f32.mrb[0].mxu0
        %v4185 = vadd.f32 %v4085, %v4184
        %v4186 = vpop.f32.mrb[0].mxu0
        %4187 = vmatprep.mubr.bf16.mxu0 0
        %4188 = vmatmul.mubr.bf16.gmra.mrb[0].mxu0 %v4112
        %v4189 = vpop.f32.mrb[0].mxu0
        %v4190 = vadd.f32 %v4085, %v4189
        %v4191 = vpop.f32.mrb[0].mxu0
        %v4192 = vpop.f32.mrb[0].mxu0
        %v4193 = vadd.f32 %v4085, %v4192
        %v4194 = vpop.f32.mrb[0].mxu0
        %4195 = vmatprep.mubr.bf16.mxu0 0
        %4196 = vmatmul.mubr.bf16.gmra.mrb[0].mxu0 %v4115
        %v4197 = vpop.f32.mrb[0].mxu0
        %v4198 = vadd.f32 %v4085, %v4197
        %v4199 = vpop.f32.mrb[0].mxu0
        %v4200 = vpop.f32.mrb[0].mxu0
        %v4201 = vadd.f32 %v4085, %v4200
        %v4202 = vpop.f32.mrb[0].mxu0
        %4203 = vmatprep.mubr.bf16.mxu0 0
        %4204 = vmatmul.mubr.bf16.gmra.mrb[0].mxu0 %v4118
        %v4205 = vpop.f32.mrb[0].mxu0
        %v4206 = vadd.f32 %v4085, %v4205
        %v4207 = vpop.f32.mrb[0].mxu0
        %v4208 = vpop.f32.mrb[0].mxu0
        %v4209 = vadd.f32 %v4085, %v4208
        %v4210 = vpop.f32.mrb[0].mxu0
        %4211 = vmatprep.mubr.bf16.mxu0 0
        %4212 = vmatmul.mubr.bf16.gmra.mrb[0].mxu0 %v4121
        %v4213 = vpop.f32.mrb[0].mxu0
        %v4214 = vadd.f32 %v4085, %v4213
        %v4215 = vpop.f32.mrb[0].mxu0
        %v4216 = vpop.f32.mrb[0].mxu0
        %v4217 = vadd.f32 %v4085, %v4216
        %v4218 = vpop.f32.mrb[0].mxu0
        %4219 = vdwg.mxu0
        %v4220 = vmax.f32 %v4158, 0.0
        %v4221 = vmax.f32 %v4161, 0.0
        %v4222 = vmax.f32 %v4166, 0.0
        %v4223 = vmax.f32 %v4169, 0.0
        %v4224 = vmax.f32 %v4174, 0.0
        %v4225 = vmax.f32 %v4177, 0.0
        %v4226 = vmax.f32 %v4182, 0.0
        %v4227 = vmax.f32 %v4185, 0.0
        %v4228 = vmax.f32 %v4190, 0.0
        %v4229 = vmax.f32 %v4193, 0.0
        %v4230 = vmax.f32 %v4198, 0.0
        %v4231 = vmax.f32 %v4201, 0.0
        %v4232 = vmax.f32 %v4206, 0.0
        %v4233 = vmax.f32 %v4209, 0.0
        %v4234 = vmax.f32 %v4214, 0.0
        %v4235 = vmax.f32 %v4217, 0.0
        %v4236 = vpack.c.bf16 %v4221, %v4220
        %v4237 = vpack.c.bf16 %v4223, %v4222
        %v4238 = vpack.c.bf16 %v4225, %v4224
        %v4239 = vpack.c.bf16 %v4227, %v4226
        %v4240 = vpack.c.bf16 %v4229, %v4228
        %v4241 = vpack.c.bf16 %v4231, %v4230
        %v4242 = vpack.c.bf16 %v4233, %v4232
        %v4243 = vpack.c.bf16 %v4235, %v4234
        %v4244 = vld [vmem:[%s10] sm:$0xf]
        %v4245 = vld [vmem:[%s10 + $0x4] sm:$0xf]
        %v4246 = vld [vmem:[%s10 + $0x8] sm:$0xf]
        %v4247 = vld [vmem:[%s10 + $0xc] sm:$0xf]
        %v4248 = vld [vmem:[%s10 + $0x10] sm:$0xf]
        %v4249 = vld [vmem:[%s10 + $0x14] sm:$0xf]
        %v4250 = vld [vmem:[%s10 + $0x18] sm:$0xf]
        %v4251 = vld [vmem:[%s10 + $0x1c] sm:$0xf]
        %v4252 = vld [vmem:[%s11] sm:$0x1]
        %v4254 = vlaneseq
        %v4255 = vshrl.u32 %v4254, 7
        %v4256 = vsub.s32 0, %v4255
        %v4257 = vrot.slane %v4252, %v4256
        %v4267 = vunpack.c.l.b16 %v4244
        %v4268 = vunpack.c.l.b16 %v4245
        %v4269 = vunpack.c.l.b16 %v4246
        %v4270 = vunpack.c.l.b16 %v4247
        %v4271 = vunpack.c.l.b16 %v4248
        %v4272 = vunpack.c.l.b16 %v4249
        %v4273 = vunpack.c.l.b16 %v4250
        %v4274 = vunpack.c.l.b16 %v4251
        %v4275 = vpack.c.b16 %v4268, %v4267
        %v4276 = vpack.c.b16 %v4270, %v4269
        %v4277 = vpack.c.b16 %v4272, %v4271
        %v4278 = vpack.c.b16 %v4274, %v4273
        %vm4283 = vcmask 523264
        %v4285 = vsel %vm4283, %v4236, 0
        %v4288 = vsel %vm4283, %v4237, 0
        %v4291 = vsel %vm4283, %v4238, 0
        %v4294 = vsel %vm4283, %v4239, 0
        %v4297 = vsel %vm4283, %v4240, 0
        %v4300 = vsel %vm4283, %v4241, 0
        %v4303 = vsel %vm4283, %v4242, 0
        %v4306 = vsel %vm4283, %v4243, 0
        %4308 = vmatprep.subr.bf16.mxu0 0
        %4309 = vmatpush1.bf16.msra.mxu0 %v4275
        %4310 = vmatprep.subr.bf16.mxu0 0
        %4311 = vmatpush1.bf16.msra.mxu0 %v4276
        %4312 = vmatprep.subr.bf16.mxu0 0
        %4313 = vmatpush1.bf16.msra.mxu0 %v4277
        %4314 = vmatprep.subr.bf16.mxu0 0
        %4315 = vmatpush1.bf16.msra.mxu0 %v4278
        %4316 = vmatprep.subr.bf16.mxu0 0
        %4317 = vmatpush1.bf16.msra.mxu0 0
        %4318 = vmatprep.subr.bf16.mxu0 0
        %4319 = vmatpush1.bf16.msra.mxu0 0
        %4320 = vmatprep.subr.bf16.mxu0 0
        %4321 = vmatpush1.bf16.msra.mxu0 0
        %4322 = vmatprep.subr.bf16.mxu0 0
        %4323 = vmatpush1.bf16.msra.mxu0 0
        %4324 = vmatprep.subr.bf16.mxu0 0
        %4325 = vmatpush1.bf16.msra.mxu0 0
        %4326 = vmatprep.subr.bf16.mxu0 0
        %4327 = vmatpush1.bf16.msra.mxu0 0
        %4328 = vmatprep.subr.bf16.mxu0 0
        %4329 = vmatpush1.bf16.msra.mxu0 0
        %4330 = vmatprep.subr.bf16.mxu0 0
        %4331 = vmatpush1.bf16.msra.mxu0 0
        %4332 = vmatprep.subr.bf16.mxu0 0
        %4333 = vmatpush1.bf16.msra.mxu0 0
        %4334 = vmatprep.subr.bf16.mxu0 0
        %4335 = vmatpush1.bf16.msra.mxu0 0
        %4336 = vmatprep.subr.bf16.mxu0 0
        %4337 = vmatpush1.bf16.msra.mxu0 0
        %4338 = vmatprep.subr.bf16.mxu0 0
        %4339 = vmatpush1.bf16.msra.mxu0 0
        %4340 = vmatprep.mubr.bf16.mxu0 0
        %4341 = vmatmul.mubr.bf16.gmra.mrb[0].mxu0 %v4285
        %v4342 = vpop.f32.mrb[0].mxu0
        %v4343 = vadd.f32 %v4257, %v4342
        %v4344 = vpop.f32.mrb[0].mxu0
        %v4345 = vpop.f32.mrb[0].mxu0
        %v4346 = vadd.f32 %v4257, %v4345
        %v4347 = vpop.f32.mrb[0].mxu0
        %4348 = vmatprep.mubr.bf16.mxu0 0
        %4349 = vmatmul.mubr.bf16.gmra.mrb[0].mxu0 %v4288
        %v4350 = vpop.f32.mrb[0].mxu0
        %v4351 = vadd.f32 %v4257, %v4350
        %v4352 = vpop.f32.mrb[0].mxu0
        %v4353 = vpop.f32.mrb[0].mxu0
        %v4354 = vadd.f32 %v4257, %v4353
        %v4355 = vpop.f32.mrb[0].mxu0
        %4356 = vmatprep.mubr.bf16.mxu0 0
        %4357 = vmatmul.mubr.bf16.gmra.mrb[0].mxu0 %v4291
        %v4358 = vpop.f32.mrb[0].mxu0
        %v4359 = vadd.f32 %v4257, %v4358
        %v4360 = vpop.f32.mrb[0].mxu0
        %v4361 = vpop.f32.mrb[0].mxu0
        %v4362 = vadd.f32 %v4257, %v4361
        %v4363 = vpop.f32.mrb[0].mxu0
        %4364 = vmatprep.mubr.bf16.mxu0 0
        %4365 = vmatmul.mubr.bf16.gmra.mrb[0].mxu0 %v4294
        %v4366 = vpop.f32.mrb[0].mxu0
        %v4367 = vadd.f32 %v4257, %v4366
        %v4368 = vpop.f32.mrb[0].mxu0
        %v4369 = vpop.f32.mrb[0].mxu0
        %v4370 = vadd.f32 %v4257, %v4369
        %v4371 = vpop.f32.mrb[0].mxu0
        %4372 = vmatprep.mubr.bf16.mxu0 0
        %4373 = vmatmul.mubr.bf16.gmra.mrb[0].mxu0 %v4297
        %v4374 = vpop.f32.mrb[0].mxu0
        %v4375 = vadd.f32 %v4257, %v4374
        %v4376 = vpop.f32.mrb[0].mxu0
        %v4377 = vpop.f32.mrb[0].mxu0
        %v4378 = vadd.f32 %v4257, %v4377
        %v4379 = vpop.f32.mrb[0].mxu0
        %4380 = vmatprep.mubr.bf16.mxu0 0
        %4381 = vmatmul.mubr.bf16.gmra.mrb[0].mxu0 %v4300
        %v4382 = vpop.f32.mrb[0].mxu0
        %v4383 = vadd.f32 %v4257, %v4382
        %v4384 = vpop.f32.mrb[0].mxu0
        %v4385 = vpop.f32.mrb[0].mxu0
        %v4386 = vadd.f32 %v4257, %v4385
        %v4387 = vpop.f32.mrb[0].mxu0
        %4388 = vmatprep.mubr.bf16.mxu0 0
        %4389 = vmatmul.mubr.bf16.gmra.mrb[0].mxu0 %v4303
        %v4390 = vpop.f32.mrb[0].mxu0
        %v4391 = vadd.f32 %v4257, %v4390
        %v4392 = vpop.f32.mrb[0].mxu0
        %v4393 = vpop.f32.mrb[0].mxu0
        %v4394 = vadd.f32 %v4257, %v4393
        %v4395 = vpop.f32.mrb[0].mxu0
        %4396 = vmatprep.mubr.bf16.mxu0 0
        %4397 = vmatmul.mubr.bf16.gmra.mrb[0].mxu0 %v4306
        %v4398 = vpop.f32.mrb[0].mxu0
        %v4399 = vadd.f32 %v4257, %v4398
        %v4400 = vpop.f32.mrb[0].mxu0
        %v4401 = vpop.f32.mrb[0].mxu0
        %v4402 = vadd.f32 %v4257, %v4401
        %v4403 = vpop.f32.mrb[0].mxu0
        %4404 = vdwg.mxu0
        %v4405 = vadd.f32 %v4343, %v4052
        %v4406 = vadd.f32 %v4346, %v4053
        %v4407 = vadd.f32 %v4351, %v4054
        %v4408 = vadd.f32 %v4354, %v4055
        %v4409 = vadd.f32 %v4359, %v4056
        %v4410 = vadd.f32 %v4362, %v4057
        %v4411 = vadd.f32 %v4367, %v4058
        %v4412 = vadd.f32 %v4370, %v4059
        %v4413 = vadd.f32 %v4375, %v4060
        %v4414 = vadd.f32 %v4378, %v4061
        %v4415 = vadd.f32 %v4383, %v4062
        %v4416 = vadd.f32 %v4386, %v4063
        %v4417 = vadd.f32 %v4391, %v4064
        %v4418 = vadd.f32 %v4394, %v4065
        %v4419 = vadd.f32 %v4399, %v4066
        %v4420 = vadd.f32 %v4402, %v4067
        %v4421 = vsel %vm1166, %v4405, 0.0
        %4422 = vadd.xlane.f32.xlu0 %v4421
        %v4423 = vpop.xlane.xlu0 %4422
        %v4424 = vsel %vm1166, %v4406, 0.0
        %4425 = vadd.xlane.f32.xlu0 %v4424
        %v4426 = vpop.xlane.xlu0 %4425
        %v4427 = vsel %vm1166, %v4407, 0.0
        %4428 = vadd.xlane.f32.xlu0 %v4427
        %v4429 = vpop.xlane.xlu0 %4428
        %v4430 = vsel %vm1166, %v4408, 0.0
        %4431 = vadd.xlane.f32.xlu0 %v4430
        %v4432 = vpop.xlane.xlu0 %4431
        %v4433 = vsel %vm1166, %v4409, 0.0
        %4434 = vadd.xlane.f32.xlu0 %v4433
        %v4435 = vpop.xlane.xlu0 %4434
        %v4436 = vsel %vm1166, %v4410, 0.0
        %4437 = vadd.xlane.f32.xlu0 %v4436
        %v4438 = vpop.xlane.xlu0 %4437
        %v4439 = vsel %vm1166, %v4411, 0.0
        %4440 = vadd.xlane.f32.xlu0 %v4439
        %v4441 = vpop.xlane.xlu0 %4440
        %v4442 = vsel %vm1166, %v4412, 0.0
        %4443 = vadd.xlane.f32.xlu0 %v4442
        %v4444 = vpop.xlane.xlu0 %4443
        %v4445 = vsel %vm1166, %v4413, 0.0
        %4446 = vadd.xlane.f32.xlu0 %v4445
        %v4447 = vpop.xlane.xlu0 %4446
        %v4448 = vsel %vm1166, %v4414, 0.0
        %4449 = vadd.xlane.f32.xlu0 %v4448
        %v4450 = vpop.xlane.xlu0 %4449
        %v4451 = vsel %vm1166, %v4415, 0.0
        %4452 = vadd.xlane.f32.xlu0 %v4451
        %v4453 = vpop.xlane.xlu0 %4452
        %v4454 = vsel %vm1166, %v4416, 0.0
        %4455 = vadd.xlane.f32.xlu0 %v4454
        %v4456 = vpop.xlane.xlu0 %4455
        %v4457 = vsel %vm1166, %v4417, 0.0
        %4458 = vadd.xlane.f32.xlu0 %v4457
        %v4459 = vpop.xlane.xlu0 %4458
        %v4460 = vsel %vm1166, %v4418, 0.0
        %4461 = vadd.xlane.f32.xlu0 %v4460
        %v4462 = vpop.xlane.xlu0 %4461
        %v4463 = vsel %vm1166, %v4419, 0.0
        %4464 = vadd.xlane.f32.xlu0 %v4463
        %v4465 = vpop.xlane.xlu0 %4464
        %v4466 = vsel %vm1166, %v4420, 0.0
        %4467 = vadd.xlane.f32.xlu0 %v4466
        %v4468 = vpop.xlane.xlu0 %4467
        %v4469 = vmul.f32 %v4423, %v3861
        %v4470 = vmul.f32 %v4426, %v3861
        %v4471 = vmul.f32 %v4429, %v3861
        %v4472 = vmul.f32 %v4432, %v3861
        %v4473 = vmul.f32 %v4435, %v3861
        %v4474 = vmul.f32 %v4438, %v3861
        %v4475 = vmul.f32 %v4441, %v3861
        %v4476 = vmul.f32 %v4444, %v3861
        %v4477 = vmul.f32 %v4447, %v3861
        %v4478 = vmul.f32 %v4450, %v3861
        %v4479 = vmul.f32 %v4453, %v3861
        %v4480 = vmul.f32 %v4456, %v3861
        %v4481 = vmul.f32 %v4459, %v3861
        %v4482 = vmul.f32 %v4462, %v3861
        %v4483 = vmul.f32 %v4465, %v3861
        %v4484 = vmul.f32 %v4468, %v3861
        %v4485 = vsub.f32 %v4405, %v4469
        %v4486 = vsub.f32 %v4406, %v4470
        %v4487 = vsub.f32 %v4407, %v4471
        %v4488 = vsub.f32 %v4408, %v4472
        %v4489 = vsub.f32 %v4409, %v4473
        %v4490 = vsub.f32 %v4410, %v4474
        %v4491 = vsub.f32 %v4411, %v4475
        %v4492 = vsub.f32 %v4412, %v4476
        %v4493 = vsub.f32 %v4413, %v4477
        %v4494 = vsub.f32 %v4414, %v4478
        %v4495 = vsub.f32 %v4415, %v4479
        %v4496 = vsub.f32 %v4416, %v4480
        %v4497 = vsub.f32 %v4417, %v4481
        %v4498 = vsub.f32 %v4418, %v4482
        %v4499 = vsub.f32 %v4419, %v4483
        %v4500 = vsub.f32 %v4420, %v4484
        %v4501 = vmul.f32 %v4485, %v4485
        %v4502 = vmul.f32 %v4486, %v4486
        %v4503 = vmul.f32 %v4487, %v4487
        %v4504 = vmul.f32 %v4488, %v4488
        %v4505 = vmul.f32 %v4489, %v4489
        %v4506 = vmul.f32 %v4490, %v4490
        %v4507 = vmul.f32 %v4491, %v4491
        %v4508 = vmul.f32 %v4492, %v4492
        %v4509 = vmul.f32 %v4493, %v4493
        %v4510 = vmul.f32 %v4494, %v4494
        %v4511 = vmul.f32 %v4495, %v4495
        %v4512 = vmul.f32 %v4496, %v4496
        %v4513 = vmul.f32 %v4497, %v4497
        %v4514 = vmul.f32 %v4498, %v4498
        %v4515 = vmul.f32 %v4499, %v4499
        %v4516 = vmul.f32 %v4500, %v4500
        %v4517 = vsel %vm1166, %v4501, 0.0
        %4518 = vadd.xlane.f32.xlu0 %v4517
        %v4519 = vpop.xlane.xlu0 %4518
        %v4520 = vsel %vm1166, %v4502, 0.0
        %4521 = vadd.xlane.f32.xlu0 %v4520
        %v4522 = vpop.xlane.xlu0 %4521
        %v4523 = vsel %vm1166, %v4503, 0.0
        %4524 = vadd.xlane.f32.xlu0 %v4523
        %v4525 = vpop.xlane.xlu0 %4524
        %v4526 = vsel %vm1166, %v4504, 0.0
        %4527 = vadd.xlane.f32.xlu0 %v4526
        %v4528 = vpop.xlane.xlu0 %4527
        %v4529 = vsel %vm1166, %v4505, 0.0
        %4530 = vadd.xlane.f32.xlu0 %v4529
        %v4531 = vpop.xlane.xlu0 %4530
        %v4532 = vsel %vm1166, %v4506, 0.0
        %4533 = vadd.xlane.f32.xlu0 %v4532
        %v4534 = vpop.xlane.xlu0 %4533
        %v4535 = vsel %vm1166, %v4507, 0.0
        %4536 = vadd.xlane.f32.xlu0 %v4535
        %v4537 = vpop.xlane.xlu0 %4536
        %v4538 = vsel %vm1166, %v4508, 0.0
        %4539 = vadd.xlane.f32.xlu0 %v4538
        %v4540 = vpop.xlane.xlu0 %4539
        %v4541 = vsel %vm1166, %v4509, 0.0
        %4542 = vadd.xlane.f32.xlu0 %v4541
        %v4543 = vpop.xlane.xlu0 %4542
        %v4544 = vsel %vm1166, %v4510, 0.0
        %4545 = vadd.xlane.f32.xlu0 %v4544
        %v4546 = vpop.xlane.xlu0 %4545
        %v4547 = vsel %vm1166, %v4511, 0.0
        %4548 = vadd.xlane.f32.xlu0 %v4547
        %v4549 = vpop.xlane.xlu0 %4548
        %v4550 = vsel %vm1166, %v4512, 0.0
        %4551 = vadd.xlane.f32.xlu0 %v4550
        %v4552 = vpop.xlane.xlu0 %4551
        %v4553 = vsel %vm1166, %v4513, 0.0
        %4554 = vadd.xlane.f32.xlu0 %v4553
        %v4555 = vpop.xlane.xlu0 %4554
        %v4556 = vsel %vm1166, %v4514, 0.0
        %4557 = vadd.xlane.f32.xlu0 %v4556
        %v4558 = vpop.xlane.xlu0 %4557
        %v4559 = vsel %vm1166, %v4515, 0.0
        %4560 = vadd.xlane.f32.xlu0 %v4559
        %v4561 = vpop.xlane.xlu0 %4560
        %v4562 = vsel %vm1166, %v4516, 0.0
        %4563 = vadd.xlane.f32.xlu0 %v4562
        %v4564 = vpop.xlane.xlu0 %4563
        %v4565 = vmul.f32 %v4519, %v3861
        %v4566 = vmul.f32 %v4522, %v3861
        %v4567 = vmul.f32 %v4525, %v3861
        %v4568 = vmul.f32 %v4528, %v3861
        %v4569 = vmul.f32 %v4531, %v3861
        %v4570 = vmul.f32 %v4534, %v3861
        %v4571 = vmul.f32 %v4537, %v3861
        %v4572 = vmul.f32 %v4540, %v3861
        %v4573 = vmul.f32 %v4543, %v3861
        %v4574 = vmul.f32 %v4546, %v3861
        %v4575 = vmul.f32 %v4549, %v3861
        %v4576 = vmul.f32 %v4552, %v3861
        %v4577 = vmul.f32 %v4555, %v3861
        %v4578 = vmul.f32 %v4558, %v3861
        %v4579 = vmul.f32 %v4561, %v3861
        %v4580 = vmul.f32 %v4564, %v3861
        %v4581 = vadd.f32 %v4565, 1e-05
        %v4582 = vadd.f32 %v4566, 1e-05
        %v4583 = vadd.f32 %v4567, 1e-05
        %v4584 = vadd.f32 %v4568, 1e-05
        %v4585 = vadd.f32 %v4569, 1e-05
        %v4586 = vadd.f32 %v4570, 1e-05
        %v4587 = vadd.f32 %v4571, 1e-05
        %v4588 = vadd.f32 %v4572, 1e-05
        %v4589 = vadd.f32 %v4573, 1e-05
        %v4590 = vadd.f32 %v4574, 1e-05
        %v4591 = vadd.f32 %v4575, 1e-05
        %v4592 = vadd.f32 %v4576, 1e-05
        %v4593 = vadd.f32 %v4577, 1e-05
        %v4594 = vadd.f32 %v4578, 1e-05
        %v4595 = vadd.f32 %v4579, 1e-05
        %v4596 = vadd.f32 %v4580, 1e-05
        %v4597 = vrsqrt.pop %v4581
        %v4598 = vrsqrt.pop %v4582
        %v4599 = vrsqrt.pop %v4583
        %v4600 = vrsqrt.pop %v4584
        %v4601 = vrsqrt.pop %v4585
        %v4602 = vrsqrt.pop %v4586
        %v4603 = vrsqrt.pop %v4587
        %v4604 = vrsqrt.pop %v4588
        %v4605 = vrsqrt.pop %v4589
        %v4606 = vrsqrt.pop %v4590
        %v4607 = vrsqrt.pop %v4591
        %v4608 = vrsqrt.pop %v4592
        %v4609 = vrsqrt.pop %v4593
        %v4610 = vrsqrt.pop %v4594
        %v4611 = vrsqrt.pop %v4595
        %v4612 = vrsqrt.pop %v4596
        %v4613 = vmul.f32 %v4485, %v4597
        %v4614 = vmul.f32 %v4486, %v4598
        %v4615 = vmul.f32 %v4487, %v4599
        %v4616 = vmul.f32 %v4488, %v4600
        %v4617 = vmul.f32 %v4489, %v4601
        %v4618 = vmul.f32 %v4490, %v4602
        %v4619 = vmul.f32 %v4491, %v4603
        %v4620 = vmul.f32 %v4492, %v4604
        %v4621 = vmul.f32 %v4493, %v4605
        %v4622 = vmul.f32 %v4494, %v4606
        %v4623 = vmul.f32 %v4495, %v4607
        %v4624 = vmul.f32 %v4496, %v4608
        %v4625 = vmul.f32 %v4497, %v4609
        %v4626 = vmul.f32 %v4498, %v4610
        %v4627 = vmul.f32 %v4499, %v4611
        %v4628 = vmul.f32 %v4500, %v4612
        %v4629 = vld [vmem:[%s12] sm:$0x1]
        %v4631 = vlaneseq
        %v4632 = vshrl.u32 %v4631, 7
        %v4633 = vsub.s32 0, %v4632
        %v4634 = vrot.slane %v4629, %v4633
        %v4636 = vmul.f32 %v4613, %v4634
        %v4637 = vmul.f32 %v4614, %v4634
        %v4638 = vmul.f32 %v4615, %v4634
        %v4639 = vmul.f32 %v4616, %v4634
        %v4640 = vmul.f32 %v4617, %v4634
        %v4641 = vmul.f32 %v4618, %v4634
        %v4642 = vmul.f32 %v4619, %v4634
        %v4643 = vmul.f32 %v4620, %v4634
        %v4644 = vmul.f32 %v4621, %v4634
        %v4645 = vmul.f32 %v4622, %v4634
        %v4646 = vmul.f32 %v4623, %v4634
        %v4647 = vmul.f32 %v4624, %v4634
        %v4648 = vmul.f32 %v4625, %v4634
        %v4649 = vmul.f32 %v4626, %v4634
        %v4650 = vmul.f32 %v4627, %v4634
        %v4651 = vmul.f32 %v4628, %v4634
        %v4652 = vld [vmem:[%s13] sm:$0x1]
        %v4654 = vlaneseq
        %v4655 = vshrl.u32 %v4654, 7
        %v4656 = vsub.s32 0, %v4655
        %v4657 = vrot.slane %v4652, %v4656
        %v4659 = vadd.f32 %v4636, %v4657
        %v4660 = vadd.f32 %v4637, %v4657
        %v4661 = vadd.f32 %v4638, %v4657
        %v4662 = vadd.f32 %v4639, %v4657
        %v4663 = vadd.f32 %v4640, %v4657
        %v4664 = vadd.f32 %v4641, %v4657
        %v4665 = vadd.f32 %v4642, %v4657
        %v4666 = vadd.f32 %v4643, %v4657
        %v4667 = vadd.f32 %v4644, %v4657
        %v4668 = vadd.f32 %v4645, %v4657
        %v4669 = vadd.f32 %v4646, %v4657
        %v4670 = vadd.f32 %v4647, %v4657
        %v4671 = vadd.f32 %v4648, %v4657
        %v4672 = vadd.f32 %v4649, %v4657
        %v4673 = vadd.f32 %v4650, %v4657
        %v4674 = vadd.f32 %v4651, %v4657
        %4675 = vst.msk [vmem:[%s529] sm:$0xff] %vm1166, %v4659
        %4676 = vst.msk [vmem:[%s529 + $0x8] sm:$0xff] %vm1166, %v4660
        %4677 = vst.msk [vmem:[%s529 + $0x10] sm:$0xff] %vm1166, %v4661
        %4678 = vst.msk [vmem:[%s529 + $0x18] sm:$0xff] %vm1166, %v4662
        %4679 = vst.msk [vmem:[%s529 + $0x20] sm:$0xff] %vm1166, %v4663
        %4680 = vst.msk [vmem:[%s529 + $0x28] sm:$0xff] %vm1166, %v4664
        %4681 = vst.msk [vmem:[%s529 + $0x30] sm:$0xff] %vm1166, %v4665
        %4682 = vst.msk [vmem:[%s529 + $0x38] sm:$0xff] %vm1166, %v4666
        %4683 = vst.msk [vmem:[%s529 + $0x40] sm:$0xff] %vm1166, %v4667
        %4684 = vst.msk [vmem:[%s529 + $0x48] sm:$0xff] %vm1166, %v4668
        %4685 = vst.msk [vmem:[%s529 + $0x50] sm:$0xff] %vm1166, %v4669
        %4686 = vst.msk [vmem:[%s529 + $0x58] sm:$0xff] %vm1166, %v4670
        %4687 = vst.msk [vmem:[%s529 + $0x60] sm:$0xff] %vm1166, %v4671
        %4688 = vst.msk [vmem:[%s529 + $0x68] sm:$0xff] %vm1166, %v4672
        %4689 = vst.msk [vmem:[%s529 + $0x70] sm:$0xff] %vm1166, %v4673
        %4690 = vst.msk [vmem:[%s529 + $0x78] sm:$0xff] %vm1166, %v4674
        %s4691 = smul.u32 16, %s35
        %p4692 = scmp.lt.s32.totalorder %s34, 1
        %s4693 = scalar_select %p4692, %s34, 1
        %p4694 = scmp.lt.s32.totalorder %s4691, 15
        %s4695 = scalar_select %p4694, %s4691, 15
        %s4696 = smul.addr %s4693, 16
        %s4697 = sadd.s32 %s4695, %s4696
        %s4698 = smul.addr %s4697, 8
        %s4699 = scalar_lea.vmem %s14, %s4698
        %s4700 = sand.u32 %s379, 1
        %s4701 = scalar_lea.sflag [#allocation7], %s4700
        %s4702 = sand.u32 %s379, 1
        %s4703 = smul.addr %s4702, 256
        %s4704 = scalar_lea.vmem [#allocation6], %s4703
        // Predicated region
        $region81: #{tpu_custom_call.1} parent=75 // pred_check
          %p4705 = pneg %p361
        $region82: #{tpu_custom_call.1} parent=75 // pred_check_branch
          %4707 = sbr.rel (%p4705) target = $region84
        $region83: #{tpu_custom_call.1} parent=75 // pred_region
          %s4708 = smul.u32 16, %s35
        $region84: #{tpu_custom_call.1} parent=75 // pred_fallthru
          _
        // Predicated region
        $region85: #{tpu_custom_call.1} parent=75 // pred_check
          %p4709 = pneg %p389
        $region86: #{tpu_custom_call.1} parent=75 // pred_check_branch
          %4711 = sbr.rel (%p4709) target = $region88
        $region87: #{tpu_custom_call.1} parent=75 // pred_region
          %s4712 = smul.u32 16, %s35
          %s4714 = ssub.s32 4096, 4096
          %4715 = vsyncadd %s4701, %s4714
          %s4716 = smul.addr %s34, 64
          %s4717 = sadd.s32 %s4712, %s4716
          %s4718 = smul.addr %s4717, 64
          %s4719 = scalar_lea.hbm %s15, %s4718
          %s4720 = sshll.u32 %s4704, 4
          %s4721 = int_to_ptr.vmem [resolvable:$true] %s4720
          %4726 = dma.vmem_to_hbm [thread:$0]  %s4721, 4096, %s4719, %s4701, 64, 64, 4
        $region88: #{tpu_custom_call.1} parent=75 // pred_fallthru
          _
      $region76: #{tpu_custom_call.1} parent=5 // pred_fallthru
        _
      %p4727 = scmp.le.s32.totalorder 2, %s25
      // Predicated region
      $region89: #{tpu_custom_call.1} parent=5 // pred_check
        %p4728 = pneg %p4727
      $region90: #{tpu_custom_call.1} parent=5 // pred_check_branch
        %4730 = sbr.rel (%p4728) target = $region92
      $region91: #{tpu_custom_call.1} parent=5 // pred_region
        %s4731 = ssub.s32 %s25, 2
        // Predicated region
        $region93: #{tpu_custom_call.1} parent=91 // pred_check
          %p4732 = pneg %p367
        $region94: #{tpu_custom_call.1} parent=91 // pred_check_branch
          %4734 = sbr.rel (%p4732) target = $region96
        $region95: #{tpu_custom_call.1} parent=91 // pred_region
          %s4735 = smul.u32 16, %s37
          %p4736 = scmp.lt.s32.totalorder %s36, 1
          %s4737 = scalar_select %p4736, %s36, 1
          %p4738 = scmp.lt.s32.totalorder %s4735, 15
          %s4739 = scalar_select %p4738, %s4735, 15
          %s4740 = smul.addr %s4737, 16
          %s4741 = sadd.s32 %s4739, %s4740
          %s4742 = smul.addr %s4741, 8
          %s4743 = scalar_lea.vmem %s14, %s4742
        $region96: #{tpu_custom_call.1} parent=91 // pred_fallthru
          _
        // Predicated region
        $region97: #{tpu_custom_call.1} parent=91 // pred_check
          %p4744 = pneg %p395
        $region98: #{tpu_custom_call.1} parent=91 // pred_check_branch
          %4746 = sbr.rel (%p4744) target = $region100
        $region99: #{tpu_custom_call.1} parent=91 // pred_region
          %s4747 = sand.u32 %s380, 1
          %s4748 = scalar_lea.sflag [#allocation7], %s4747
          %s4749 = sand.u32 %s380, 1
          %s4750 = smul.addr %s4749, 256
          %s4751 = scalar_lea.vmem [#allocation6], %s4750
          %4752 = dma.done %s4748, 4096
        $region100: #{tpu_custom_call.1} parent=91 // pred_fallthru
          _
      $region92: #{tpu_custom_call.1} parent=5 // pred_fallthru
        _
    $region6: #{tpu_custom_call.1} parent=1 // loop_footer
      %s29 = sadd.s32 1, %s25
    $region7: #{tpu_custom_call.1} parent=1 // loop_footer_branch
      %24 = sbr.rel target = $region3
    $region8: #{tpu_custom_call.1} parent=1 // loop_exit
      _
    %4753 = vsyncpa [#allocation7], 1
    %s4754 = scalar_lea.sflag [#allocation7], 1
    %4755 = vsyncpa %s4754, 1

</llo_original>
